<compile_context>
chip_gen: v6e
topology: v6e:2x2x1
jax: 0.10.0
libtpu: 0.0.40
codegen_flags: <defaults>
</compile_context>

<pallas_src>
import functools

import jax
import jax.numpy as jnp
from jax.experimental import pallas as pl
from jax.experimental.pallas import tpu as pltpu


def _stage_kernel(x_ref, w_ref, p_ref, mask_ref, oe_ref, oo_ref,
                  *, T, F, Kt, Kf, Cout, Fe, Fo):
    """One decoder stage (GateConvTranspose2d + InstanceNorm2d + PReLU) for a
    single batch element, in channels-on-sublanes / pixels-on-lanes layout."""
    Cout2 = 2 * Cout
    L = F * T
    Le = Fe * T
    Lo = Fo * T

    # One MXU matmul for every (kt, kf, out/gate, channel) tap:
    #   contrib[(kt*Kf+kf)*Cout2 + co, f*T + t] = sum_ci W[kt,kf,ci,co] * x[ci,t,f]
    contrib = jnp.dot(w_ref[...], x_ref[0],
                      preferred_element_type=jnp.float32)   # (Kt*Kf*Cout2, F*T)

    # ConvTranspose2d stride (1,2) + Chomp_T(Kt-1): output (co, 2f+kf, t+kt)
    # receives contrib (co, f, t) when t+kt < T.  With the f-major/t-minor flat
    # pixel axis this is a constant lane shift dl = (kf//2)*T + kt into the
    # even (kf even) / odd (kf odd) output-frequency plane.
    acc_e = None
    acc_o = None
    for kt in range(Kt):
        for kf in range(Kf):
            src0 = (kt * Kf + kf) * Cout2
            src = contrib[src0:src0 + Cout2, :]
            if kt > 0:
                # zero the time taps removed by Chomp_T (t >= T - kt)
                src = src * mask_ref[kt - 1:kt, :]
            parity = kf % 2
            Lh = Le if parity == 0 else Lo
            dl = (kf // 2) * T + kt
            keep = min(L, Lh - dl)          # trimmed lanes are masked-zero
            piece = src if keep == L else src[:, :keep]
            parts = []
            if dl > 0:
                parts.append(jnp.zeros((Cout2, dl), jnp.float32))
            parts.append(piece)
            tail = Lh - dl - keep
            if tail > 0:
                parts.append(jnp.zeros((Cout2, tail), jnp.float32))
            full = parts[0] if len(parts) == 1 else jnp.concatenate(parts, axis=1)
            if parity == 0:
                acc_e = full if acc_e is None else acc_e + full
            else:
                acc_o = full if acc_o is None else acc_o + full

    # packed per-channel params as (Cout, 1) columns broadcast along lanes
    p = p_ref[...]
    b_out, b_gate = p[:, 0:1], p[:, 1:2]
    gamma, beta, alpha = p[:, 2:3], p[:, 3:4], p[:, 4:5]

    # GLU: out * sigmoid(gate)   (rows [0,Cout) = out, [Cout,2Cout) = gate)
    ae = (acc_e[0:Cout, :] + b_out) * jax.nn.sigmoid(acc_e[Cout:Cout2, :] + b_gate)
    ao = (acc_o[0:Cout, :] + b_out) * jax.nn.sigmoid(acc_o[Cout:Cout2, :] + b_gate)

    # InstanceNorm2d ('IN', affine): per-(sample, channel) stats over (T, Fout),
    # single-pass sum / sum-of-squares, biased variance, eps = 1e-5.
    inv_n = 1.0 / float(T * (Fe + Fo))
    s = jnp.sum(ae, axis=1, keepdims=True) + jnp.sum(ao, axis=1, keepdims=True)
    ss = (jnp.sum(ae * ae, axis=1, keepdims=True)
          + jnp.sum(ao * ao, axis=1, keepdims=True))
    mean = s * inv_n
    var = jnp.maximum(ss * inv_n - mean * mean, 0.0)
    scale = jax.lax.rsqrt(var + 1e-5) * gamma
    shift = beta - mean * scale

    he = ae * scale + shift
    ho = ao * scale + shift
    # per-channel PReLU
    he = jnp.where(he >= 0, he, alpha * he)
    ho = jnp.where(ho >= 0, ho, alpha * ho)

    oe_ref[0] = he.astype(oe_ref.dtype)
    oo_ref[0] = ho.astype(oo_ref.dtype)


def gate_deconv_block(x_bcft, w, b, gamma, beta, alpha):
    """One decoder stage.  x_bcft: (B, Cin, F, T) -> (B, Cout, Fout, T)."""
    B, Cin, F, T = x_bcft.shape
    Kt, Kf, Cin_w, Cout2 = w.shape
    assert Cin == Cin_w and Kf >= 2
    Cout = Cout2 // 2
    Fout = 2 * (F - 1) + Kf
    Fe = (Fout + 1) // 2      # even output frequency bins (kf even)
    Fo = Fout // 2            # odd  output frequency bins (kf odd)
    L = F * T
    Nw = Kt * Kf * Cout2

    x_flat = x_bcft.reshape(B, Cin, L).astype(jnp.bfloat16)
    # weight rows ordered (kt, kf, cout2); contraction dim (Cin) on lanes
    w_mat = jnp.transpose(w, (0, 1, 3, 2)).reshape(Nw, Cin).astype(jnp.bfloat16)
    # packed per-channel params: [b_out, b_gate, gamma, beta, alpha]
    pvec = jnp.stack([b[:Cout], b[Cout:], gamma, beta, alpha],
                     axis=1).astype(jnp.float32)                    # (Cout, 5)
    # Chomp_T masks: row (kt-1) keeps t < T - kt   (lane index = f*T + t)
    t_idx = jnp.tile(jnp.arange(T, dtype=jnp.int32), (F,))
    n_mask = max(Kt - 1, 1)
    t_mask = jnp.stack(
        [(t_idx < (T - kt)).astype(jnp.float32) for kt in range(1, n_mask + 1)],
        axis=0)                                                     # (n_mask, L)

    kern = functools.partial(_stage_kernel, T=T, F=F, Kt=Kt, Kf=Kf,
                             Cout=Cout, Fe=Fe, Fo=Fo)
    oe, oo = pl.pallas_call(
        kern,
        grid=(B,),
        in_specs=[
            pl.BlockSpec((1, Cin, L), lambda i: (i, 0, 0)),
            pl.BlockSpec((Nw, Cin), lambda i: (0, 0)),
            pl.BlockSpec((Cout, 5), lambda i: (0, 0)),
            pl.BlockSpec((n_mask, L), lambda i: (0, 0)),
        ],
        out_specs=[
            pl.BlockSpec((1, Cout, Fe * T), lambda i: (i, 0, 0)),
            pl.BlockSpec((1, Cout, Fo * T), lambda i: (i, 0, 0)),
        ],
        out_shape=[
            jax.ShapeDtypeStruct((B, Cout, Fe * T), jnp.float32),
            jax.ShapeDtypeStruct((B, Cout, Fo * T), jnp.float32),
        ],
        compiler_params=pltpu.CompilerParams(dimension_semantics=("parallel",)),
    )(x_flat, w_mat, pvec, t_mask)

    # interleave even/odd frequency planes (stack + reshape, no scatters)
    ye = oe.reshape(B, Cout, Fe, T)
    yo = oo.reshape(B, Cout, Fo, T)
    if Fe == Fo:
        out = jnp.stack([ye, yo], axis=3).reshape(B, Cout, Fout, T)
    else:  # Fe == Fo + 1
        body = jnp.stack([ye[:, :, :Fo], yo], axis=3).reshape(B, Cout, 2 * Fo, T)
        out = jnp.concatenate([body, ye[:, :, Fo:]], axis=2)
    return out                                     # (B, Cout, Fout, T)


def unet_decoder_pallas(x_nchw, en_list_nchw, params):
    """UNet_Decoder.forward.  x_nchw: (B, 64, T, F0); en_list entries in NCHW."""
    # one layout change at each boundary tensor: NCHW -> (B, C, F, T), kept
    # end-to-end (no per-stage transposes)
    x = jnp.transpose(x_nchw, (0, 1, 3, 2))
    en_t = [jnp.transpose(e, (0, 1, 3, 2)) for e in en_list_nchw]
    for i, (w, b, g, be, a) in enumerate(params):
        tmp = jnp.concatenate([x, en_t[-(i + 1)]], axis=1)   # torch.cat dim=1
        x = gate_deconv_block(tmp, w, b, g, be, a)
    return jnp.transpose(x, (0, 1, 3, 2))                    # back to NCHW
    # TODO(synk): NormSwitch 'BN'/'cLN' branches are not implemented; the module
    # is instantiated with norm_type='IN' (the cLN branch in the original code
    # is buggy anyway), so only InstanceNorm2d is supported.


# ------------------------- pure-JAX reference ------------------------------
def _ref_block(x_nchw, w, b, gamma, beta, alpha):
    Kt, Kf = w.shape[0], w.shape[1]
    # ConvTranspose2d == conv with lhs_dilation, full padding, flipped kernel.
    w_oihw = jnp.flip(jnp.transpose(w, (3, 2, 0, 1)), axis=(2, 3))
    y = jax.lax.conv_general_dilated(
        x_nchw.astype(jnp.bfloat16), w_oihw.astype(jnp.bfloat16),
        window_strides=(1, 1),
        padding=[(Kt - 1, Kt - 1), (Kf - 1, Kf - 1)],
        lhs_dilation=(1, 2),
        dimension_numbers=('NCHW', 'OIHW', 'NCHW'),
        preferred_element_type=jnp.float32)
    y = y + b.reshape(1, -1, 1, 1)
    T = x_nchw.shape[2]
    y = y[:, :, :T, :]                        # Chomp_T(Kt - 1)
    Cout = y.shape[1] // 2
    g = y[:, :Cout] * jax.nn.sigmoid(y[:, Cout:])
    mean = jnp.mean(g, axis=(2, 3), keepdims=True)
    var = jnp.mean((g - mean) ** 2, axis=(2, 3), keepdims=True)
    h = (g - mean) / jnp.sqrt(var + 1e-5)
    h = h * gamma.reshape(1, -1, 1, 1) + beta.reshape(1, -1, 1, 1)
    a = alpha.reshape(1, -1, 1, 1)
    return jnp.where(h >= 0, h, a * h)


def unet_decoder_ref(x, en_list, params):
    for i, p in enumerate(params):
        tmp = jnp.concatenate([x, en_list[-(i + 1)]], axis=1)
        x = _ref_block(tmp, *p)
    return x


# ------------------------------- main ---------------------------------------
if __name__ == "__main__":
    B, T = 2, 8
    c = 8               # UNet_Decoder c
    embed_dim = 8       # UNet_Decoder embed_dim
    c_beg = 64          # fixed in the module
    k1 = (2, 3)
    k_end = (2, 5)
    F0 = 3              # input frequency bins

    key = jax.random.PRNGKey(0)
    keys = jax.random.split(key, 16)

    # layer configs: (Cin, Cout, (Kt, Kf)) — mirrors UNet_Decoder.__init__
    cfgs = [(c_beg * 2, c, k1), (c * 2, c, k1), (c * 2, c, k1),
            (c * 2, c, k1), (c * 2, embed_dim, k_end)]

    params = []
    for li, (cin, cout, (kt, kf)) in enumerate(cfgs):
        ks = jax.random.split(keys[li], 5)
        scale = 1.0 / ((cin * kt * kf) ** 0.5)
        w = scale * jax.random.normal(ks[0], (kt, kf, cin, 2 * cout), jnp.float32)
        b = 0.1 * jax.random.normal(ks[1], (2 * cout,), jnp.float32)
        gamma = 1.0 + 0.1 * jax.random.normal(ks[2], (cout,), jnp.float32)
        beta = 0.1 * jax.random.normal(ks[3], (cout,), jnp.float32)
        alpha = 0.25 + 0.05 * jax.random.normal(ks[4], (cout,), jnp.float32)
        params.append((w, b, gamma, beta, alpha))

    # frequency sizes after each stage: F -> 2*(F-1) + Kf
    Fs = [F0]
    for (_, _, (_, kf)) in cfgs:
        Fs.append(2 * (Fs[-1] - 1) + kf)      # [3, 7, 15, 31, 63, 129]

    x0 = jax.random.normal(keys[10], (B, c_beg, T, F0), jnp.float32)
    # en_list[-(i+1)] is consumed at stage i, so shapes (channels, freq) are:
    en_list = [
        jax.random.normal(keys[11], (B, c,     T, Fs[4]), jnp.float32),  # i=4
        jax.random.normal(keys[12], (B, c,     T, Fs[3]), jnp.float32),  # i=3
        jax.random.normal(keys[13], (B, c,     T, Fs[2]), jnp.float32),  # i=2
        jax.random.normal(keys[14], (B, c,     T, Fs[1]), jnp.float32),  # i=1
        jax.random.normal(keys[15], (B, c_beg, T, Fs[0]), jnp.float32),  # i=0
    ]

    pallas_fn = jax.jit(unet_decoder_pallas)
    out = jax.block_until_ready(pallas_fn(x0, en_list, params))

    ref_fn = jax.jit(unet_decoder_ref)
    ref = jax.block_until_ready(ref_fn(x0, en_list, params))

    assert out.shape == (B, embed_dim, T, Fs[5]), out.shape
    max_err = float(jnp.max(jnp.abs(out - ref)))
    assert jnp.allclose(out, ref, atol=2e-2, rtol=2e-2), max_err
    print("KERNEL_OK")
</pallas_src>

<mosaic_0001>
module attributes {stable_mosaic.version = 11 : i64} {
  func.func @_stage_kernel(%arg0: i32, %arg1: memref<1x128x24xbf16, #tpu.memory_space<vmem>>, %arg2: memref<96x128xbf16, #tpu.memory_space<vmem>>, %arg3: memref<8x5xf32, #tpu.memory_space<vmem>>, %arg4: memref<1x24xf32, #tpu.memory_space<vmem>>, %arg5: memref<1x8x32xf32, #tpu.memory_space<vmem>>, %arg6: memref<1x8x24xf32, #tpu.memory_space<vmem>>) attributes {dimension_semantics = [#tpu.dimension_semantics<parallel>], iteration_bounds = array<i64: 2>, scalar_prefetch = 0 : i64, scratch_operands = 0 : i64, tpu.core_type = #tpu.core_type<tc>, window_params = [{transform_indices = @transform_0, window_bounds = array<i64: 1, 128, 24>}, {pipeline_mode = #tpu.pipeline_mode<synchronous>, transform_indices = @transform_1, window_bounds = array<i64: 96, 128>}, {pipeline_mode = #tpu.pipeline_mode<synchronous>, transform_indices = @transform_2, window_bounds = array<i64: 8, 5>}, {pipeline_mode = #tpu.pipeline_mode<synchronous>, transform_indices = @transform_3, window_bounds = array<i64: 1, 24>}, {transform_indices = @transform_4, window_bounds = array<i64: 1, 8, 32>}, {transform_indices = @transform_5, window_bounds = array<i64: 1, 8, 24>}]} {
    %c0 = arith.constant 0 : index
    %c0_0 = arith.constant 0 : index
    %0 = vector.load %arg2[%c0, %c0_0] : memref<96x128xbf16, #tpu.memory_space<vmem>>, vector<96x128xbf16>
    %c0_1 = arith.constant 0 : index
    %c0_2 = arith.constant 0 : index
    %c0_3 = arith.constant 0 : index
    %1 = vector.load %arg1[%c0_1, %c0_2, %c0_3] : memref<1x128x24xbf16, #tpu.memory_space<vmem>>, vector<1x128x24xbf16>
    %2 = vector.shape_cast %1 : vector<1x128x24xbf16> to vector<128x24xbf16>
    %cst = arith.constant dense<0.000000e+00> : vector<96x24xf32>
    %3 = tpu.matmul %0, %2, %cst {dimension_numbers = #tpu.dot_dimension_numbers<[1], [0], [0], [1], [0, 0, 1, 1], [], []>} : vector<96x128xbf16>, vector<128x24xbf16>, vector<96x24xf32> -> vector<96x24xf32>
    %4 = vector.extract_strided_slice %3 {offsets = [0, 0], sizes = [16, 24], strides = [1, 1]} : vector<96x24xf32> to vector<16x24xf32>
    %cst_4 = arith.constant 0.000000e+00 : f32
    %5 = vector.broadcast %cst_4 : f32 to vector<16x8xf32>
    %6 = tpu.concatenate %4, %5 in 1 : vector<16x24xf32>, vector<16x8xf32> -> vector<16x32xf32>
    %7 = vector.extract_strided_slice %3 {offsets = [16, 0], sizes = [16, 24], strides = [1, 1]} : vector<96x24xf32> to vector<16x24xf32>
    %8 = vector.extract_strided_slice %3 {offsets = [32, 0], sizes = [16, 24], strides = [1, 1]} : vector<96x24xf32> to vector<16x24xf32>
    %cst_5 = arith.constant 0.000000e+00 : f32
    %9 = vector.broadcast %cst_5 : f32 to vector<16x8xf32>
    %10 = tpu.concatenate %9, %8 in 1 : vector<16x8xf32>, vector<16x24xf32> -> vector<16x32xf32>
    %11 = arith.addf %6, %10 : vector<16x32xf32>
    %12 = vector.extract_strided_slice %3 {offsets = [48, 0], sizes = [16, 24], strides = [1, 1]} : vector<96x24xf32> to vector<16x24xf32>
    %c0_6 = arith.constant 0 : index
    %c0_7 = arith.constant 0 : index
    %13 = vector.load %arg4[%c0_6, %c0_7] : memref<1x24xf32, #tpu.memory_space<vmem>>, vector<1x24xf32>
    %14 = vector.broadcast %13 : vector<1x24xf32> to vector<16x24xf32>
    %15 = arith.mulf %12, %14 : vector<16x24xf32>
    %cst_8 = arith.constant 0.000000e+00 : f32
    %16 = vector.broadcast %cst_8 : f32 to vector<16x1xf32>
    %cst_9 = arith.constant 0.000000e+00 : f32
    %17 = vector.broadcast %cst_9 : f32 to vector<16x7xf32>
    %18 = tpu.concatenate %16, %15, %17 in 1 : vector<16x1xf32>, vector<16x24xf32>, vector<16x7xf32> -> vector<16x32xf32>
    %19 = arith.addf %11, %18 : vector<16x32xf32>
    %20 = vector.extract_strided_slice %3 {offsets = [64, 0], sizes = [16, 24], strides = [1, 1]} : vector<96x24xf32> to vector<16x24xf32>
    %c0_10 = arith.constant 0 : index
    %c0_11 = arith.constant 0 : index
    %21 = vector.load %arg4[%c0_10, %c0_11] : memref<1x24xf32, #tpu.memory_space<vmem>>, vector<1x24xf32>
    %22 = vector.broadcast %21 : vector<1x24xf32> to vector<16x24xf32>
    %23 = arith.mulf %20, %22 : vector<16x24xf32>
    %24 = vector.extract_strided_slice %23 {offsets = [0, 0], sizes = [16, 23], strides = [1, 1]} : vector<16x24xf32> to vector<16x23xf32>
    %cst_12 = arith.constant 0.000000e+00 : f32
    %25 = vector.broadcast %cst_12 : f32 to vector<16x1xf32>
    %26 = tpu.concatenate %25, %24 in 1 : vector<16x1xf32>, vector<16x23xf32> -> vector<16x24xf32>
    %27 = arith.addf %7, %26 : vector<16x24xf32>
    %28 = vector.extract_strided_slice %3 {offsets = [80, 0], sizes = [16, 24], strides = [1, 1]} : vector<96x24xf32> to vector<16x24xf32>
    %c0_13 = arith.constant 0 : index
    %c0_14 = arith.constant 0 : index
    %29 = vector.load %arg4[%c0_13, %c0_14] : memref<1x24xf32, #tpu.memory_space<vmem>>, vector<1x24xf32>
    %30 = vector.broadcast %29 : vector<1x24xf32> to vector<16x24xf32>
    %31 = arith.mulf %28, %30 : vector<16x24xf32>
    %32 = vector.extract_strided_slice %31 {offsets = [0, 0], sizes = [16, 23], strides = [1, 1]} : vector<16x24xf32> to vector<16x23xf32>
    %cst_15 = arith.constant 0.000000e+00 : f32
    %33 = vector.broadcast %cst_15 : f32 to vector<16x9xf32>
    %34 = tpu.concatenate %33, %32 in 1 : vector<16x9xf32>, vector<16x23xf32> -> vector<16x32xf32>
    %35 = arith.addf %19, %34 : vector<16x32xf32>
    %c0_16 = arith.constant 0 : index
    %c0_17 = arith.constant 0 : index
    %36 = vector.load %arg3[%c0_16, %c0_17] : memref<8x5xf32, #tpu.memory_space<vmem>>, vector<8x5xf32>
    %37 = vector.extract_strided_slice %36 {offsets = [0, 0], sizes = [8, 1], strides = [1, 1]} : vector<8x5xf32> to vector<8x1xf32>
    %38 = vector.extract_strided_slice %36 {offsets = [0, 1], sizes = [8, 1], strides = [1, 1]} : vector<8x5xf32> to vector<8x1xf32>
    %39 = vector.extract_strided_slice %36 {offsets = [0, 2], sizes = [8, 1], strides = [1, 1]} : vector<8x5xf32> to vector<8x1xf32>
    %40 = vector.extract_strided_slice %36 {offsets = [0, 3], sizes = [8, 1], strides = [1, 1]} : vector<8x5xf32> to vector<8x1xf32>
    %41 = vector.extract_strided_slice %36 {offsets = [0, 4], sizes = [8, 1], strides = [1, 1]} : vector<8x5xf32> to vector<8x1xf32>
    %42 = vector.extract_strided_slice %35 {offsets = [0, 0], sizes = [8, 32], strides = [1, 1]} : vector<16x32xf32> to vector<8x32xf32>
    %43 = vector.broadcast %37 : vector<8x1xf32> to vector<8x32xf32>
    %44 = arith.addf %42, %43 : vector<8x32xf32>
    %45 = vector.extract_strided_slice %35 {offsets = [8, 0], sizes = [8, 32], strides = [1, 1]} : vector<16x32xf32> to vector<8x32xf32>
    %46 = vector.broadcast %38 : vector<8x1xf32> to vector<8x32xf32>
    %47 = arith.addf %45, %46 : vector<8x32xf32>
    %48 = arith.negf %47 : vector<8x32xf32>
    %49 = math.exp %48 : vector<8x32xf32>
    %cst_18 = arith.constant 1.000000e+00 : f32
    %50 = vector.broadcast %cst_18 : f32 to vector<8x32xf32>
    %51 = arith.addf %50, %49 : vector<8x32xf32>
    %52 = arith.divf %50, %51 : vector<8x32xf32>
    %53 = arith.mulf %44, %52 : vector<8x32xf32>
    %54 = vector.extract_strided_slice %27 {offsets = [0, 0], sizes = [8, 24], strides = [1, 1]} : vector<16x24xf32> to vector<8x24xf32>
    %55 = vector.broadcast %37 : vector<8x1xf32> to vector<8x24xf32>
    %56 = arith.addf %54, %55 : vector<8x24xf32>
    %57 = vector.extract_strided_slice %27 {offsets = [8, 0], sizes = [8, 24], strides = [1, 1]} : vector<16x24xf32> to vector<8x24xf32>
    %58 = vector.broadcast %38 : vector<8x1xf32> to vector<8x24xf32>
    %59 = arith.addf %57, %58 : vector<8x24xf32>
    %60 = arith.negf %59 : vector<8x24xf32>
    %61 = math.exp %60 : vector<8x24xf32>
    %cst_19 = arith.constant 1.000000e+00 : f32
    %62 = vector.broadcast %cst_19 : f32 to vector<8x24xf32>
    %63 = arith.addf %62, %61 : vector<8x24xf32>
    %64 = arith.divf %62, %63 : vector<8x24xf32>
    %65 = arith.mulf %56, %64 : vector<8x24xf32>
    %cst_20 = arith.constant dense<0.000000e+00> : vector<8xf32>
    %66 = vector.multi_reduction <add>, %53, %cst_20 [1] : vector<8x32xf32> to vector<8xf32>
    %67 = vector.shape_cast %66 : vector<8xf32> to vector<8x1xf32>
    %cst_21 = arith.constant dense<0.000000e+00> : vector<8xf32>
    %68 = vector.multi_reduction <add>, %65, %cst_21 [1] : vector<8x24xf32> to vector<8xf32>
    %69 = vector.shape_cast %68 : vector<8xf32> to vector<8x1xf32>
    %70 = arith.addf %67, %69 : vector<8x1xf32>
    %71 = arith.mulf %53, %53 : vector<8x32xf32>
    %cst_22 = arith.constant dense<0.000000e+00> : vector<8xf32>
    %72 = vector.multi_reduction <add>, %71, %cst_22 [1] : vector<8x32xf32> to vector<8xf32>
    %73 = vector.shape_cast %72 : vector<8xf32> to vector<8x1xf32>
    %74 = arith.mulf %65, %65 : vector<8x24xf32>
    %cst_23 = arith.constant dense<0.000000e+00> : vector<8xf32>
    %75 = vector.multi_reduction <add>, %74, %cst_23 [1] : vector<8x24xf32> to vector<8xf32>
    %76 = vector.shape_cast %75 : vector<8xf32> to vector<8x1xf32>
    %77 = arith.addf %73, %76 : vector<8x1xf32>
    %cst_24 = arith.constant 0.0178571437 : f32
    %78 = vector.broadcast %cst_24 : f32 to vector<8x1xf32>
    %79 = arith.mulf %70, %78 : vector<8x1xf32>
    %cst_25 = arith.constant 0.0178571437 : f32
    %80 = vector.broadcast %cst_25 : f32 to vector<8x1xf32>
    %81 = arith.mulf %77, %80 : vector<8x1xf32>
    %82 = arith.mulf %79, %79 : vector<8x1xf32>
    %83 = arith.subf %81, %82 : vector<8x1xf32>
    %cst_26 = arith.constant 0.000000e+00 : f32
    %84 = vector.broadcast %cst_26 : f32 to vector<8x1xf32>
    %85 = arith.maximumf %83, %84 : vector<8x1xf32>
    %cst_27 = arith.constant 9.99999974E-6 : f32
    %86 = vector.broadcast %cst_27 : f32 to vector<8x1xf32>
    %87 = arith.addf %85, %86 : vector<8x1xf32>
    %88 = math.rsqrt %87 : vector<8x1xf32>
    %89 = arith.mulf %88, %39 : vector<8x1xf32>
    %90 = arith.mulf %79, %89 : vector<8x1xf32>
    %91 = arith.subf %40, %90 : vector<8x1xf32>
    %92 = vector.broadcast %89 : vector<8x1xf32> to vector<8x32xf32>
    %93 = arith.mulf %53, %92 : vector<8x32xf32>
    %94 = vector.broadcast %91 : vector<8x1xf32> to vector<8x32xf32>
    %95 = arith.addf %93, %94 : vector<8x32xf32>
    %96 = vector.broadcast %89 : vector<8x1xf32> to vector<8x24xf32>
    %97 = arith.mulf %65, %96 : vector<8x24xf32>
    %98 = vector.broadcast %91 : vector<8x1xf32> to vector<8x24xf32>
    %99 = arith.addf %97, %98 : vector<8x24xf32>
    %cst_28 = arith.constant 0.000000e+00 : f32
    %100 = vector.broadcast %cst_28 : f32 to vector<8x32xf32>
    %101 = arith.cmpf oge, %95, %100 : vector<8x32xf32>
    %102 = vector.broadcast %41 : vector<8x1xf32> to vector<8x32xf32>
    %103 = arith.mulf %102, %95 : vector<8x32xf32>
    %104 = arith.select %101, %95, %103 : vector<8x32xi1>, vector<8x32xf32>
    %cst_29 = arith.constant 0.000000e+00 : f32
    %105 = vector.broadcast %cst_29 : f32 to vector<8x24xf32>
    %106 = arith.cmpf oge, %99, %105 : vector<8x24xf32>
    %107 = vector.broadcast %41 : vector<8x1xf32> to vector<8x24xf32>
    %108 = arith.mulf %107, %99 : vector<8x24xf32>
    %109 = arith.select %106, %99, %108 : vector<8x24xi1>, vector<8x24xf32>
    %c0_30 = arith.constant 0 : index
    %c0_31 = arith.constant 0 : index
    %c0_32 = arith.constant 0 : index
    %110 = vector.load %arg5[%c0_30, %c0_31, %c0_32] : memref<1x8x32xf32, #tpu.memory_space<vmem>>, vector<1x8x32xf32>
    %111 = vector.shape_cast %110 : vector<1x8x32xf32> to vector<8x32xf32>
    %112 = vector.shape_cast %104 : vector<8x32xf32> to vector<1x8x32xf32>
    tpu.vector_store %arg5[%c0_30, %c0_31, %c0_32], %112 {strides = array<i32>} : memref<1x8x32xf32, #tpu.memory_space<vmem>>, vector<1x8x32xf32>,
    %c0_33 = arith.constant 0 : index
    %c0_34 = arith.constant 0 : index
    %c0_35 = arith.constant 0 : index
    %113 = vector.load %arg6[%c0_33, %c0_34, %c0_35] : memref<1x8x24xf32, #tpu.memory_space<vmem>>, vector<1x8x24xf32>
    %114 = vector.shape_cast %113 : vector<1x8x24xf32> to vector<8x24xf32>
    %115 = vector.shape_cast %109 : vector<8x24xf32> to vector<1x8x24xf32>
    tpu.vector_store %arg6[%c0_33, %c0_34, %c0_35], %115 {strides = array<i32>} : memref<1x8x24xf32, #tpu.memory_space<vmem>>, vector<1x8x24xf32>,
    return
  }
  func.func @transform_0(%arg0: i32) -> (i32, i32, i32) {
    %c0_i32 = arith.constant 0 : i32
    %c0_i32_0 = arith.constant 0 : i32
    %c0_i32_1 = arith.constant 0 : i32
    return %arg0, %c0_i32, %c0_i32_0 : i32, i32, i32
  }
  func.func @transform_1(%arg0: i32) -> (i32, i32) {
    %c0_i32 = arith.constant 0 : i32
    %c0_i32_0 = arith.constant 0 : i32
    %c0_i32_1 = arith.constant 0 : i32
    return %c0_i32, %c0_i32_0 : i32, i32
  }
  func.func @transform_2(%arg0: i32) -> (i32, i32) {
    %c0_i32 = arith.constant 0 : i32
    %c0_i32_0 = arith.constant 0 : i32
    %c0_i32_1 = arith.constant 0 : i32
    return %c0_i32, %c0_i32_0 : i32, i32
  }
  func.func @transform_3(%arg0: i32) -> (i32, i32) {
    %c0_i32 = arith.constant 0 : i32
    %c0_i32_0 = arith.constant 0 : i32
    %c0_i32_1 = arith.constant 0 : i32
    return %c0_i32, %c0_i32_0 : i32, i32
  }
  func.func @transform_4(%arg0: i32) -> (i32, i32, i32) {
    %c0_i32 = arith.constant 0 : i32
    %c0_i32_0 = arith.constant 0 : i32
    %c0_i32_1 = arith.constant 0 : i32
    return %arg0, %c0_i32, %c0_i32_0 : i32, i32, i32
  }
  func.func @transform_5(%arg0: i32) -> (i32, i32, i32) {
    %c0_i32 = arith.constant 0 : i32
    %c0_i32_0 = arith.constant 0 : i32
    %c0_i32_1 = arith.constant 0 : i32
    return %arg0, %c0_i32, %c0_i32_0 : i32, i32, i32
  }
}

module attributes {stable_mosaic.version = 11 : i64} {
  func.func @_stage_kernel(%arg0: i32, %arg1: memref<1x16x56xbf16, #tpu.memory_space<vmem>>, %arg2: memref<96x16xbf16, #tpu.memory_space<vmem>>, %arg3: memref<8x5xf32, #tpu.memory_space<vmem>>, %arg4: memref<1x56xf32, #tpu.memory_space<vmem>>, %arg5: memref<1x8x64xf32, #tpu.memory_space<vmem>>, %arg6: memref<1x8x56xf32, #tpu.memory_space<vmem>>) attributes {dimension_semantics = [#tpu.dimension_semantics<parallel>], iteration_bounds = array<i64: 2>, scalar_prefetch = 0 : i64, scratch_operands = 0 : i64, tpu.core_type = #tpu.core_type<tc>, window_params = [{transform_indices = @transform_0, window_bounds = array<i64: 1, 16, 56>}, {pipeline_mode = #tpu.pipeline_mode<synchronous>, transform_indices = @transform_1, window_bounds = array<i64: 96, 16>}, {pipeline_mode = #tpu.pipeline_mode<synchronous>, transform_indices = @transform_2, window_bounds = array<i64: 8, 5>}, {pipeline_mode = #tpu.pipeline_mode<synchronous>, transform_indices = @transform_3, window_bounds = array<i64: 1, 56>}, {transform_indices = @transform_4, window_bounds = array<i64: 1, 8, 64>}, {transform_indices = @transform_5, window_bounds = array<i64: 1, 8, 56>}]} {
    %c0 = arith.constant 0 : index
    %c0_0 = arith.constant 0 : index
    %0 = vector.load %arg2[%c0, %c0_0] : memref<96x16xbf16, #tpu.memory_space<vmem>>, vector<96x16xbf16>
    %c0_1 = arith.constant 0 : index
    %c0_2 = arith.constant 0 : index
    %c0_3 = arith.constant 0 : index
    %1 = vector.load %arg1[%c0_1, %c0_2, %c0_3] : memref<1x16x56xbf16, #tpu.memory_space<vmem>>, vector<1x16x56xbf16>
    %2 = vector.shape_cast %1 : vector<1x16x56xbf16> to vector<16x56xbf16>
    %cst = arith.constant dense<0.000000e+00> : vector<96x56xf32>
    %3 = tpu.matmul %0, %2, %cst {dimension_numbers = #tpu.dot_dimension_numbers<[1], [0], [0], [1], [0, 0, 1, 1], [], []>} : vector<96x16xbf16>, vector<16x56xbf16>, vector<96x56xf32> -> vector<96x56xf32>
    %4 = vector.extract_strided_slice %3 {offsets = [0, 0], sizes = [16, 56], strides = [1, 1]} : vector<96x56xf32> to vector<16x56xf32>
    %cst_4 = arith.constant 0.000000e+00 : f32
    %5 = vector.broadcast %cst_4 : f32 to vector<16x8xf32>
    %6 = tpu.concatenate %4, %5 in 1 : vector<16x56xf32>, vector<16x8xf32> -> vector<16x64xf32>
    %7 = vector.extract_strided_slice %3 {offsets = [16, 0], sizes = [16, 56], strides = [1, 1]} : vector<96x56xf32> to vector<16x56xf32>
    %8 = vector.extract_strided_slice %3 {offsets = [32, 0], sizes = [16, 56], strides = [1, 1]} : vector<96x56xf32> to vector<16x56xf32>
    %cst_5 = arith.constant 0.000000e+00 : f32
    %9 = vector.broadcast %cst_5 : f32 to vector<16x8xf32>
    %10 = tpu.concatenate %9, %8 in 1 : vector<16x8xf32>, vector<16x56xf32> -> vector<16x64xf32>
    %11 = arith.addf %6, %10 : vector<16x64xf32>
    %12 = vector.extract_strided_slice %3 {offsets = [48, 0], sizes = [16, 56], strides = [1, 1]} : vector<96x56xf32> to vector<16x56xf32>
    %c0_6 = arith.constant 0 : index
    %c0_7 = arith.constant 0 : index
    %13 = vector.load %arg4[%c0_6, %c0_7] : memref<1x56xf32, #tpu.memory_space<vmem>>, vector<1x56xf32>
    %14 = vector.broadcast %13 : vector<1x56xf32> to vector<16x56xf32>
    %15 = arith.mulf %12, %14 : vector<16x56xf32>
    %cst_8 = arith.constant 0.000000e+00 : f32
    %16 = vector.broadcast %cst_8 : f32 to vector<16x1xf32>
    %cst_9 = arith.constant 0.000000e+00 : f32
    %17 = vector.broadcast %cst_9 : f32 to vector<16x7xf32>
    %18 = tpu.concatenate %16, %15, %17 in 1 : vector<16x1xf32>, vector<16x56xf32>, vector<16x7xf32> -> vector<16x64xf32>
    %19 = arith.addf %11, %18 : vector<16x64xf32>
    %20 = vector.extract_strided_slice %3 {offsets = [64, 0], sizes = [16, 56], strides = [1, 1]} : vector<96x56xf32> to vector<16x56xf32>
    %c0_10 = arith.constant 0 : index
    %c0_11 = arith.constant 0 : index
    %21 = vector.load %arg4[%c0_10, %c0_11] : memref<1x56xf32, #tpu.memory_space<vmem>>, vector<1x56xf32>
    %22 = vector.broadcast %21 : vector<1x56xf32> to vector<16x56xf32>
    %23 = arith.mulf %20, %22 : vector<16x56xf32>
    %24 = vector.extract_strided_slice %23 {offsets = [0, 0], sizes = [16, 55], strides = [1, 1]} : vector<16x56xf32> to vector<16x55xf32>
    %cst_12 = arith.constant 0.000000e+00 : f32
    %25 = vector.broadcast %cst_12 : f32 to vector<16x1xf32>
    %26 = tpu.concatenate %25, %24 in 1 : vector<16x1xf32>, vector<16x55xf32> -> vector<16x56xf32>
    %27 = arith.addf %7, %26 : vector<16x56xf32>
    %28 = vector.extract_strided_slice %3 {offsets = [80, 0], sizes = [16, 56], strides = [1, 1]} : vector<96x56xf32> to vector<16x56xf32>
    %c0_13 = arith.constant 0 : index
    %c0_14 = arith.constant 0 : index
    %29 = vector.load %arg4[%c0_13, %c0_14] : memref<1x56xf32, #tpu.memory_space<vmem>>, vector<1x56xf32>
    %30 = vector.broadcast %29 : vector<1x56xf32> to vector<16x56xf32>
    %31 = arith.mulf %28, %30 : vector<16x56xf32>
    %32 = vector.extract_strided_slice %31 {offsets = [0, 0], sizes = [16, 55], strides = [1, 1]} : vector<16x56xf32> to vector<16x55xf32>
    %cst_15 = arith.constant 0.000000e+00 : f32
    %33 = vector.broadcast %cst_15 : f32 to vector<16x9xf32>
    %34 = tpu.concatenate %33, %32 in 1 : vector<16x9xf32>, vector<16x55xf32> -> vector<16x64xf32>
    %35 = arith.addf %19, %34 : vector<16x64xf32>
    %c0_16 = arith.constant 0 : index
    %c0_17 = arith.constant 0 : index
    %36 = vector.load %arg3[%c0_16, %c0_17] : memref<8x5xf32, #tpu.memory_space<vmem>>, vector<8x5xf32>
    %37 = vector.extract_strided_slice %36 {offsets = [0, 0], sizes = [8, 1], strides = [1, 1]} : vector<8x5xf32> to vector<8x1xf32>
    %38 = vector.extract_strided_slice %36 {offsets = [0, 1], sizes = [8, 1], strides = [1, 1]} : vector<8x5xf32> to vector<8x1xf32>
    %39 = vector.extract_strided_slice %36 {offsets = [0, 2], sizes = [8, 1], strides = [1, 1]} : vector<8x5xf32> to vector<8x1xf32>
    %40 = vector.extract_strided_slice %36 {offsets = [0, 3], sizes = [8, 1], strides = [1, 1]} : vector<8x5xf32> to vector<8x1xf32>
    %41 = vector.extract_strided_slice %36 {offsets = [0, 4], sizes = [8, 1], strides = [1, 1]} : vector<8x5xf32> to vector<8x1xf32>
    %42 = vector.extract_strided_slice %35 {offsets = [0, 0], sizes = [8, 64], strides = [1, 1]} : vector<16x64xf32> to vector<8x64xf32>
    %43 = vector.broadcast %37 : vector<8x1xf32> to vector<8x64xf32>
    %44 = arith.addf %42, %43 : vector<8x64xf32>
    %45 = vector.extract_strided_slice %35 {offsets = [8, 0], sizes = [8, 64], strides = [1, 1]} : vector<16x64xf32> to vector<8x64xf32>
    %46 = vector.broadcast %38 : vector<8x1xf32> to vector<8x64xf32>
    %47 = arith.addf %45, %46 : vector<8x64xf32>
    %48 = arith.negf %47 : vector<8x64xf32>
    %49 = math.exp %48 : vector<8x64xf32>
    %cst_18 = arith.constant 1.000000e+00 : f32
    %50 = vector.broadcast %cst_18 : f32 to vector<8x64xf32>
    %51 = arith.addf %50, %49 : vector<8x64xf32>
    %52 = arith.divf %50, %51 : vector<8x64xf32>
    %53 = arith.mulf %44, %52 : vector<8x64xf32>
    %54 = vector.extract_strided_slice %27 {offsets = [0, 0], sizes = [8, 56], strides = [1, 1]} : vector<16x56xf32> to vector<8x56xf32>
    %55 = vector.broadcast %37 : vector<8x1xf32> to vector<8x56xf32>
    %56 = arith.addf %54, %55 : vector<8x56xf32>
    %57 = vector.extract_strided_slice %27 {offsets = [8, 0], sizes = [8, 56], strides = [1, 1]} : vector<16x56xf32> to vector<8x56xf32>
    %58 = vector.broadcast %38 : vector<8x1xf32> to vector<8x56xf32>
    %59 = arith.addf %57, %58 : vector<8x56xf32>
    %60 = arith.negf %59 : vector<8x56xf32>
    %61 = math.exp %60 : vector<8x56xf32>
    %cst_19 = arith.constant 1.000000e+00 : f32
    %62 = vector.broadcast %cst_19 : f32 to vector<8x56xf32>
    %63 = arith.addf %62, %61 : vector<8x56xf32>
    %64 = arith.divf %62, %63 : vector<8x56xf32>
    %65 = arith.mulf %56, %64 : vector<8x56xf32>
    %cst_20 = arith.constant dense<0.000000e+00> : vector<8xf32>
    %66 = vector.multi_reduction <add>, %53, %cst_20 [1] : vector<8x64xf32> to vector<8xf32>
    %67 = vector.shape_cast %66 : vector<8xf32> to vector<8x1xf32>
    %cst_21 = arith.constant dense<0.000000e+00> : vector<8xf32>
    %68 = vector.multi_reduction <add>, %65, %cst_21 [1] : vector<8x56xf32> to vector<8xf32>
    %69 = vector.shape_cast %68 : vector<8xf32> to vector<8x1xf32>
    %70 = arith.addf %67, %69 : vector<8x1xf32>
    %71 = arith.mulf %53, %53 : vector<8x64xf32>
    %cst_22 = arith.constant dense<0.000000e+00> : vector<8xf32>
    %72 = vector.multi_reduction <add>, %71, %cst_22 [1] : vector<8x64xf32> to vector<8xf32>
    %73 = vector.shape_cast %72 : vector<8xf32> to vector<8x1xf32>
    %74 = arith.mulf %65, %65 : vector<8x56xf32>
    %cst_23 = arith.constant dense<0.000000e+00> : vector<8xf32>
    %75 = vector.multi_reduction <add>, %74, %cst_23 [1] : vector<8x56xf32> to vector<8xf32>
    %76 = vector.shape_cast %75 : vector<8xf32> to vector<8x1xf32>
    %77 = arith.addf %73, %76 : vector<8x1xf32>
    %cst_24 = arith.constant 0.00833333377 : f32
    %78 = vector.broadcast %cst_24 : f32 to vector<8x1xf32>
    %79 = arith.mulf %70, %78 : vector<8x1xf32>
    %cst_25 = arith.constant 0.00833333377 : f32
    %80 = vector.broadcast %cst_25 : f32 to vector<8x1xf32>
    %81 = arith.mulf %77, %80 : vector<8x1xf32>
    %82 = arith.mulf %79, %79 : vector<8x1xf32>
    %83 = arith.subf %81, %82 : vector<8x1xf32>
    %cst_26 = arith.constant 0.000000e+00 : f32
    %84 = vector.broadcast %cst_26 : f32 to vector<8x1xf32>
    %85 = arith.maximumf %83, %84 : vector<8x1xf32>
    %cst_27 = arith.constant 9.99999974E-6 : f32
    %86 = vector.broadcast %cst_27 : f32 to vector<8x1xf32>
    %87 = arith.addf %85, %86 : vector<8x1xf32>
    %88 = math.rsqrt %87 : vector<8x1xf32>
    %89 = arith.mulf %88, %39 : vector<8x1xf32>
    %90 = arith.mulf %79, %89 : vector<8x1xf32>
    %91 = arith.subf %40, %90 : vector<8x1xf32>
    %92 = vector.broadcast %89 : vector<8x1xf32> to vector<8x64xf32>
    %93 = arith.mulf %53, %92 : vector<8x64xf32>
    %94 = vector.broadcast %91 : vector<8x1xf32> to vector<8x64xf32>
    %95 = arith.addf %93, %94 : vector<8x64xf32>
    %96 = vector.broadcast %89 : vector<8x1xf32> to vector<8x56xf32>
    %97 = arith.mulf %65, %96 : vector<8x56xf32>
    %98 = vector.broadcast %91 : vector<8x1xf32> to vector<8x56xf32>
    %99 = arith.addf %97, %98 : vector<8x56xf32>
    %cst_28 = arith.constant 0.000000e+00 : f32
    %100 = vector.broadcast %cst_28 : f32 to vector<8x64xf32>
    %101 = arith.cmpf oge, %95, %100 : vector<8x64xf32>
    %102 = vector.broadcast %41 : vector<8x1xf32> to vector<8x64xf32>
    %103 = arith.mulf %102, %95 : vector<8x64xf32>
    %104 = arith.select %101, %95, %103 : vector<8x64xi1>, vector<8x64xf32>
    %cst_29 = arith.constant 0.000000e+00 : f32
    %105 = vector.broadcast %cst_29 : f32 to vector<8x56xf32>
    %106 = arith.cmpf oge, %99, %105 : vector<8x56xf32>
    %107 = vector.broadcast %41 : vector<8x1xf32> to vector<8x56xf32>
    %108 = arith.mulf %107, %99 : vector<8x56xf32>
    %109 = arith.select %106, %99, %108 : vector<8x56xi1>, vector<8x56xf32>
    %c0_30 = arith.constant 0 : index
    %c0_31 = arith.constant 0 : index
    %c0_32 = arith.constant 0 : index
    %110 = vector.load %arg5[%c0_30, %c0_31, %c0_32] : memref<1x8x64xf32, #tpu.memory_space<vmem>>, vector<1x8x64xf32>
    %111 = vector.shape_cast %110 : vector<1x8x64xf32> to vector<8x64xf32>
    %112 = vector.shape_cast %104 : vector<8x64xf32> to vector<1x8x64xf32>
    tpu.vector_store %arg5[%c0_30, %c0_31, %c0_32], %112 {strides = array<i32>} : memref<1x8x64xf32, #tpu.memory_space<vmem>>, vector<1x8x64xf32>,
    %c0_33 = arith.constant 0 : index
    %c0_34 = arith.constant 0 : index
    %c0_35 = arith.constant 0 : index
    %113 = vector.load %arg6[%c0_33, %c0_34, %c0_35] : memref<1x8x56xf32, #tpu.memory_space<vmem>>, vector<1x8x56xf32>
    %114 = vector.shape_cast %113 : vector<1x8x56xf32> to vector<8x56xf32>
    %115 = vector.shape_cast %109 : vector<8x56xf32> to vector<1x8x56xf32>
    tpu.vector_store %arg6[%c0_33, %c0_34, %c0_35], %115 {strides = array<i32>} : memref<1x8x56xf32, #tpu.memory_space<vmem>>, vector<1x8x56xf32>,
    return
  }
  func.func @transform_0(%arg0: i32) -> (i32, i32, i32) {
    %c0_i32 = arith.constant 0 : i32
    %c0_i32_0 = arith.constant 0 : i32
    %c0_i32_1 = arith.constant 0 : i32
    return %arg0, %c0_i32, %c0_i32_0 : i32, i32, i32
  }
  func.func @transform_1(%arg0: i32) -> (i32, i32) {
    %c0_i32 = arith.constant 0 : i32
    %c0_i32_0 = arith.constant 0 : i32
    %c0_i32_1 = arith.constant 0 : i32
    return %c0_i32, %c0_i32_0 : i32, i32
  }
  func.func @transform_2(%arg0: i32) -> (i32, i32) {
    %c0_i32 = arith.constant 0 : i32
    %c0_i32_0 = arith.constant 0 : i32
    %c0_i32_1 = arith.constant 0 : i32
    return %c0_i32, %c0_i32_0 : i32, i32
  }
  func.func @transform_3(%arg0: i32) -> (i32, i32) {
    %c0_i32 = arith.constant 0 : i32
    %c0_i32_0 = arith.constant 0 : i32
    %c0_i32_1 = arith.constant 0 : i32
    return %c0_i32, %c0_i32_0 : i32, i32
  }
  func.func @transform_4(%arg0: i32) -> (i32, i32, i32) {
    %c0_i32 = arith.constant 0 : i32
    %c0_i32_0 = arith.constant 0 : i32
    %c0_i32_1 = arith.constant 0 : i32
    return %arg0, %c0_i32, %c0_i32_0 : i32, i32, i32
  }
  func.func @transform_5(%arg0: i32) -> (i32, i32, i32) {
    %c0_i32 = arith.constant 0 : i32
    %c0_i32_0 = arith.constant 0 : i32
    %c0_i32_1 = arith.constant 0 : i32
    return %arg0, %c0_i32, %c0_i32_0 : i32, i32, i32
  }
}

module attributes {stable_mosaic.version = 11 : i64} {
  func.func @_stage_kernel(%arg0: i32, %arg1: memref<1x16x120xbf16, #tpu.memory_space<vmem>>, %arg2: memref<96x16xbf16, #tpu.memory_space<vmem>>, %arg3: memref<8x5xf32, #tpu.memory_space<vmem>>, %arg4: memref<1x120xf32, #tpu.memory_space<vmem>>, %arg5: memref<1x8x128xf32, #tpu.memory_space<vmem>>, %arg6: memref<1x8x120xf32, #tpu.memory_space<vmem>>) attributes {dimension_semantics = [#tpu.dimension_semantics<parallel>], iteration_bounds = array<i64: 2>, scalar_prefetch = 0 : i64, scratch_operands = 0 : i64, tpu.core_type = #tpu.core_type<tc>, window_params = [{transform_indices = @transform_0, window_bounds = array<i64: 1, 16, 120>}, {pipeline_mode = #tpu.pipeline_mode<synchronous>, transform_indices = @transform_1, window_bounds = array<i64: 96, 16>}, {pipeline_mode = #tpu.pipeline_mode<synchronous>, transform_indices = @transform_2, window_bounds = array<i64: 8, 5>}, {pipeline_mode = #tpu.pipeline_mode<synchronous>, transform_indices = @transform_3, window_bounds = array<i64: 1, 120>}, {transform_indices = @transform_4, window_bounds = array<i64: 1, 8, 128>}, {transform_indices = @transform_5, window_bounds = array<i64: 1, 8, 120>}]} {
    %c0 = arith.constant 0 : index
    %c0_0 = arith.constant 0 : index
    %0 = vector.load %arg2[%c0, %c0_0] : memref<96x16xbf16, #tpu.memory_space<vmem>>, vector<96x16xbf16>
    %c0_1 = arith.constant 0 : index
    %c0_2 = arith.constant 0 : index
    %c0_3 = arith.constant 0 : index
    %1 = vector.load %arg1[%c0_1, %c0_2, %c0_3] : memref<1x16x120xbf16, #tpu.memory_space<vmem>>, vector<1x16x120xbf16>
    %2 = vector.shape_cast %1 : vector<1x16x120xbf16> to vector<16x120xbf16>
    %cst = arith.constant dense<0.000000e+00> : vector<96x120xf32>
    %3 = tpu.matmul %0, %2, %cst {dimension_numbers = #tpu.dot_dimension_numbers<[1], [0], [0], [1], [0, 0, 1, 1], [], []>} : vector<96x16xbf16>, vector<16x120xbf16>, vector<96x120xf32> -> vector<96x120xf32>
    %4 = vector.extract_strided_slice %3 {offsets = [0, 0], sizes = [16, 120], strides = [1, 1]} : vector<96x120xf32> to vector<16x120xf32>
    %cst_4 = arith.constant 0.000000e+00 : f32
    %5 = vector.broadcast %cst_4 : f32 to vector<16x8xf32>
    %6 = tpu.concatenate %4, %5 in 1 : vector<16x120xf32>, vector<16x8xf32> -> vector<16x128xf32>
    %7 = vector.extract_strided_slice %3 {offsets = [16, 0], sizes = [16, 120], strides = [1, 1]} : vector<96x120xf32> to vector<16x120xf32>
    %8 = vector.extract_strided_slice %3 {offsets = [32, 0], sizes = [16, 120], strides = [1, 1]} : vector<96x120xf32> to vector<16x120xf32>
    %cst_5 = arith.constant 0.000000e+00 : f32
    %9 = vector.broadcast %cst_5 : f32 to vector<16x8xf32>
    %10 = tpu.concatenate %9, %8 in 1 : vector<16x8xf32>, vector<16x120xf32> -> vector<16x128xf32>
    %11 = arith.addf %6, %10 : vector<16x128xf32>
    %12 = vector.extract_strided_slice %3 {offsets = [48, 0], sizes = [16, 120], strides = [1, 1]} : vector<96x120xf32> to vector<16x120xf32>
    %c0_6 = arith.constant 0 : index
    %c0_7 = arith.constant 0 : index
    %13 = vector.load %arg4[%c0_6, %c0_7] : memref<1x120xf32, #tpu.memory_space<vmem>>, vector<1x120xf32>
    %14 = vector.broadcast %13 : vector<1x120xf32> to vector<16x120xf32>
    %15 = arith.mulf %12, %14 : vector<16x120xf32>
    %cst_8 = arith.constant 0.000000e+00 : f32
    %16 = vector.broadcast %cst_8 : f32 to vector<16x1xf32>
    %cst_9 = arith.constant 0.000000e+00 : f32
    %17 = vector.broadcast %cst_9 : f32 to vector<16x7xf32>
    %18 = tpu.concatenate %16, %15, %17 in 1 : vector<16x1xf32>, vector<16x120xf32>, vector<16x7xf32> -> vector<16x128xf32>
    %19 = arith.addf %11, %18 : vector<16x128xf32>
    %20 = vector.extract_strided_slice %3 {offsets = [64, 0], sizes = [16, 120], strides = [1, 1]} : vector<96x120xf32> to vector<16x120xf32>
    %c0_10 = arith.constant 0 : index
    %c0_11 = arith.constant 0 : index
    %21 = vector.load %arg4[%c0_10, %c0_11] : memref<1x120xf32, #tpu.memory_space<vmem>>, vector<1x120xf32>
    %22 = vector.broadcast %21 : vector<1x120xf32> to vector<16x120xf32>
    %23 = arith.mulf %20, %22 : vector<16x120xf32>
    %24 = vector.extract_strided_slice %23 {offsets = [0, 0], sizes = [16, 119], strides = [1, 1]} : vector<16x120xf32> to vector<16x119xf32>
    %cst_12 = arith.constant 0.000000e+00 : f32
    %25 = vector.broadcast %cst_12 : f32 to vector<16x1xf32>
    %26 = tpu.concatenate %25, %24 in 1 : vector<16x1xf32>, vector<16x119xf32> -> vector<16x120xf32>
    %27 = arith.addf %7, %26 : vector<16x120xf32>
    %28 = vector.extract_strided_slice %3 {offsets = [80, 0], sizes = [16, 120], strides = [1, 1]} : vector<96x120xf32> to vector<16x120xf32>
    %c0_13 = arith.constant 0 : index
    %c0_14 = arith.constant 0 : index
    %29 = vector.load %arg4[%c0_13, %c0_14] : memref<1x120xf32, #tpu.memory_space<vmem>>, vector<1x120xf32>
    %30 = vector.broadcast %29 : vector<1x120xf32> to vector<16x120xf32>
    %31 = arith.mulf %28, %30 : vector<16x120xf32>
    %32 = vector.extract_strided_slice %31 {offsets = [0, 0], sizes = [16, 119], strides = [1, 1]} : vector<16x120xf32> to vector<16x119xf32>
    %cst_15 = arith.constant 0.000000e+00 : f32
    %33 = vector.broadcast %cst_15 : f32 to vector<16x9xf32>
    %34 = tpu.concatenate %33, %32 in 1 : vector<16x9xf32>, vector<16x119xf32> -> vector<16x128xf32>
    %35 = arith.addf %19, %34 : vector<16x128xf32>
    %c0_16 = arith.constant 0 : index
    %c0_17 = arith.constant 0 : index
    %36 = vector.load %arg3[%c0_16, %c0_17] : memref<8x5xf32, #tpu.memory_space<vmem>>, vector<8x5xf32>
    %37 = vector.extract_strided_slice %36 {offsets = [0, 0], sizes = [8, 1], strides = [1, 1]} : vector<8x5xf32> to vector<8x1xf32>
    %38 = vector.extract_strided_slice %36 {offsets = [0, 1], sizes = [8, 1], strides = [1, 1]} : vector<8x5xf32> to vector<8x1xf32>
    %39 = vector.extract_strided_slice %36 {offsets = [0, 2], sizes = [8, 1], strides = [1, 1]} : vector<8x5xf32> to vector<8x1xf32>
    %40 = vector.extract_strided_slice %36 {offsets = [0, 3], sizes = [8, 1], strides = [1, 1]} : vector<8x5xf32> to vector<8x1xf32>
    %41 = vector.extract_strided_slice %36 {offsets = [0, 4], sizes = [8, 1], strides = [1, 1]} : vector<8x5xf32> to vector<8x1xf32>
    %42 = vector.extract_strided_slice %35 {offsets = [0, 0], sizes = [8, 128], strides = [1, 1]} : vector<16x128xf32> to vector<8x128xf32>
    %43 = vector.broadcast %37 : vector<8x1xf32> to vector<8x128xf32>
    %44 = arith.addf %42, %43 : vector<8x128xf32>
    %45 = vector.extract_strided_slice %35 {offsets = [8, 0], sizes = [8, 128], strides = [1, 1]} : vector<16x128xf32> to vector<8x128xf32>
    %46 = vector.broadcast %38 : vector<8x1xf32> to vector<8x128xf32>
    %47 = arith.addf %45, %46 : vector<8x128xf32>
    %48 = arith.negf %47 : vector<8x128xf32>
    %49 = math.exp %48 : vector<8x128xf32>
    %cst_18 = arith.constant 1.000000e+00 : f32
    %50 = vector.broadcast %cst_18 : f32 to vector<8x128xf32>
    %51 = arith.addf %50, %49 : vector<8x128xf32>
    %52 = arith.divf %50, %51 : vector<8x128xf32>
    %53 = arith.mulf %44, %52 : vector<8x128xf32>
    %54 = vector.extract_strided_slice %27 {offsets = [0, 0], sizes = [8, 120], strides = [1, 1]} : vector<16x120xf32> to vector<8x120xf32>
    %55 = vector.broadcast %37 : vector<8x1xf32> to vector<8x120xf32>
    %56 = arith.addf %54, %55 : vector<8x120xf32>
    %57 = vector.extract_strided_slice %27 {offsets = [8, 0], sizes = [8, 120], strides = [1, 1]} : vector<16x120xf32> to vector<8x120xf32>
    %58 = vector.broadcast %38 : vector<8x1xf32> to vector<8x120xf32>
    %59 = arith.addf %57, %58 : vector<8x120xf32>
    %60 = arith.negf %59 : vector<8x120xf32>
    %61 = math.exp %60 : vector<8x120xf32>
    %cst_19 = arith.constant 1.000000e+00 : f32
    %62 = vector.broadcast %cst_19 : f32 to vector<8x120xf32>
    %63 = arith.addf %62, %61 : vector<8x120xf32>
    %64 = arith.divf %62, %63 : vector<8x120xf32>
    %65 = arith.mulf %56, %64 : vector<8x120xf32>
    %cst_20 = arith.constant dense<0.000000e+00> : vector<8xf32>
    %66 = vector.multi_reduction <add>, %53, %cst_20 [1] : vector<8x128xf32> to vector<8xf32>
    %67 = vector.shape_cast %66 : vector<8xf32> to vector<8x1xf32>
    %cst_21 = arith.constant dense<0.000000e+00> : vector<8xf32>
    %68 = vector.multi_reduction <add>, %65, %cst_21 [1] : vector<8x120xf32> to vector<8xf32>
    %69 = vector.shape_cast %68 : vector<8xf32> to vector<8x1xf32>
    %70 = arith.addf %67, %69 : vector<8x1xf32>
    %71 = arith.mulf %53, %53 : vector<8x128xf32>
    %cst_22 = arith.constant dense<0.000000e+00> : vector<8xf32>
    %72 = vector.multi_reduction <add>, %71, %cst_22 [1] : vector<8x128xf32> to vector<8xf32>
    %73 = vector.shape_cast %72 : vector<8xf32> to vector<8x1xf32>
    %74 = arith.mulf %65, %65 : vector<8x120xf32>
    %cst_23 = arith.constant dense<0.000000e+00> : vector<8xf32>
    %75 = vector.multi_reduction <add>, %74, %cst_23 [1] : vector<8x120xf32> to vector<8xf32>
    %76 = vector.shape_cast %75 : vector<8xf32> to vector<8x1xf32>
    %77 = arith.addf %73, %76 : vector<8x1xf32>
    %cst_24 = arith.constant 0.00403225794 : f32
    %78 = vector.broadcast %cst_24 : f32 to vector<8x1xf32>
    %79 = arith.mulf %70, %78 : vector<8x1xf32>
    %cst_25 = arith.constant 0.00403225794 : f32
    %80 = vector.broadcast %cst_25 : f32 to vector<8x1xf32>
    %81 = arith.mulf %77, %80 : vector<8x1xf32>
    %82 = arith.mulf %79, %79 : vector<8x1xf32>
    %83 = arith.subf %81, %82 : vector<8x1xf32>
    %cst_26 = arith.constant 0.000000e+00 : f32
    %84 = vector.broadcast %cst_26 : f32 to vector<8x1xf32>
    %85 = arith.maximumf %83, %84 : vector<8x1xf32>
    %cst_27 = arith.constant 9.99999974E-6 : f32
    %86 = vector.broadcast %cst_27 : f32 to vector<8x1xf32>
    %87 = arith.addf %85, %86 : vector<8x1xf32>
    %88 = math.rsqrt %87 : vector<8x1xf32>
    %89 = arith.mulf %88, %39 : vector<8x1xf32>
    %90 = arith.mulf %79, %89 : vector<8x1xf32>
    %91 = arith.subf %40, %90 : vector<8x1xf32>
    %92 = vector.broadcast %89 : vector<8x1xf32> to vector<8x128xf32>
    %93 = arith.mulf %53, %92 : vector<8x128xf32>
    %94 = vector.broadcast %91 : vector<8x1xf32> to vector<8x128xf32>
    %95 = arith.addf %93, %94 : vector<8x128xf32>
    %96 = vector.broadcast %89 : vector<8x1xf32> to vector<8x120xf32>
    %97 = arith.mulf %65, %96 : vector<8x120xf32>
    %98 = vector.broadcast %91 : vector<8x1xf32> to vector<8x120xf32>
    %99 = arith.addf %97, %98 : vector<8x120xf32>
    %cst_28 = arith.constant 0.000000e+00 : f32
    %100 = vector.broadcast %cst_28 : f32 to vector<8x128xf32>
    %101 = arith.cmpf oge, %95, %100 : vector<8x128xf32>
    %102 = vector.broadcast %41 : vector<8x1xf32> to vector<8x128xf32>
    %103 = arith.mulf %102, %95 : vector<8x128xf32>
    %104 = arith.select %101, %95, %103 : vector<8x128xi1>, vector<8x128xf32>
    %cst_29 = arith.constant 0.000000e+00 : f32
    %105 = vector.broadcast %cst_29 : f32 to vector<8x120xf32>
    %106 = arith.cmpf oge, %99, %105 : vector<8x120xf32>
    %107 = vector.broadcast %41 : vector<8x1xf32> to vector<8x120xf32>
    %108 = arith.mulf %107, %99 : vector<8x120xf32>
    %109 = arith.select %106, %99, %108 : vector<8x120xi1>, vector<8x120xf32>
    %c0_30 = arith.constant 0 : index
    %c0_31 = arith.constant 0 : index
    %c0_32 = arith.constant 0 : index
    %110 = vector.load %arg5[%c0_30, %c0_31, %c0_32] : memref<1x8x128xf32, #tpu.memory_space<vmem>>, vector<1x8x128xf32>
    %111 = vector.shape_cast %110 : vector<1x8x128xf32> to vector<8x128xf32>
    %112 = vector.shape_cast %104 : vector<8x128xf32> to vector<1x8x128xf32>
    tpu.vector_store %arg5[%c0_30, %c0_31, %c0_32], %112 {strides = array<i32>} : memref<1x8x128xf32, #tpu.memory_space<vmem>>, vector<1x8x128xf32>,
    %c0_33 = arith.constant 0 : index
    %c0_34 = arith.constant 0 : index
    %c0_35 = arith.constant 0 : index
    %113 = vector.load %arg6[%c0_33, %c0_34, %c0_35] : memref<1x8x120xf32, #tpu.memory_space<vmem>>, vector<1x8x120xf32>
    %114 = vector.shape_cast %113 : vector<1x8x120xf32> to vector<8x120xf32>
    %115 = vector.shape_cast %109 : vector<8x120xf32> to vector<1x8x120xf32>
    tpu.vector_store %arg6[%c0_33, %c0_34, %c0_35], %115 {strides = array<i32>} : memref<1x8x120xf32, #tpu.memory_space<vmem>>, vector<1x8x120xf32>,
    return
  }
  func.func @transform_0(%arg0: i32) -> (i32, i32, i32) {
    %c0_i32 = arith.constant 0 : i32
    %c0_i32_0 = arith.constant 0 : i32
    %c0_i32_1 = arith.constant 0 : i32
    return %arg0, %c0_i32, %c0_i32_0 : i32, i32, i32
  }
  func.func @transform_1(%arg0: i32) -> (i32, i32) {
    %c0_i32 = arith.constant 0 : i32
    %c0_i32_0 = arith.constant 0 : i32
    %c0_i32_1 = arith.constant 0 : i32
    return %c0_i32, %c0_i32_0 : i32, i32
  }
  func.func @transform_2(%arg0: i32) -> (i32, i32) {
    %c0_i32 = arith.constant 0 : i32
    %c0_i32_0 = arith.constant 0 : i32
    %c0_i32_1 = arith.constant 0 : i32
    return %c0_i32, %c0_i32_0 : i32, i32
  }
  func.func @transform_3(%arg0: i32) -> (i32, i32) {
    %c0_i32 = arith.constant 0 : i32
    %c0_i32_0 = arith.constant 0 : i32
    %c0_i32_1 = arith.constant 0 : i32
    return %c0_i32, %c0_i32_0 : i32, i32
  }
  func.func @transform_4(%arg0: i32) -> (i32, i32, i32) {
    %c0_i32 = arith.constant 0 : i32
    %c0_i32_0 = arith.constant 0 : i32
    %c0_i32_1 = arith.constant 0 : i32
    return %arg0, %c0_i32, %c0_i32_0 : i32, i32, i32
  }
  func.func @transform_5(%arg0: i32) -> (i32, i32, i32) {
    %c0_i32 = arith.constant 0 : i32
    %c0_i32_0 = arith.constant 0 : i32
    %c0_i32_1 = arith.constant 0 : i32
    return %arg0, %c0_i32, %c0_i32_0 : i32, i32, i32
  }
}

module attributes {stable_mosaic.version = 11 : i64} {
  func.func @_stage_kernel(%arg0: i32, %arg1: memref<1x16x248xbf16, #tpu.memory_space<vmem>>, %arg2: memref<96x16xbf16, #tpu.memory_space<vmem>>, %arg3: memref<8x5xf32, #tpu.memory_space<vmem>>, %arg4: memref<1x248xf32, #tpu.memory_space<vmem>>, %arg5: memref<1x8x256xf32, #tpu.memory_space<vmem>>, %arg6: memref<1x8x248xf32, #tpu.memory_space<vmem>>) attributes {dimension_semantics = [#tpu.dimension_semantics<parallel>], iteration_bounds = array<i64: 2>, scalar_prefetch = 0 : i64, scratch_operands = 0 : i64, tpu.core_type = #tpu.core_type<tc>, window_params = [{transform_indices = @transform_0, window_bounds = array<i64: 1, 16, 248>}, {pipeline_mode = #tpu.pipeline_mode<synchronous>, transform_indices = @transform_1, window_bounds = array<i64: 96, 16>}, {pipeline_mode = #tpu.pipeline_mode<synchronous>, transform_indices = @transform_2, window_bounds = array<i64: 8, 5>}, {pipeline_mode = #tpu.pipeline_mode<synchronous>, transform_indices = @transform_3, window_bounds = array<i64: 1, 248>}, {transform_indices = @transform_4, window_bounds = array<i64: 1, 8, 256>}, {transform_indices = @transform_5, window_bounds = array<i64: 1, 8, 248>}]} {
    %c0 = arith.constant 0 : index
    %c0_0 = arith.constant 0 : index
    %0 = vector.load %arg2[%c0, %c0_0] : memref<96x16xbf16, #tpu.memory_space<vmem>>, vector<96x16xbf16>
    %c0_1 = arith.constant 0 : index
    %c0_2 = arith.constant 0 : index
    %c0_3 = arith.constant 0 : index
    %1 = vector.load %arg1[%c0_1, %c0_2, %c0_3] : memref<1x16x248xbf16, #tpu.memory_space<vmem>>, vector<1x16x248xbf16>
    %2 = vector.shape_cast %1 : vector<1x16x248xbf16> to vector<16x248xbf16>
    %cst = arith.constant dense<0.000000e+00> : vector<96x248xf32>
    %3 = tpu.matmul %0, %2, %cst {dimension_numbers = #tpu.dot_dimension_numbers<[1], [0], [0], [1], [0, 0, 1, 1], [], []>} : vector<96x16xbf16>, vector<16x248xbf16>, vector<96x248xf32> -> vector<96x248xf32>
    %4 = vector.extract_strided_slice %3 {offsets = [0, 0], sizes = [16, 248], strides = [1, 1]} : vector<96x248xf32> to vector<16x248xf32>
    %cst_4 = arith.constant 0.000000e+00 : f32
    %5 = vector.broadcast %cst_4 : f32 to vector<16x8xf32>
    %6 = tpu.concatenate %4, %5 in 1 : vector<16x248xf32>, vector<16x8xf32> -> vector<16x256xf32>
    %7 = vector.extract_strided_slice %3 {offsets = [16, 0], sizes = [16, 248], strides = [1, 1]} : vector<96x248xf32> to vector<16x248xf32>
    %8 = vector.extract_strided_slice %3 {offsets = [32, 0], sizes = [16, 248], strides = [1, 1]} : vector<96x248xf32> to vector<16x248xf32>
    %cst_5 = arith.constant 0.000000e+00 : f32
    %9 = vector.broadcast %cst_5 : f32 to vector<16x8xf32>
    %10 = tpu.concatenate %9, %8 in 1 : vector<16x8xf32>, vector<16x248xf32> -> vector<16x256xf32>
    %11 = arith.addf %6, %10 : vector<16x256xf32>
    %12 = vector.extract_strided_slice %3 {offsets = [48, 0], sizes = [16, 248], strides = [1, 1]} : vector<96x248xf32> to vector<16x248xf32>
    %c0_6 = arith.constant 0 : index
    %c0_7 = arith.constant 0 : index
    %13 = vector.load %arg4[%c0_6, %c0_7] : memref<1x248xf32, #tpu.memory_space<vmem>>, vector<1x248xf32>
    %14 = vector.broadcast %13 : vector<1x248xf32> to vector<16x248xf32>
    %15 = arith.mulf %12, %14 : vector<16x248xf32>
    %cst_8 = arith.constant 0.000000e+00 : f32
    %16 = vector.broadcast %cst_8 : f32 to vector<16x1xf32>
    %cst_9 = arith.constant 0.000000e+00 : f32
    %17 = vector.broadcast %cst_9 : f32 to vector<16x7xf32>
    %18 = tpu.concatenate %16, %15, %17 in 1 : vector<16x1xf32>, vector<16x248xf32>, vector<16x7xf32> -> vector<16x256xf32>
    %19 = arith.addf %11, %18 : vector<16x256xf32>
    %20 = vector.extract_strided_slice %3 {offsets = [64, 0], sizes = [16, 248], strides = [1, 1]} : vector<96x248xf32> to vector<16x248xf32>
    %c0_10 = arith.constant 0 : index
    %c0_11 = arith.constant 0 : index
    %21 = vector.load %arg4[%c0_10, %c0_11] : memref<1x248xf32, #tpu.memory_space<vmem>>, vector<1x248xf32>
    %22 = vector.broadcast %21 : vector<1x248xf32> to vector<16x248xf32>
    %23 = arith.mulf %20, %22 : vector<16x248xf32>
    %24 = vector.extract_strided_slice %23 {offsets = [0, 0], sizes = [16, 247], strides = [1, 1]} : vector<16x248xf32> to vector<16x247xf32>
    %cst_12 = arith.constant 0.000000e+00 : f32
    %25 = vector.broadcast %cst_12 : f32 to vector<16x1xf32>
    %26 = tpu.concatenate %25, %24 in 1 : vector<16x1xf32>, vector<16x247xf32> -> vector<16x248xf32>
    %27 = arith.addf %7, %26 : vector<16x248xf32>
    %28 = vector.extract_strided_slice %3 {offsets = [80, 0], sizes = [16, 248], strides = [1, 1]} : vector<96x248xf32> to vector<16x248xf32>
    %c0_13 = arith.constant 0 : index
    %c0_14 = arith.constant 0 : index
    %29 = vector.load %arg4[%c0_13, %c0_14] : memref<1x248xf32, #tpu.memory_space<vmem>>, vector<1x248xf32>
    %30 = vector.broadcast %29 : vector<1x248xf32> to vector<16x248xf32>
    %31 = arith.mulf %28, %30 : vector<16x248xf32>
    %32 = vector.extract_strided_slice %31 {offsets = [0, 0], sizes = [16, 247], strides = [1, 1]} : vector<16x248xf32> to vector<16x247xf32>
    %cst_15 = arith.constant 0.000000e+00 : f32
    %33 = vector.broadcast %cst_15 : f32 to vector<16x9xf32>
    %34 = tpu.concatenate %33, %32 in 1 : vector<16x9xf32>, vector<16x247xf32> -> vector<16x256xf32>
    %35 = arith.addf %19, %34 : vector<16x256xf32>
    %c0_16 = arith.constant 0 : index
    %c0_17 = arith.constant 0 : index
    %36 = vector.load %arg3[%c0_16, %c0_17] : memref<8x5xf32, #tpu.memory_space<vmem>>, vector<8x5xf32>
    %37 = vector.extract_strided_slice %36 {offsets = [0, 0], sizes = [8, 1], strides = [1, 1]} : vector<8x5xf32> to vector<8x1xf32>
    %38 = vector.extract_strided_slice %36 {offsets = [0, 1], sizes = [8, 1], strides = [1, 1]} : vector<8x5xf32> to vector<8x1xf32>
    %39 = vector.extract_strided_slice %36 {offsets = [0, 2], sizes = [8, 1], strides = [1, 1]} : vector<8x5xf32> to vector<8x1xf32>
    %40 = vector.extract_strided_slice %36 {offsets = [0, 3], sizes = [8, 1], strides = [1, 1]} : vector<8x5xf32> to vector<8x1xf32>
    %41 = vector.extract_strided_slice %36 {offsets = [0, 4], sizes = [8, 1], strides = [1, 1]} : vector<8x5xf32> to vector<8x1xf32>
    %42 = vector.extract_strided_slice %35 {offsets = [0, 0], sizes = [8, 256], strides = [1, 1]} : vector<16x256xf32> to vector<8x256xf32>
    %43 = vector.broadcast %37 : vector<8x1xf32> to vector<8x256xf32>
    %44 = arith.addf %42, %43 : vector<8x256xf32>
    %45 = vector.extract_strided_slice %35 {offsets = [8, 0], sizes = [8, 256], strides = [1, 1]} : vector<16x256xf32> to vector<8x256xf32>
    %46 = vector.broadcast %38 : vector<8x1xf32> to vector<8x256xf32>
    %47 = arith.addf %45, %46 : vector<8x256xf32>
    %48 = arith.negf %47 : vector<8x256xf32>
    %49 = math.exp %48 : vector<8x256xf32>
    %cst_18 = arith.constant 1.000000e+00 : f32
    %50 = vector.broadcast %cst_18 : f32 to vector<8x256xf32>
    %51 = arith.addf %50, %49 : vector<8x256xf32>
    %52 = arith.divf %50, %51 : vector<8x256xf32>
    %53 = arith.mulf %44, %52 : vector<8x256xf32>
    %54 = vector.extract_strided_slice %27 {offsets = [0, 0], sizes = [8, 248], strides = [1, 1]} : vector<16x248xf32> to vector<8x248xf32>
    %55 = vector.broadcast %37 : vector<8x1xf32> to vector<8x248xf32>
    %56 = arith.addf %54, %55 : vector<8x248xf32>
    %57 = vector.extract_strided_slice %27 {offsets = [8, 0], sizes = [8, 248], strides = [1, 1]} : vector<16x248xf32> to vector<8x248xf32>
    %58 = vector.broadcast %38 : vector<8x1xf32> to vector<8x248xf32>
    %59 = arith.addf %57, %58 : vector<8x248xf32>
    %60 = arith.negf %59 : vector<8x248xf32>
    %61 = math.exp %60 : vector<8x248xf32>
    %cst_19 = arith.constant 1.000000e+00 : f32
    %62 = vector.broadcast %cst_19 : f32 to vector<8x248xf32>
    %63 = arith.addf %62, %61 : vector<8x248xf32>
    %64 = arith.divf %62, %63 : vector<8x248xf32>
    %65 = arith.mulf %56, %64 : vector<8x248xf32>
    %cst_20 = arith.constant dense<0.000000e+00> : vector<8xf32>
    %66 = vector.multi_reduction <add>, %53, %cst_20 [1] : vector<8x256xf32> to vector<8xf32>
    %67 = vector.shape_cast %66 : vector<8xf32> to vector<8x1xf32>
    %cst_21 = arith.constant dense<0.000000e+00> : vector<8xf32>
    %68 = vector.multi_reduction <add>, %65, %cst_21 [1] : vector<8x248xf32> to vector<8xf32>
    %69 = vector.shape_cast %68 : vector<8xf32> to vector<8x1xf32>
    %70 = arith.addf %67, %69 : vector<8x1xf32>
    %71 = arith.mulf %53, %53 : vector<8x256xf32>
    %cst_22 = arith.constant dense<0.000000e+00> : vector<8xf32>
    %72 = vector.multi_reduction <add>, %71, %cst_22 [1] : vector<8x256xf32> to vector<8xf32>
    %73 = vector.shape_cast %72 : vector<8xf32> to vector<8x1xf32>
    %74 = arith.mulf %65, %65 : vector<8x248xf32>
    %cst_23 = arith.constant dense<0.000000e+00> : vector<8xf32>
    %75 = vector.multi_reduction <add>, %74, %cst_23 [1] : vector<8x248xf32> to vector<8xf32>
    %76 = vector.shape_cast %75 : vector<8xf32> to vector<8x1xf32>
    %77 = arith.addf %73, %76 : vector<8x1xf32>
    %cst_24 = arith.constant 0.0019841271 : f32
    %78 = vector.broadcast %cst_24 : f32 to vector<8x1xf32>
    %79 = arith.mulf %70, %78 : vector<8x1xf32>
    %cst_25 = arith.constant 0.0019841271 : f32
    %80 = vector.broadcast %cst_25 : f32 to vector<8x1xf32>
    %81 = arith.mulf %77, %80 : vector<8x1xf32>
    %82 = arith.mulf %79, %79 : vector<8x1xf32>
    %83 = arith.subf %81, %82 : vector<8x1xf32>
    %cst_26 = arith.constant 0.000000e+00 : f32
    %84 = vector.broadcast %cst_26 : f32 to vector<8x1xf32>
    %85 = arith.maximumf %83, %84 : vector<8x1xf32>
    %cst_27 = arith.constant 9.99999974E-6 : f32
    %86 = vector.broadcast %cst_27 : f32 to vector<8x1xf32>
    %87 = arith.addf %85, %86 : vector<8x1xf32>
    %88 = math.rsqrt %87 : vector<8x1xf32>
    %89 = arith.mulf %88, %39 : vector<8x1xf32>
    %90 = arith.mulf %79, %89 : vector<8x1xf32>
    %91 = arith.subf %40, %90 : vector<8x1xf32>
    %92 = vector.broadcast %89 : vector<8x1xf32> to vector<8x256xf32>
    %93 = arith.mulf %53, %92 : vector<8x256xf32>
    %94 = vector.broadcast %91 : vector<8x1xf32> to vector<8x256xf32>
    %95 = arith.addf %93, %94 : vector<8x256xf32>
    %96 = vector.broadcast %89 : vector<8x1xf32> to vector<8x248xf32>
    %97 = arith.mulf %65, %96 : vector<8x248xf32>
    %98 = vector.broadcast %91 : vector<8x1xf32> to vector<8x248xf32>
    %99 = arith.addf %97, %98 : vector<8x248xf32>
    %cst_28 = arith.constant 0.000000e+00 : f32
    %100 = vector.broadcast %cst_28 : f32 to vector<8x256xf32>
    %101 = arith.cmpf oge, %95, %100 : vector<8x256xf32>
    %102 = vector.broadcast %41 : vector<8x1xf32> to vector<8x256xf32>
    %103 = arith.mulf %102, %95 : vector<8x256xf32>
    %104 = arith.select %101, %95, %103 : vector<8x256xi1>, vector<8x256xf32>
    %cst_29 = arith.constant 0.000000e+00 : f32
    %105 = vector.broadcast %cst_29 : f32 to vector<8x248xf32>
    %106 = arith.cmpf oge, %99, %105 : vector<8x248xf32>
    %107 = vector.broadcast %41 : vector<8x1xf32> to vector<8x248xf32>
    %108 = arith.mulf %107, %99 : vector<8x248xf32>
    %109 = arith.select %106, %99, %108 : vector<8x248xi1>, vector<8x248xf32>
    %c0_30 = arith.constant 0 : index
    %c0_31 = arith.constant 0 : index
    %c0_32 = arith.constant 0 : index
    %110 = vector.load %arg5[%c0_30, %c0_31, %c0_32] : memref<1x8x256xf32, #tpu.memory_space<vmem>>, vector<1x8x256xf32>
    %111 = vector.shape_cast %110 : vector<1x8x256xf32> to vector<8x256xf32>
    %112 = vector.shape_cast %104 : vector<8x256xf32> to vector<1x8x256xf32>
    tpu.vector_store %arg5[%c0_30, %c0_31, %c0_32], %112 {strides = array<i32>} : memref<1x8x256xf32, #tpu.memory_space<vmem>>, vector<1x8x256xf32>,
    %c0_33 = arith.constant 0 : index
    %c0_34 = arith.constant 0 : index
    %c0_35 = arith.constant 0 : index
    %113 = vector.load %arg6[%c0_33, %c0_34, %c0_35] : memref<1x8x248xf32, #tpu.memory_space<vmem>>, vector<1x8x248xf32>
    %114 = vector.shape_cast %113 : vector<1x8x248xf32> to vector<8x248xf32>
    %115 = vector.shape_cast %109 : vector<8x248xf32> to vector<1x8x248xf32>
    tpu.vector_store %arg6[%c0_33, %c0_34, %c0_35], %115 {strides = array<i32>} : memref<1x8x248xf32, #tpu.memory_space<vmem>>, vector<1x8x248xf32>,
    return
  }
  func.func @transform_0(%arg0: i32) -> (i32, i32, i32) {
    %c0_i32 = arith.constant 0 : i32
    %c0_i32_0 = arith.constant 0 : i32
    %c0_i32_1 = arith.constant 0 : i32
    return %arg0, %c0_i32, %c0_i32_0 : i32, i32, i32
  }
  func.func @transform_1(%arg0: i32) -> (i32, i32) {
    %c0_i32 = arith.constant 0 : i32
    %c0_i32_0 = arith.constant 0 : i32
    %c0_i32_1 = arith.constant 0 : i32
    return %c0_i32, %c0_i32_0 : i32, i32
  }
  func.func @transform_2(%arg0: i32) -> (i32, i32) {
    %c0_i32 = arith.constant 0 : i32
    %c0_i32_0 = arith.constant 0 : i32
    %c0_i32_1 = arith.constant 0 : i32
    return %c0_i32, %c0_i32_0 : i32, i32
  }
  func.func @transform_3(%arg0: i32) -> (i32, i32) {
    %c0_i32 = arith.constant 0 : i32
    %c0_i32_0 = arith.constant 0 : i32
    %c0_i32_1 = arith.constant 0 : i32
    return %c0_i32, %c0_i32_0 : i32, i32
  }
  func.func @transform_4(%arg0: i32) -> (i32, i32, i32) {
    %c0_i32 = arith.constant 0 : i32
    %c0_i32_0 = arith.constant 0 : i32
    %c0_i32_1 = arith.constant 0 : i32
    return %arg0, %c0_i32, %c0_i32_0 : i32, i32, i32
  }
  func.func @transform_5(%arg0: i32) -> (i32, i32, i32) {
    %c0_i32 = arith.constant 0 : i32
    %c0_i32_0 = arith.constant 0 : i32
    %c0_i32_1 = arith.constant 0 : i32
    return %arg0, %c0_i32, %c0_i32_0 : i32, i32, i32
  }
}

module attributes {stable_mosaic.version = 11 : i64} {
  func.func @_stage_kernel(%arg0: i32, %arg1: memref<1x16x504xbf16, #tpu.memory_space<vmem>>, %arg2: memref<160x16xbf16, #tpu.memory_space<vmem>>, %arg3: memref<8x5xf32, #tpu.memory_space<vmem>>, %arg4: memref<1x504xf32, #tpu.memory_space<vmem>>, %arg5: memref<1x8x520xf32, #tpu.memory_space<vmem>>, %arg6: memref<1x8x512xf32, #tpu.memory_space<vmem>>) attributes {dimension_semantics = [#tpu.dimension_semantics<parallel>], iteration_bounds = array<i64: 2>, scalar_prefetch = 0 : i64, scratch_operands = 0 : i64, tpu.core_type = #tpu.core_type<tc>, window_params = [{transform_indices = @transform_0, window_bounds = array<i64: 1, 16, 504>}, {pipeline_mode = #tpu.pipeline_mode<synchronous>, transform_indices = @transform_1, window_bounds = array<i64: 160, 16>}, {pipeline_mode = #tpu.pipeline_mode<synchronous>, transform_indices = @transform_2, window_bounds = array<i64: 8, 5>}, {pipeline_mode = #tpu.pipeline_mode<synchronous>, transform_indices = @transform_3, window_bounds = array<i64: 1, 504>}, {transform_indices = @transform_4, window_bounds = array<i64: 1, 8, 520>}, {transform_indices = @transform_5, window_bounds = array<i64: 1, 8, 512>}]} {
    %c0 = arith.constant 0 : index
    %c0_0 = arith.constant 0 : index
    %0 = vector.load %arg2[%c0, %c0_0] : memref<160x16xbf16, #tpu.memory_space<vmem>>, vector<160x16xbf16>
    %c0_1 = arith.constant 0 : index
    %c0_2 = arith.constant 0 : index
    %c0_3 = arith.constant 0 : index
    %1 = vector.load %arg1[%c0_1, %c0_2, %c0_3] : memref<1x16x504xbf16, #tpu.memory_space<vmem>>, vector<1x16x504xbf16>
    %2 = vector.shape_cast %1 : vector<1x16x504xbf16> to vector<16x504xbf16>
    %cst = arith.constant dense<0.000000e+00> : vector<160x504xf32>
    %3 = tpu.matmul %0, %2, %cst {dimension_numbers = #tpu.dot_dimension_numbers<[1], [0], [0], [1], [0, 0, 1, 1], [], []>} : vector<160x16xbf16>, vector<16x504xbf16>, vector<160x504xf32> -> vector<160x504xf32>
    %4 = vector.extract_strided_slice %3 {offsets = [0, 0], sizes = [16, 504], strides = [1, 1]} : vector<160x504xf32> to vector<16x504xf32>
    %cst_4 = arith.constant 0.000000e+00 : f32
    %5 = vector.broadcast %cst_4 : f32 to vector<16x16xf32>
    %6 = tpu.concatenate %4, %5 in 1 : vector<16x504xf32>, vector<16x16xf32> -> vector<16x520xf32>
    %7 = vector.extract_strided_slice %3 {offsets = [16, 0], sizes = [16, 504], strides = [1, 1]} : vector<160x504xf32> to vector<16x504xf32>
    %cst_5 = arith.constant 0.000000e+00 : f32
    %8 = vector.broadcast %cst_5 : f32 to vector<16x8xf32>
    %9 = tpu.concatenate %7, %8 in 1 : vector<16x504xf32>, vector<16x8xf32> -> vector<16x512xf32>
    %10 = vector.extract_strided_slice %3 {offsets = [32, 0], sizes = [16, 504], strides = [1, 1]} : vector<160x504xf32> to vector<16x504xf32>
    %cst_6 = arith.constant 0.000000e+00 : f32
    %11 = vector.broadcast %cst_6 : f32 to vector<16x8xf32>
    %cst_7 = arith.constant 0.000000e+00 : f32
    %12 = vector.broadcast %cst_7 : f32 to vector<16x8xf32>
    %13 = tpu.concatenate %11, %10, %12 in 1 : vector<16x8xf32>, vector<16x504xf32>, vector<16x8xf32> -> vector<16x520xf32>
    %14 = arith.addf %6, %13 : vector<16x520xf32>
    %15 = vector.extract_strided_slice %3 {offsets = [48, 0], sizes = [16, 504], strides = [1, 1]} : vector<160x504xf32> to vector<16x504xf32>
    %cst_8 = arith.constant 0.000000e+00 : f32
    %16 = vector.broadcast %cst_8 : f32 to vector<16x8xf32>
    %17 = tpu.concatenate %16, %15 in 1 : vector<16x8xf32>, vector<16x504xf32> -> vector<16x512xf32>
    %18 = arith.addf %9, %17 : vector<16x512xf32>
    %19 = vector.extract_strided_slice %3 {offsets = [64, 0], sizes = [16, 504], strides = [1, 1]} : vector<160x504xf32> to vector<16x504xf32>
    %cst_9 = arith.constant 0.000000e+00 : f32
    %20 = vector.broadcast %cst_9 : f32 to vector<16x16xf32>
    %21 = tpu.concatenate %20, %19 in 1 : vector<16x16xf32>, vector<16x504xf32> -> vector<16x520xf32>
    %22 = arith.addf %14, %21 : vector<16x520xf32>
    %23 = vector.extract_strided_slice %3 {offsets = [80, 0], sizes = [16, 504], strides = [1, 1]} : vector<160x504xf32> to vector<16x504xf32>
    %c0_10 = arith.constant 0 : index
    %c0_11 = arith.constant 0 : index
    %24 = vector.load %arg4[%c0_10, %c0_11] : memref<1x504xf32, #tpu.memory_space<vmem>>, vector<1x504xf32>
    %25 = vector.broadcast %24 : vector<1x504xf32> to vector<16x504xf32>
    %26 = arith.mulf %23, %25 : vector<16x504xf32>
    %cst_12 = arith.constant 0.000000e+00 : f32
    %27 = vector.broadcast %cst_12 : f32 to vector<16x1xf32>
    %cst_13 = arith.constant 0.000000e+00 : f32
    %28 = vector.broadcast %cst_13 : f32 to vector<16x15xf32>
    %29 = tpu.concatenate %27, %26, %28 in 1 : vector<16x1xf32>, vector<16x504xf32>, vector<16x15xf32> -> vector<16x520xf32>
    %30 = arith.addf %22, %29 : vector<16x520xf32>
    %31 = vector.extract_strided_slice %3 {offsets = [96, 0], sizes = [16, 504], strides = [1, 1]} : vector<160x504xf32> to vector<16x504xf32>
    %c0_14 = arith.constant 0 : index
    %c0_15 = arith.constant 0 : index
    %32 = vector.load %arg4[%c0_14, %c0_15] : memref<1x504xf32, #tpu.memory_space<vmem>>, vector<1x504xf32>
    %33 = vector.broadcast %32 : vector<1x504xf32> to vector<16x504xf32>
    %34 = arith.mulf %31, %33 : vector<16x504xf32>
    %cst_16 = arith.constant 0.000000e+00 : f32
    %35 = vector.broadcast %cst_16 : f32 to vector<16x1xf32>
    %cst_17 = arith.constant 0.000000e+00 : f32
    %36 = vector.broadcast %cst_17 : f32 to vector<16x7xf32>
    %37 = tpu.concatenate %35, %34, %36 in 1 : vector<16x1xf32>, vector<16x504xf32>, vector<16x7xf32> -> vector<16x512xf32>
    %38 = arith.addf %18, %37 : vector<16x512xf32>
    %39 = vector.extract_strided_slice %3 {offsets = [112, 0], sizes = [16, 504], strides = [1, 1]} : vector<160x504xf32> to vector<16x504xf32>
    %c0_18 = arith.constant 0 : index
    %c0_19 = arith.constant 0 : index
    %40 = vector.load %arg4[%c0_18, %c0_19] : memref<1x504xf32, #tpu.memory_space<vmem>>, vector<1x504xf32>
    %41 = vector.broadcast %40 : vector<1x504xf32> to vector<16x504xf32>
    %42 = arith.mulf %39, %41 : vector<16x504xf32>
    %cst_20 = arith.constant 0.000000e+00 : f32
    %43 = vector.broadcast %cst_20 : f32 to vector<16x9xf32>
    %cst_21 = arith.constant 0.000000e+00 : f32
    %44 = vector.broadcast %cst_21 : f32 to vector<16x7xf32>
    %45 = tpu.concatenate %43, %42, %44 in 1 : vector<16x9xf32>, vector<16x504xf32>, vector<16x7xf32> -> vector<16x520xf32>
    %46 = arith.addf %30, %45 : vector<16x520xf32>
    %47 = vector.extract_strided_slice %3 {offsets = [128, 0], sizes = [16, 504], strides = [1, 1]} : vector<160x504xf32> to vector<16x504xf32>
    %c0_22 = arith.constant 0 : index
    %c0_23 = arith.constant 0 : index
    %48 = vector.load %arg4[%c0_22, %c0_23] : memref<1x504xf32, #tpu.memory_space<vmem>>, vector<1x504xf32>
    %49 = vector.broadcast %48 : vector<1x504xf32> to vector<16x504xf32>
    %50 = arith.mulf %47, %49 : vector<16x504xf32>
    %51 = vector.extract_strided_slice %50 {offsets = [0, 0], sizes = [16, 503], strides = [1, 1]} : vector<16x504xf32> to vector<16x503xf32>
    %cst_24 = arith.constant 0.000000e+00 : f32
    %52 = vector.broadcast %cst_24 : f32 to vector<16x9xf32>
    %53 = tpu.concatenate %52, %51 in 1 : vector<16x9xf32>, vector<16x503xf32> -> vector<16x512xf32>
    %54 = arith.addf %38, %53 : vector<16x512xf32>
    %55 = vector.extract_strided_slice %3 {offsets = [144, 0], sizes = [16, 504], strides = [1, 1]} : vector<160x504xf32> to vector<16x504xf32>
    %c0_25 = arith.constant 0 : index
    %c0_26 = arith.constant 0 : index
    %56 = vector.load %arg4[%c0_25, %c0_26] : memref<1x504xf32, #tpu.memory_space<vmem>>, vector<1x504xf32>
    %57 = vector.broadcast %56 : vector<1x504xf32> to vector<16x504xf32>
    %58 = arith.mulf %55, %57 : vector<16x504xf32>
    %59 = vector.extract_strided_slice %58 {offsets = [0, 0], sizes = [16, 503], strides = [1, 1]} : vector<16x504xf32> to vector<16x503xf32>
    %cst_27 = arith.constant 0.000000e+00 : f32
    %60 = vector.broadcast %cst_27 : f32 to vector<16x17xf32>
    %61 = tpu.concatenate %60, %59 in 1 : vector<16x17xf32>, vector<16x503xf32> -> vector<16x520xf32>
    %62 = arith.addf %46, %61 : vector<16x520xf32>
    %c0_28 = arith.constant 0 : index
    %c0_29 = arith.constant 0 : index
    %63 = vector.load %arg3[%c0_28, %c0_29] : memref<8x5xf32, #tpu.memory_space<vmem>>, vector<8x5xf32>
    %64 = vector.extract_strided_slice %63 {offsets = [0, 0], sizes = [8, 1], strides = [1, 1]} : vector<8x5xf32> to vector<8x1xf32>
    %65 = vector.extract_strided_slice %63 {offsets = [0, 1], sizes = [8, 1], strides = [1, 1]} : vector<8x5xf32> to vector<8x1xf32>
    %66 = vector.extract_strided_slice %63 {offsets = [0, 2], sizes = [8, 1], strides = [1, 1]} : vector<8x5xf32> to vector<8x1xf32>
    %67 = vector.extract_strided_slice %63 {offsets = [0, 3], sizes = [8, 1], strides = [1, 1]} : vector<8x5xf32> to vector<8x1xf32>
    %68 = vector.extract_strided_slice %63 {offsets = [0, 4], sizes = [8, 1], strides = [1, 1]} : vector<8x5xf32> to vector<8x1xf32>
    %69 = vector.extract_strided_slice %62 {offsets = [0, 0], sizes = [8, 520], strides = [1, 1]} : vector<16x520xf32> to vector<8x520xf32>
    %70 = vector.broadcast %64 : vector<8x1xf32> to vector<8x520xf32>
    %71 = arith.addf %69, %70 : vector<8x520xf32>
    %72 = vector.extract_strided_slice %62 {offsets = [8, 0], sizes = [8, 520], strides = [1, 1]} : vector<16x520xf32> to vector<8x520xf32>
    %73 = vector.broadcast %65 : vector<8x1xf32> to vector<8x520xf32>
    %74 = arith.addf %72, %73 : vector<8x520xf32>
    %75 = arith.negf %74 : vector<8x520xf32>
    %76 = math.exp %75 : vector<8x520xf32>
    %cst_30 = arith.constant 1.000000e+00 : f32
    %77 = vector.broadcast %cst_30 : f32 to vector<8x520xf32>
    %78 = arith.addf %77, %76 : vector<8x520xf32>
    %79 = arith.divf %77, %78 : vector<8x520xf32>
    %80 = arith.mulf %71, %79 : vector<8x520xf32>
    %81 = vector.extract_strided_slice %54 {offsets = [0, 0], sizes = [8, 512], strides = [1, 1]} : vector<16x512xf32> to vector<8x512xf32>
    %82 = vector.broadcast %64 : vector<8x1xf32> to vector<8x512xf32>
    %83 = arith.addf %81, %82 : vector<8x512xf32>
    %84 = vector.extract_strided_slice %54 {offsets = [8, 0], sizes = [8, 512], strides = [1, 1]} : vector<16x512xf32> to vector<8x512xf32>
    %85 = vector.broadcast %65 : vector<8x1xf32> to vector<8x512xf32>
    %86 = arith.addf %84, %85 : vector<8x512xf32>
    %87 = arith.negf %86 : vector<8x512xf32>
    %88 = math.exp %87 : vector<8x512xf32>
    %cst_31 = arith.constant 1.000000e+00 : f32
    %89 = vector.broadcast %cst_31 : f32 to vector<8x512xf32>
    %90 = arith.addf %89, %88 : vector<8x512xf32>
    %91 = arith.divf %89, %90 : vector<8x512xf32>
    %92 = arith.mulf %83, %91 : vector<8x512xf32>
    %cst_32 = arith.constant dense<0.000000e+00> : vector<8xf32>
    %93 = vector.multi_reduction <add>, %80, %cst_32 [1] : vector<8x520xf32> to vector<8xf32>
    %94 = vector.shape_cast %93 : vector<8xf32> to vector<8x1xf32>
    %cst_33 = arith.constant dense<0.000000e+00> : vector<8xf32>
    %95 = vector.multi_reduction <add>, %92, %cst_33 [1] : vector<8x512xf32> to vector<8xf32>
    %96 = vector.shape_cast %95 : vector<8xf32> to vector<8x1xf32>
    %97 = arith.addf %94, %96 : vector<8x1xf32>
    %98 = arith.mulf %80, %80 : vector<8x520xf32>
    %cst_34 = arith.constant dense<0.000000e+00> : vector<8xf32>
    %99 = vector.multi_reduction <add>, %98, %cst_34 [1] : vector<8x520xf32> to vector<8xf32>
    %100 = vector.shape_cast %99 : vector<8xf32> to vector<8x1xf32>
    %101 = arith.mulf %92, %92 : vector<8x512xf32>
    %cst_35 = arith.constant dense<0.000000e+00> : vector<8xf32>
    %102 = vector.multi_reduction <add>, %101, %cst_35 [1] : vector<8x512xf32> to vector<8xf32>
    %103 = vector.shape_cast %102 : vector<8xf32> to vector<8x1xf32>
    %104 = arith.addf %100, %103 : vector<8x1xf32>
    %cst_36 = arith.constant 9.68992244E-4 : f32
    %105 = vector.broadcast %cst_36 : f32 to vector<8x1xf32>
    %106 = arith.mulf %97, %105 : vector<8x1xf32>
    %cst_37 = arith.constant 9.68992244E-4 : f32
    %107 = vector.broadcast %cst_37 : f32 to vector<8x1xf32>
    %108 = arith.mulf %104, %107 : vector<8x1xf32>
    %109 = arith.mulf %106, %106 : vector<8x1xf32>
    %110 = arith.subf %108, %109 : vector<8x1xf32>
    %cst_38 = arith.constant 0.000000e+00 : f32
    %111 = vector.broadcast %cst_38 : f32 to vector<8x1xf32>
    %112 = arith.maximumf %110, %111 : vector<8x1xf32>
    %cst_39 = arith.constant 9.99999974E-6 : f32
    %113 = vector.broadcast %cst_39 : f32 to vector<8x1xf32>
    %114 = arith.addf %112, %113 : vector<8x1xf32>
    %115 = math.rsqrt %114 : vector<8x1xf32>
    %116 = arith.mulf %115, %66 : vector<8x1xf32>
    %117 = arith.mulf %106, %116 : vector<8x1xf32>
    %118 = arith.subf %67, %117 : vector<8x1xf32>
    %119 = vector.broadcast %116 : vector<8x1xf32> to vector<8x520xf32>
    %120 = arith.mulf %80, %119 : vector<8x520xf32>
    %121 = vector.broadcast %118 : vector<8x1xf32> to vector<8x520xf32>
    %122 = arith.addf %120, %121 : vector<8x520xf32>
    %123 = vector.broadcast %116 : vector<8x1xf32> to vector<8x512xf32>
    %124 = arith.mulf %92, %123 : vector<8x512xf32>
    %125 = vector.broadcast %118 : vector<8x1xf32> to vector<8x512xf32>
    %126 = arith.addf %124, %125 : vector<8x512xf32>
    %cst_40 = arith.constant 0.000000e+00 : f32
    %127 = vector.broadcast %cst_40 : f32 to vector<8x520xf32>
    %128 = arith.cmpf oge, %122, %127 : vector<8x520xf32>
    %129 = vector.broadcast %68 : vector<8x1xf32> to vector<8x520xf32>
    %130 = arith.mulf %129, %122 : vector<8x520xf32>
    %131 = arith.select %128, %122, %130 : vector<8x520xi1>, vector<8x520xf32>
    %cst_41 = arith.constant 0.000000e+00 : f32
    %132 = vector.broadcast %cst_41 : f32 to vector<8x512xf32>
    %133 = arith.cmpf oge, %126, %132 : vector<8x512xf32>
    %134 = vector.broadcast %68 : vector<8x1xf32> to vector<8x512xf32>
    %135 = arith.mulf %134, %126 : vector<8x512xf32>
    %136 = arith.select %133, %126, %135 : vector<8x512xi1>, vector<8x512xf32>
    %c0_42 = arith.constant 0 : index
    %c0_43 = arith.constant 0 : index
    %c0_44 = arith.constant 0 : index
    %137 = vector.load %arg5[%c0_42, %c0_43, %c0_44] : memref<1x8x520xf32, #tpu.memory_space<vmem>>, vector<1x8x520xf32>
    %138 = vector.shape_cast %137 : vector<1x8x520xf32> to vector<8x520xf32>
    %139 = vector.shape_cast %131 : vector<8x520xf32> to vector<1x8x520xf32>
    tpu.vector_store %arg5[%c0_42, %c0_43, %c0_44], %139 {strides = array<i32>} : memref<1x8x520xf32, #tpu.memory_space<vmem>>, vector<1x8x520xf32>,
    %c0_45 = arith.constant 0 : index
    %c0_46 = arith.constant 0 : index
    %c0_47 = arith.constant 0 : index
    %140 = vector.load %arg6[%c0_45, %c0_46, %c0_47] : memref<1x8x512xf32, #tpu.memory_space<vmem>>, vector<1x8x512xf32>
    %141 = vector.shape_cast %140 : vector<1x8x512xf32> to vector<8x512xf32>
    %142 = vector.shape_cast %136 : vector<8x512xf32> to vector<1x8x512xf32>
    tpu.vector_store %arg6[%c0_45, %c0_46, %c0_47], %142 {strides = array<i32>} : memref<1x8x512xf32, #tpu.memory_space<vmem>>, vector<1x8x512xf32>,
    return
  }
  func.func @transform_0(%arg0: i32) -> (i32, i32, i32) {
    %c0_i32 = arith.constant 0 : i32
    %c0_i32_0 = arith.constant 0 : i32
    %c0_i32_1 = arith.constant 0 : i32
    return %arg0, %c0_i32, %c0_i32_0 : i32, i32, i32
  }
  func.func @transform_1(%arg0: i32) -> (i32, i32) {
    %c0_i32 = arith.constant 0 : i32
    %c0_i32_0 = arith.constant 0 : i32
    %c0_i32_1 = arith.constant 0 : i32
    return %c0_i32, %c0_i32_0 : i32, i32
  }
  func.func @transform_2(%arg0: i32) -> (i32, i32) {
    %c0_i32 = arith.constant 0 : i32
    %c0_i32_0 = arith.constant 0 : i32
    %c0_i32_1 = arith.constant 0 : i32
    return %c0_i32, %c0_i32_0 : i32, i32
  }
  func.func @transform_3(%arg0: i32) -> (i32, i32) {
    %c0_i32 = arith.constant 0 : i32
    %c0_i32_0 = arith.constant 0 : i32
    %c0_i32_1 = arith.constant 0 : i32
    return %c0_i32, %c0_i32_0 : i32, i32
  }
  func.func @transform_4(%arg0: i32) -> (i32, i32, i32) {
    %c0_i32 = arith.constant 0 : i32
    %c0_i32_0 = arith.constant 0 : i32
    %c0_i32_1 = arith.constant 0 : i32
    return %arg0, %c0_i32, %c0_i32_0 : i32, i32, i32
  }
  func.func @transform_5(%arg0: i32) -> (i32, i32, i32) {
    %c0_i32 = arith.constant 0 : i32
    %c0_i32_0 = arith.constant 0 : i32
    %c0_i32_1 = arith.constant 0 : i32
    return %arg0, %c0_i32, %c0_i32_0 : i32, i32, i32
  }
}

</mosaic_0001>

<llo_original>
// kernel: unet_decoder_pallas.5
$region0: #{unet_decoder_pallas.5}
  #allocation0 [shape = 'u32[]', space=smem, size = 0x4, offset = 0x4, fixed_abs, tag = 'smem constant byte address 0x4 - core index']
  #allocation1 [shape = 'u32[144,128]{1,0:T(1,128)}', space=vmem, size = 0x12000, scoped, tag = 'internal scratch']
  %s0 = inlined_call_operand.vmem [shape: bf16[2,128,24], index: 0, kind: input, shape index: {}]
  %s1 = inlined_call_operand.vmem [shape: bf16[96,128], index: 1, kind: input, shape index: {}]
  %s2 = inlined_call_operand.vmem [shape: f32[8,5], index: 2, kind: input, shape index: {}]
  %s3 = inlined_call_operand.vmem [shape: f32[1,24], index: 3, kind: input, shape index: {}]
  %s4 = inlined_call_operand.vmem [shape: f32[2,8,32], index: 4, kind: output, shape index: {0}]
  %s5 = inlined_call_operand.vmem [shape: f32[2,8,24], index: 5, kind: output, shape index: {1}]
  %6 = xla_tuple %s4, %s5
  %s7 = sld [smem:[#allocation0]]
  $region57: #{unet_decoder_pallas.5} parent=0
    _
  %s9 = ssub.s32 1, %s7
  %s10 = scalar_select 0, %s9, %s7
  loop: start=0, step=1, limit=4
  $region2: #{unet_decoder_pallas.5} parent=0 // loop_pre_header
    _
  $region3: #{unet_decoder_pallas.5} parent=0 // loop_header
    %s12 = sphi 0, %s16
    %p13 = scmp.ge.s32.totalorder %s12, 4
    %s22 = sphi 0, %s24
    %s25 = sphi 0, %s22
    %s26 = sphi 0, %s25
    %s42 = sphi 0, %s26
    %s46 = sphi 0, %s46
    %s48 = sphi 0, %s46
    %s49 = sphi 0, %s48
    %s63 = sphi 0, %s49
    %s67 = sphi 0, %s67
    %s69 = sphi 0, %s67
    %s70 = sphi 0, %s69
    %s84 = sphi 0, %s70
    %s88 = sphi 0, %s88
    %s90 = sphi 0, %s88
    %s91 = sphi 0, %s90
    %s105 = sphi 0, %s91
    %s111 = sphi 0, %s113
    %s114 = sphi 0, %s111
    %s115 = sphi 0, %s114
    %s131 = sphi 0, %s115
    %s137 = sphi 0, %s139
    %s140 = sphi 0, %s137
    %s141 = sphi 0, %s140
    %s157 = sphi 0, %s141
  $region4: #{unet_decoder_pallas.5} parent=0 // loop_header_branch
    %15 = sbr.rel (%p13) target = $region8
  $region5: #{unet_decoder_pallas.5} parent=0 // loop_body
    %s17 = ssub.s32 %s12, 1
    %s18 = ssub.s32 %s12, 2
    %s19 = sadd.s32 %s12, 1
    %s20 = ssub.s32 %s12, %s19
    %p21 = scmp.eq.s32.totalorder %s20, 0
    %s23 = sadd.s32 %s22, 1
    %s24 = scalar_select %p21, %s22, %s23
    %p27 = pneg %p21
    %p28 = scmp.eq.s32.totalorder %s12, 1
    %p29 = por %p27, %p28
    %p30 = scmp.ne.s32.totalorder %s22, %s25
    %p31 = scmp.eq.s32.totalorder %s12, 0
    %p32 = por %p30, %p31
    %p33 = scmp.ne.s32.totalorder %s22, %s25
    %p34 = scmp.eq.s32.totalorder %s17, 1
    %p35 = por %p33, %p34
    %p36 = scmp.ne.s32.totalorder %s25, %s26
    %p37 = scmp.eq.s32.totalorder %s17, 0
    %p38 = por %p36, %p37
    %p39 = scmp.ne.s32.totalorder %s25, %s26
    %p40 = scmp.eq.s32.totalorder %s18, 1
    %p41 = por %p39, %p40
    %p43 = scmp.ne.s32.totalorder %s26, %s42
    %p44 = scmp.eq.s32.totalorder %s18, 0
    %p45 = por %p43, %p44
    %s47 = sadd.s32 %s46, 1
    %p50 = scmp.eq.s32.totalorder %s12, 1
    %p51 = scmp.ne.s32.totalorder %s46, %s48
    %p52 = scmp.eq.s32.totalorder %s12, 0
    %p53 = por %p51, %p52
    %p54 = scmp.ne.s32.totalorder %s46, %s48
    %p55 = scmp.eq.s32.totalorder %s17, 1
    %p56 = por %p54, %p55
    %p57 = scmp.ne.s32.totalorder %s48, %s49
    %p58 = scmp.eq.s32.totalorder %s17, 0
    %p59 = por %p57, %p58
    %p60 = scmp.ne.s32.totalorder %s48, %s49
    %p61 = scmp.eq.s32.totalorder %s18, 1
    %p62 = por %p60, %p61
    %p64 = scmp.ne.s32.totalorder %s49, %s63
    %p65 = scmp.eq.s32.totalorder %s18, 0
    %p66 = por %p64, %p65
    %s68 = sadd.s32 %s67, 1
    %p71 = scmp.eq.s32.totalorder %s12, 1
    %p72 = scmp.ne.s32.totalorder %s67, %s69
    %p73 = scmp.eq.s32.totalorder %s12, 0
    %p74 = por %p72, %p73
    %p75 = scmp.ne.s32.totalorder %s67, %s69
    %p76 = scmp.eq.s32.totalorder %s17, 1
    %p77 = por %p75, %p76
    %p78 = scmp.ne.s32.totalorder %s69, %s70
    %p79 = scmp.eq.s32.totalorder %s17, 0
    %p80 = por %p78, %p79
    %p81 = scmp.ne.s32.totalorder %s69, %s70
    %p82 = scmp.eq.s32.totalorder %s18, 1
    %p83 = por %p81, %p82
    %p85 = scmp.ne.s32.totalorder %s70, %s84
    %p86 = scmp.eq.s32.totalorder %s18, 0
    %p87 = por %p85, %p86
    %s89 = sadd.s32 %s88, 1
    %p92 = scmp.eq.s32.totalorder %s12, 1
    %p93 = scmp.ne.s32.totalorder %s88, %s90
    %p94 = scmp.eq.s32.totalorder %s12, 0
    %p95 = por %p93, %p94
    %p96 = scmp.ne.s32.totalorder %s88, %s90
    %p97 = scmp.eq.s32.totalorder %s17, 1
    %p98 = por %p96, %p97
    %p99 = scmp.ne.s32.totalorder %s90, %s91
    %p100 = scmp.eq.s32.totalorder %s17, 0
    %p101 = por %p99, %p100
    %p102 = scmp.ne.s32.totalorder %s90, %s91
    %p103 = scmp.eq.s32.totalorder %s18, 1
    %p104 = por %p102, %p103
    %p106 = scmp.ne.s32.totalorder %s91, %s105
    %p107 = scmp.eq.s32.totalorder %s18, 0
    %p108 = por %p106, %p107
    %s109 = ssub.s32 %s12, %s19
    %p110 = scmp.eq.s32.totalorder %s109, 0
    %s112 = sadd.s32 %s111, 1
    %s113 = scalar_select %p110, %s111, %s112
    %p116 = pneg %p110
    %p117 = scmp.eq.s32.totalorder %s12, 1
    %p118 = por %p116, %p117
    %p119 = scmp.ne.s32.totalorder %s111, %s114
    %p120 = scmp.eq.s32.totalorder %s12, 0
    %p121 = por %p119, %p120
    %p122 = scmp.ne.s32.totalorder %s111, %s114
    %p123 = scmp.eq.s32.totalorder %s17, 1
    %p124 = por %p122, %p123
    %p125 = scmp.ne.s32.totalorder %s114, %s115
    %p126 = scmp.eq.s32.totalorder %s17, 0
    %p127 = por %p125, %p126
    %p128 = scmp.ne.s32.totalorder %s114, %s115
    %p129 = scmp.eq.s32.totalorder %s18, 1
    %p130 = por %p128, %p129
    %p132 = scmp.ne.s32.totalorder %s115, %s131
    %p133 = scmp.eq.s32.totalorder %s18, 0
    %p134 = por %p132, %p133
    %s135 = ssub.s32 %s12, %s19
    %p136 = scmp.eq.s32.totalorder %s135, 0
    %s138 = sadd.s32 %s137, 1
    %s139 = scalar_select %p136, %s137, %s138
    %p142 = pneg %p136
    %p143 = scmp.eq.s32.totalorder %s12, 1
    %p144 = por %p142, %p143
    %p145 = scmp.ne.s32.totalorder %s137, %s140
    %p146 = scmp.eq.s32.totalorder %s12, 0
    %p147 = por %p145, %p146
    %p148 = scmp.ne.s32.totalorder %s137, %s140
    %p149 = scmp.eq.s32.totalorder %s17, 1
    %p150 = por %p148, %p149
    %p151 = scmp.ne.s32.totalorder %s140, %s141
    %p152 = scmp.eq.s32.totalorder %s17, 0
    %p153 = por %p151, %p152
    %p154 = scmp.ne.s32.totalorder %s140, %s141
    %p155 = scmp.eq.s32.totalorder %s18, 1
    %p156 = por %p154, %p155
    %p158 = scmp.ne.s32.totalorder %s141, %s157
    %p159 = scmp.eq.s32.totalorder %s18, 0
    %p160 = por %p158, %p159
    %p161 = scmp.le.s32.totalorder 1, %s12
    %p162 = scmp.lt.s32.totalorder %s12, 3
    %p163 = pnand %p161, %p162
    %p164 = pneg %p163
    // Predicated region
    $region9: #{unet_decoder_pallas.5} parent=5 // pred_check
      _
    $region10: #{unet_decoder_pallas.5} parent=5 // pred_check_branch
      %166 = sbr.rel (%p163) target = $region12
    $region11: #{unet_decoder_pallas.5} parent=5 // pred_region
      %s167 = ssub.s32 %s12, 1
      // Predicated region
      $region13: #{unet_decoder_pallas.5} parent=11 // pred_check
        %p168 = pneg %p59
      $region14: #{unet_decoder_pallas.5} parent=11 // pred_check_branch
        %170 = sbr.rel (%p168) target = $region16
      $region15: #{unet_decoder_pallas.5} parent=11 // pred_region
        _
      $region16: #{unet_decoder_pallas.5} parent=11 // pred_fallthru
        _
      // Predicated region
      $region17: #{unet_decoder_pallas.5} parent=11 // pred_check
        %p171 = pneg %p80
      $region18: #{unet_decoder_pallas.5} parent=11 // pred_check_branch
        %173 = sbr.rel (%p171) target = $region20
      $region19: #{unet_decoder_pallas.5} parent=11 // pred_region
        _
      $region20: #{unet_decoder_pallas.5} parent=11 // pred_fallthru
        _
      // Predicated region
      $region21: #{unet_decoder_pallas.5} parent=11 // pred_check
        %p174 = pneg %p101
      $region22: #{unet_decoder_pallas.5} parent=11 // pred_check_branch
        %176 = sbr.rel (%p174) target = $region24
      $region23: #{unet_decoder_pallas.5} parent=11 // pred_region
        _
      $region24: #{unet_decoder_pallas.5} parent=11 // pred_fallthru
        _
    $region12: #{unet_decoder_pallas.5} parent=5 // pred_fallthru
      _
    %p177 = scmp.lt.s32.totalorder %s12, 2
    // Predicated region
    $region25: #{unet_decoder_pallas.5} parent=5 // pred_check
      %p178 = pneg %p177
    $region26: #{unet_decoder_pallas.5} parent=5 // pred_check_branch
      %180 = sbr.rel (%p178) target = $region28
    $region27: #{unet_decoder_pallas.5} parent=5 // pred_region
      // Predicated region
      $region29: #{unet_decoder_pallas.5} parent=27 // pred_check
        %p181 = pneg %p32
      $region30: #{unet_decoder_pallas.5} parent=27 // pred_check_branch
        %183 = sbr.rel (%p181) target = $region32
      $region31: #{unet_decoder_pallas.5} parent=27 // pred_region
        %p184 = scmp.lt.s32.totalorder %s12, 1
        %s185 = scalar_select %p184, %s12, 1
        %s186 = smul.addr %s185, 16
        %s187 = smul.addr %s186, 4
        %s188 = scalar_lea.vmem %s0, %s187
      $region32: #{unet_decoder_pallas.5} parent=27 // pred_fallthru
        _
    $region28: #{unet_decoder_pallas.5} parent=5 // pred_fallthru
      _
    %p189 = scmp.le.s32.totalorder 1, %s12
    %p190 = scmp.lt.s32.totalorder %s12, 3
    %p191 = pnand %p189, %p190
    %p192 = pneg %p191
    // Predicated region
    $region33: #{unet_decoder_pallas.5} parent=5 // pred_check
      _
    $region34: #{unet_decoder_pallas.5} parent=5 // pred_check_branch
      %194 = sbr.rel (%p191) target = $region36
    $region35: #{unet_decoder_pallas.5} parent=5 // pred_region
      %s195 = ssub.s32 %s12, 1
      %p196 = scmp.lt.s32.totalorder %s17, 1
      %s197 = scalar_select %p196, %s17, 1
      %s198 = smul.addr %s197, 16
      %s199 = smul.addr %s198, 4
      %s200 = scalar_lea.vmem %s0, %s199
      %p201 = pneg %p38
      %p202 = pneg %p35
      %p203 = pneg %p59
      %p204 = pneg %p56
      %p205 = pneg %p80
      %p206 = pneg %p77
      %p207 = pneg %p101
      %p208 = pneg %p98
      %p209 = pneg %p127
      %p210 = pneg %p124
      %p211 = scmp.lt.s32.totalorder %s17, 1
      %s212 = scalar_select %p211, %s17, 1
      %s213 = smul.addr %s212, 8
      %s214 = scalar_lea.vmem %s4, %s213
      %p215 = pneg %p153
      %p216 = pneg %p150
      %p217 = scmp.lt.s32.totalorder %s17, 1
      %s218 = scalar_select %p217, %s17, 1
      %s219 = smul.addr %s218, 8
      %s220 = scalar_lea.vmem %s5, %s219
      %p221 = scmp.lt.s32.totalorder %s17, 1
      %s222 = scalar_select %p221, %s17, 1
      %s223 = smul.addr %s222, 16
      %s224 = smul.addr %s223, 4
      %s225 = scalar_lea.vmem %s0, %s224
      %p226 = scmp.lt.s32.totalorder %s17, 1
      %s227 = scalar_select %p226, %s17, 1
      %s228 = smul.addr %s227, 8
      %s229 = scalar_lea.vmem %s4, %s228
      %p230 = scmp.lt.s32.totalorder %s17, 1
      %s231 = scalar_select %p230, %s17, 1
      %s232 = smul.addr %s231, 8
      %s233 = scalar_lea.vmem %s5, %s232
      %v235 = vld [vmem:[%s1] sm:$0xf]
      %v236 = vld [vmem:[%s1 + $0x4] sm:$0xf]
      %v237 = vld [vmem:[%s1 + $0x8] sm:$0xf]
      %v238 = vld [vmem:[%s1 + $0xc] sm:$0xf]
      %v239 = vld [vmem:[%s1 + $0x10] sm:$0xf]
      %v240 = vld [vmem:[%s1 + $0x14] sm:$0xf]
      %v241 = vld [vmem:[%s1 + $0x18] sm:$0xf]
      %v242 = vld [vmem:[%s1 + $0x1c] sm:$0xf]
      %v243 = vld [vmem:[%s1 + $0x20] sm:$0xf]
      %v244 = vld [vmem:[%s1 + $0x24] sm:$0xf]
      %v245 = vld [vmem:[%s1 + $0x28] sm:$0xf]
      %v246 = vld [vmem:[%s1 + $0x2c] sm:$0xf]
      %v247 = vld [vmem:[%s225] sm:$0xf]
      %v248 = vld [vmem:[%s225 + $0x4] sm:$0xf]
      %v249 = vld [vmem:[%s225 + $0x8] sm:$0xf]
      %v250 = vld [vmem:[%s225 + $0xc] sm:$0xf]
      %v251 = vld [vmem:[%s225 + $0x10] sm:$0xf]
      %v252 = vld [vmem:[%s225 + $0x14] sm:$0xf]
      %v253 = vld [vmem:[%s225 + $0x18] sm:$0xf]
      %v254 = vld [vmem:[%s225 + $0x1c] sm:$0xf]
      %v255 = vld [vmem:[%s225 + $0x20] sm:$0xf]
      %v256 = vld [vmem:[%s225 + $0x24] sm:$0xf]
      %v257 = vld [vmem:[%s225 + $0x28] sm:$0xf]
      %v258 = vld [vmem:[%s225 + $0x2c] sm:$0xf]
      %v259 = vld [vmem:[%s225 + $0x30] sm:$0xf]
      %v260 = vld [vmem:[%s225 + $0x34] sm:$0xf]
      %v261 = vld [vmem:[%s225 + $0x38] sm:$0xf]
      %v262 = vld [vmem:[%s225 + $0x3c] sm:$0xf]
      %v275 = vunpack.c.l.b16 %v235
      %v276 = vunpack.c.l.b16 %v236
      %v277 = vunpack.c.l.b16 %v237
      %v278 = vunpack.c.l.b16 %v238
      %v279 = vunpack.c.l.b16 %v239
      %v280 = vunpack.c.l.b16 %v240
      %v281 = vunpack.c.l.b16 %v241
      %v282 = vunpack.c.l.b16 %v242
      %v283 = vunpack.c.l.b16 %v243
      %v284 = vunpack.c.l.b16 %v244
      %v285 = vunpack.c.l.b16 %v245
      %v286 = vunpack.c.l.b16 %v246
      %v287 = vpack.c.b16 %v276, %v275
      %v288 = vpack.c.b16 %v278, %v277
      %v289 = vpack.c.b16 %v280, %v279
      %v290 = vpack.c.b16 %v282, %v281
      %v291 = vpack.c.b16 %v284, %v283
      %v292 = vpack.c.b16 %v286, %v285
      %v315 = vunpack.c.l.b16 %v247
      %v316 = vunpack.c.l.b16 %v248
      %v317 = vunpack.c.l.b16 %v249
      %v318 = vunpack.c.l.b16 %v250
      %v319 = vunpack.c.l.b16 %v251
      %v320 = vunpack.c.l.b16 %v252
      %v321 = vunpack.c.l.b16 %v253
      %v322 = vunpack.c.l.b16 %v254
      %v323 = vunpack.c.l.b16 %v255
      %v324 = vunpack.c.l.b16 %v256
      %v325 = vunpack.c.l.b16 %v257
      %v326 = vunpack.c.l.b16 %v258
      %v327 = vunpack.c.l.b16 %v259
      %v328 = vunpack.c.l.b16 %v260
      %v329 = vunpack.c.l.b16 %v261
      %v330 = vunpack.c.l.b16 %v262
      %v331 = vpack.c.b16 %v316, %v315
      %v332 = vpack.c.b16 %v318, %v317
      %v333 = vpack.c.b16 %v320, %v319
      %v334 = vpack.c.b16 %v322, %v321
      %v335 = vpack.c.b16 %v324, %v323
      %v336 = vpack.c.b16 %v326, %v325
      %v337 = vpack.c.b16 %v328, %v327
      %v338 = vpack.c.b16 %v330, %v329
      %347 = vmatprep.subr.bf16.mxu0 0
      %348 = vmatpush1.bf16.msra.mxu0 %v338
      %349 = vmatprep.subr.bf16.mxu0 0
      %350 = vmatpush1.bf16.msra.mxu0 %v337
      %351 = vmatprep.subr.bf16.mxu0 0
      %352 = vmatpush1.bf16.msra.mxu0 %v336
      %353 = vmatprep.subr.bf16.mxu0 0
      %354 = vmatpush1.bf16.msra.mxu0 %v335
      %355 = vmatprep.subr.bf16.mxu0 0
      %356 = vmatpush1.bf16.msra.mxu0 %v334
      %357 = vmatprep.subr.bf16.mxu0 0
      %358 = vmatpush1.bf16.msra.mxu0 %v333
      %359 = vmatprep.subr.bf16.mxu0 0
      %360 = vmatpush1.bf16.msra.mxu0 %v332
      %361 = vmatprep.subr.bf16.mxu0 0
      %362 = vmatpush1.bf16.msra.mxu0 %v331
      %363 = vmatprep.subr.bf16.mxu0 0
      %364 = vmatpush2.bf16.msra.mxu0 0
      %365 = vmatprep.subr.bf16.mxu0 0
      %366 = vmatpush2.bf16.msra.mxu0 0
      %367 = vmatprep.subr.bf16.mxu0 0
      %368 = vmatpush2.bf16.msra.mxu0 0
      %369 = vmatprep.subr.bf16.mxu0 0
      %370 = vmatpush2.bf16.msra.mxu0 0
      %371 = vmatprep.subr.bf16.mxu0 0
      %372 = vmatpush2.bf16.msra.mxu0 0
      %373 = vmatprep.subr.bf16.mxu0 0
      %374 = vmatpush2.bf16.msra.mxu0 0
      %375 = vmatprep.subr.bf16.mxu0 0
      %376 = vmatpush2.bf16.msra.mxu0 0
      %377 = vmatprep.subr.bf16.mxu0 0
      %378 = vmatpush2.bf16.msra.mxu0 0
      %379 = vmatprep.mubr.bf16.mxu0 0
      %380 = vmatmul.mubr.bf16.gmra.mxu0 %v287
      %v381 = vpop.f32.mrf.mxu0
      %v382 = vadd.f32 0.0, %v381
      %v383 = vpop.f32.mrf.mxu0
      %v384 = vpop.f32.mrf.mxu0
      %v385 = vadd.f32 0.0, %v384
      %v386 = vpop.f32.mrf.mxu0
      %387 = vmatprep.mubr.bf16.mxu0 0
      %388 = vmatmul.mubr.bf16.gmra.mxu0 %v288
      %v389 = vpop.f32.mrf.mxu0
      %v390 = vadd.f32 0.0, %v389
      %v391 = vpop.f32.mrf.mxu0
      %v392 = vpop.f32.mrf.mxu0
      %v393 = vadd.f32 0.0, %v392
      %v394 = vpop.f32.mrf.mxu0
      %395 = vmatprep.mubr.bf16.mxu0 0
      %396 = vmatmul.mubr.bf16.gmra.mxu0 %v289
      %v397 = vpop.f32.mrf.mxu0
      %v398 = vadd.f32 0.0, %v397
      %v399 = vpop.f32.mrf.mxu0
      %v400 = vpop.f32.mrf.mxu0
      %v401 = vadd.f32 0.0, %v400
      %v402 = vpop.f32.mrf.mxu0
      %403 = vmatprep.mubr.bf16.mxu0 0
      %404 = vmatmul.mubr.bf16.gmra.mxu0 %v290
      %v405 = vpop.f32.mrf.mxu0
      %v406 = vadd.f32 0.0, %v405
      %v407 = vpop.f32.mrf.mxu0
      %v408 = vpop.f32.mrf.mxu0
      %v409 = vadd.f32 0.0, %v408
      %v410 = vpop.f32.mrf.mxu0
      %411 = vmatprep.mubr.bf16.mxu0 0
      %412 = vmatmul.mubr.bf16.gmra.mxu0 %v291
      %v413 = vpop.f32.mrf.mxu0
      %v414 = vadd.f32 0.0, %v413
      %v415 = vpop.f32.mrf.mxu0
      %v416 = vpop.f32.mrf.mxu0
      %v417 = vadd.f32 0.0, %v416
      %v418 = vpop.f32.mrf.mxu0
      %419 = vmatprep.mubr.bf16.mxu0 0
      %420 = vmatmul.mubr.bf16.gmra.mxu0 %v292
      %v421 = vpop.f32.mrf.mxu0
      %v422 = vadd.f32 0.0, %v421
      %v423 = vpop.f32.mrf.mxu0
      %v424 = vpop.f32.mrf.mxu0
      %v425 = vadd.f32 0.0, %v424
      %v426 = vpop.f32.mrf.mxu0
      %427 = vdwg.mxu0
      %vm428 = vcmask 195584
      %v429 = vsel %vm428, %v382, 0.0
      %v430 = vsel %vm428, %v385, 0.0
      %433 = vrot.lane.b32.xlu0 %v398, 8
      %v434 = vpop.permute.xlu0 %433
      %435 = vrot.lane.b32.xlu0 %v401, 8
      %v436 = vpop.permute.xlu0 %435
      %vm439 = vcmask 64512
      %v440 = vsel %vm439, 0.0, %v434
      %v441 = vsel %vm439, 0.0, %v436
      %v442 = vadd.f32 %v429, %v440
      %v443 = vadd.f32 %v430, %v441
      %v444 = vld [vmem:[%s3] sm:$0x1]
      %v446 = vlaneseq
      %v447 = vshrl.u32 %v446, 7
      %v448 = vsub.s32 0, %v447
      %v449 = vrot.slane %v444, %v448
      %v451 = vmul.f32 %v406, %v449
      %v452 = vmul.f32 %v409, %v449
      %455 = vrot.lane.b32.xlu0 %v451, 1
      %v456 = vpop.permute.xlu0 %455
      %457 = vrot.lane.b32.xlu0 %v452, 1
      %v458 = vpop.permute.xlu0 %457
      %vm461 = vcmask 7168
      %v462 = vsel %vm461, 0.0, %v456
      %v463 = vsel %vm461, 0.0, %v458
      %vm464 = vcmask 203776
      %v465 = vsel %vm464, %v462, 0.0
      %v466 = vsel %vm464, %v463, 0.0
      %v467 = vadd.f32 %v442, %v465
      %v468 = vadd.f32 %v443, %v466
      %v469 = vmul.f32 %v414, %v449
      %v470 = vmul.f32 %v417, %v449
      %473 = vrot.lane.b32.xlu0 %v469, 1
      %v474 = vpop.permute.xlu0 %473
      %475 = vrot.lane.b32.xlu0 %v470, 1
      %v476 = vpop.permute.xlu0 %475
      %v479 = vsel %vm461, 0.0, %v474
      %v480 = vsel %vm461, 0.0, %v476
      %v481 = vadd.f32 %v390, %v479
      %v482 = vadd.f32 %v393, %v480
      %v483 = vmul.f32 %v422, %v449
      %v484 = vmul.f32 %v425, %v449
      %487 = vrot.lane.b32.xlu0 %v483, 9
      %v488 = vpop.permute.xlu0 %487
      %489 = vrot.lane.b32.xlu0 %v484, 9
      %v490 = vpop.permute.xlu0 %489
      %vm493 = vcmask 72704
      %v494 = vsel %vm493, 0.0, %v488
      %v495 = vsel %vm493, 0.0, %v490
      %v496 = vadd.f32 %v467, %v494
      %v497 = vadd.f32 %v468, %v495
      %v498 = vld [vmem:[%s2] sm:$0xff]
      %500 = vset.pattern.permute.xlu0 0
      %501 = vperm.xlu0 %500, %v498
      %v502 = vpop.permute.xlu0 %501
      %v504 = vadd.f32 %v496, %v502
      %505 = vset.pattern.permute.xlu0 1
      %506 = vperm.xlu0 %505, %v498
      %v507 = vpop.permute.xlu0 %506
      %v509 = vadd.f32 %v497, %v507
      %v510 = vxor.u32 %v509, 2147483648
      %v511 = vmul.f32 %v510, 1.442695
      %v512 = vpow.pop %v511
      %v513 = vadd.f32 %v512, 1.0
      %v514 = vrcp.pop %v513
      %v515 = vmul.f32 1.0, %v514
      %v516 = vmul.f32 %v504, %v515
      %v517 = vadd.f32 %v481, %v502
      %v518 = vadd.f32 %v482, %v507
      %v519 = vxor.u32 %v518, 2147483648
      %v520 = vmul.f32 %v519, 1.442695
      %v521 = vpow.pop %v520
      %v522 = vadd.f32 %v521, 1.0
      %v523 = vrcp.pop %v522
      %v524 = vmul.f32 1.0, %v523
      %v525 = vmul.f32 %v517, %v524
      %vm526 = vcmask 261120
      %v527 = vsel %vm526, %v516, 0.0
      %528 = vadd.xlane.f32.xlu0 %v527
      %v529 = vpop.xlane.xlu0 %528
      %v530 = vsel %vm428, %v525, 0.0
      %531 = vadd.xlane.f32.xlu0 %v530
      %v532 = vpop.xlane.xlu0 %531
      %v533 = vadd.f32 %v529, %v532
      %v534 = vmul.f32 %v516, %v516
      %v535 = vsel %vm526, %v534, 0.0
      %536 = vadd.xlane.f32.xlu0 %v535
      %v537 = vpop.xlane.xlu0 %536
      %v538 = vmul.f32 %v525, %v525
      %v539 = vsel %vm428, %v538, 0.0
      %540 = vadd.xlane.f32.xlu0 %v539
      %v541 = vpop.xlane.xlu0 %540
      %v542 = vadd.f32 %v537, %v541
      %v543 = vmul.f32 %v533, 0.017857144
      %v544 = vmul.f32 %v542, 0.017857144
      %v545 = vmul.f32 %v543, %v543
      %v546 = vsub.f32 %v544, %v545
      %v547 = vmax.f32 %v546, 0.0
      %v548 = vadd.f32 %v547, 1e-05
      %v549 = vrsqrt.pop %v548
      %v550 = vmul.f32 %v549, %v498
      %v551 = vmul.f32 %v543, %v550
      %553 = vrot.lane.b32.xlu0 %v551, 1
      %v554 = vpop.permute.xlu0 %553
      %v556 = vsub.f32 %v498, %v554
      %558 = vset.pattern.permute.xlu0 2
      %559 = vperm.xlu0 %558, %v550
      %v560 = vpop.permute.xlu0 %559
      %v562 = vmul.f32 %v516, %v560
      %564 = vset.pattern.permute.xlu0 3
      %565 = vperm.xlu0 %564, %v556
      %v566 = vpop.permute.xlu0 %565
      %v568 = vadd.f32 %v562, %v566
      %v569 = vmul.f32 %v525, %v560
      %v570 = vadd.f32 %v569, %v566
      %vm571 = vcmp.ge.f32.partialorder %v568, 0.0
      %572 = vset.pattern.permute.xlu0 4
      %573 = vperm.xlu0 %572, %v498
      %v574 = vpop.permute.xlu0 %573
      %v576 = vmul.f32 %v574, %v568
      %v577 = vsel %vm571, %v568, %v576
      %vm578 = vcmp.ge.f32.partialorder %v570, 0.0
      %v579 = vmul.f32 %v574, %v570
      %v580 = vsel %vm578, %v570, %v579
      %581 = vst.msk [vmem:[%s229] sm:$0xff] %vm526, %v577
      %582 = vst.msk [vmem:[%s233] sm:$0xff] %vm428, %v580
      %p583 = scmp.lt.s32.totalorder %s17, 1
      %s584 = scalar_select %p583, %s17, 1
      %s585 = smul.addr %s584, 8
      %s586 = scalar_lea.vmem %s4, %s585
      %p587 = scmp.lt.s32.totalorder %s17, 1
      %s588 = scalar_select %p587, %s17, 1
      %s589 = smul.addr %s588, 8
      %s590 = scalar_lea.vmem %s5, %s589
      // Predicated region
      $region37: #{unet_decoder_pallas.5} parent=35 // pred_check
        %p591 = pneg %p124
      $region38: #{unet_decoder_pallas.5} parent=35 // pred_check_branch
        %593 = sbr.rel (%p591) target = $region40
      $region39: #{unet_decoder_pallas.5} parent=35 // pred_region
        _
      $region40: #{unet_decoder_pallas.5} parent=35 // pred_fallthru
        _
      // Predicated region
      $region41: #{unet_decoder_pallas.5} parent=35 // pred_check
        %p594 = pneg %p150
      $region42: #{unet_decoder_pallas.5} parent=35 // pred_check_branch
        %596 = sbr.rel (%p594) target = $region44
      $region43: #{unet_decoder_pallas.5} parent=35 // pred_region
        _
      $region44: #{unet_decoder_pallas.5} parent=35 // pred_fallthru
        _
    $region36: #{unet_decoder_pallas.5} parent=5 // pred_fallthru
      _
    %p597 = scmp.le.s32.totalorder 2, %s12
    // Predicated region
    $region45: #{unet_decoder_pallas.5} parent=5 // pred_check
      %p598 = pneg %p597
    $region46: #{unet_decoder_pallas.5} parent=5 // pred_check_branch
      %600 = sbr.rel (%p598) target = $region48
    $region47: #{unet_decoder_pallas.5} parent=5 // pred_region
      %s601 = ssub.s32 %s12, 2
      // Predicated region
      $region49: #{unet_decoder_pallas.5} parent=47 // pred_check
        %p602 = pneg %p130
      $region50: #{unet_decoder_pallas.5} parent=47 // pred_check_branch
        %604 = sbr.rel (%p602) target = $region52
      $region51: #{unet_decoder_pallas.5} parent=47 // pred_region
        %p605 = scmp.lt.s32.totalorder %s18, 1
        %s606 = scalar_select %p605, %s18, 1
        %s607 = smul.addr %s606, 8
        %s608 = scalar_lea.vmem %s4, %s607
      $region52: #{unet_decoder_pallas.5} parent=47 // pred_fallthru
        _
      // Predicated region
      $region53: #{unet_decoder_pallas.5} parent=47 // pred_check
        %p609 = pneg %p156
      $region54: #{unet_decoder_pallas.5} parent=47 // pred_check_branch
        %611 = sbr.rel (%p609) target = $region56
      $region55: #{unet_decoder_pallas.5} parent=47 // pred_region
        %p612 = scmp.lt.s32.totalorder %s18, 1
        %s613 = scalar_select %p612, %s18, 1
        %s614 = smul.addr %s613, 8
        %s615 = scalar_lea.vmem %s5, %s614
      $region56: #{unet_decoder_pallas.5} parent=47 // pred_fallthru
        _
    $region48: #{unet_decoder_pallas.5} parent=5 // pred_fallthru
      _
  $region6: #{unet_decoder_pallas.5} parent=0 // loop_footer
    %s16 = sadd.s32 1, %s12
  $region7: #{unet_decoder_pallas.5} parent=0 // loop_footer_branch
    %11 = sbr.rel target = $region3
  $region8: #{unet_decoder_pallas.5} parent=0 // loop_exit
    _

// kernel: unet_decoder_pallas.6
$region0: #{unet_decoder_pallas.6}
  #allocation0 [shape = 'u32[]', space=smem, size = 0x4, offset = 0x4, fixed_abs, tag = 'smem constant byte address 0x4 - core index']
  #allocation1 [shape = 'u32[144,128]{1,0:T(1,128)}', space=vmem, size = 0x12000, scoped, tag = 'internal scratch']
  %s0 = inlined_call_operand.vmem [shape: bf16[2,16,56], index: 0, kind: input, shape index: {}]
  %s1 = inlined_call_operand.vmem [shape: bf16[96,16], index: 1, kind: input, shape index: {}]
  %s2 = inlined_call_operand.vmem [shape: f32[8,5], index: 2, kind: input, shape index: {}]
  %s3 = inlined_call_operand.vmem [shape: f32[1,56], index: 3, kind: input, shape index: {}]
  %s4 = inlined_call_operand.vmem [shape: f32[2,8,64], index: 4, kind: output, shape index: {0}]
  %s5 = inlined_call_operand.vmem [shape: f32[2,8,56], index: 5, kind: output, shape index: {1}]
  %6 = xla_tuple %s4, %s5
  %s7 = sld [smem:[#allocation0]]
  $region57: #{unet_decoder_pallas.6} parent=0
    _
  %s9 = ssub.s32 1, %s7
  %s10 = scalar_select 0, %s9, %s7
  loop: start=0, step=1, limit=4
  $region2: #{unet_decoder_pallas.6} parent=0 // loop_pre_header
    _
  $region3: #{unet_decoder_pallas.6} parent=0 // loop_header
    %s12 = sphi 0, %s16
    %p13 = scmp.ge.s32.totalorder %s12, 4
    %s22 = sphi 0, %s24
    %s25 = sphi 0, %s22
    %s26 = sphi 0, %s25
    %s42 = sphi 0, %s26
    %s46 = sphi 0, %s46
    %s48 = sphi 0, %s46
    %s49 = sphi 0, %s48
    %s63 = sphi 0, %s49
    %s67 = sphi 0, %s67
    %s69 = sphi 0, %s67
    %s70 = sphi 0, %s69
    %s84 = sphi 0, %s70
    %s88 = sphi 0, %s88
    %s90 = sphi 0, %s88
    %s91 = sphi 0, %s90
    %s105 = sphi 0, %s91
    %s111 = sphi 0, %s113
    %s114 = sphi 0, %s111
    %s115 = sphi 0, %s114
    %s131 = sphi 0, %s115
    %s137 = sphi 0, %s139
    %s140 = sphi 0, %s137
    %s141 = sphi 0, %s140
    %s157 = sphi 0, %s141
  $region4: #{unet_decoder_pallas.6} parent=0 // loop_header_branch
    %15 = sbr.rel (%p13) target = $region8
  $region5: #{unet_decoder_pallas.6} parent=0 // loop_body
    %s17 = ssub.s32 %s12, 1
    %s18 = ssub.s32 %s12, 2
    %s19 = sadd.s32 %s12, 1
    %s20 = ssub.s32 %s12, %s19
    %p21 = scmp.eq.s32.totalorder %s20, 0
    %s23 = sadd.s32 %s22, 1
    %s24 = scalar_select %p21, %s22, %s23
    %p27 = pneg %p21
    %p28 = scmp.eq.s32.totalorder %s12, 1
    %p29 = por %p27, %p28
    %p30 = scmp.ne.s32.totalorder %s22, %s25
    %p31 = scmp.eq.s32.totalorder %s12, 0
    %p32 = por %p30, %p31
    %p33 = scmp.ne.s32.totalorder %s22, %s25
    %p34 = scmp.eq.s32.totalorder %s17, 1
    %p35 = por %p33, %p34
    %p36 = scmp.ne.s32.totalorder %s25, %s26
    %p37 = scmp.eq.s32.totalorder %s17, 0
    %p38 = por %p36, %p37
    %p39 = scmp.ne.s32.totalorder %s25, %s26
    %p40 = scmp.eq.s32.totalorder %s18, 1
    %p41 = por %p39, %p40
    %p43 = scmp.ne.s32.totalorder %s26, %s42
    %p44 = scmp.eq.s32.totalorder %s18, 0
    %p45 = por %p43, %p44
    %s47 = sadd.s32 %s46, 1
    %p50 = scmp.eq.s32.totalorder %s12, 1
    %p51 = scmp.ne.s32.totalorder %s46, %s48
    %p52 = scmp.eq.s32.totalorder %s12, 0
    %p53 = por %p51, %p52
    %p54 = scmp.ne.s32.totalorder %s46, %s48
    %p55 = scmp.eq.s32.totalorder %s17, 1
    %p56 = por %p54, %p55
    %p57 = scmp.ne.s32.totalorder %s48, %s49
    %p58 = scmp.eq.s32.totalorder %s17, 0
    %p59 = por %p57, %p58
    %p60 = scmp.ne.s32.totalorder %s48, %s49
    %p61 = scmp.eq.s32.totalorder %s18, 1
    %p62 = por %p60, %p61
    %p64 = scmp.ne.s32.totalorder %s49, %s63
    %p65 = scmp.eq.s32.totalorder %s18, 0
    %p66 = por %p64, %p65
    %s68 = sadd.s32 %s67, 1
    %p71 = scmp.eq.s32.totalorder %s12, 1
    %p72 = scmp.ne.s32.totalorder %s67, %s69
    %p73 = scmp.eq.s32.totalorder %s12, 0
    %p74 = por %p72, %p73
    %p75 = scmp.ne.s32.totalorder %s67, %s69
    %p76 = scmp.eq.s32.totalorder %s17, 1
    %p77 = por %p75, %p76
    %p78 = scmp.ne.s32.totalorder %s69, %s70
    %p79 = scmp.eq.s32.totalorder %s17, 0
    %p80 = por %p78, %p79
    %p81 = scmp.ne.s32.totalorder %s69, %s70
    %p82 = scmp.eq.s32.totalorder %s18, 1
    %p83 = por %p81, %p82
    %p85 = scmp.ne.s32.totalorder %s70, %s84
    %p86 = scmp.eq.s32.totalorder %s18, 0
    %p87 = por %p85, %p86
    %s89 = sadd.s32 %s88, 1
    %p92 = scmp.eq.s32.totalorder %s12, 1
    %p93 = scmp.ne.s32.totalorder %s88, %s90
    %p94 = scmp.eq.s32.totalorder %s12, 0
    %p95 = por %p93, %p94
    %p96 = scmp.ne.s32.totalorder %s88, %s90
    %p97 = scmp.eq.s32.totalorder %s17, 1
    %p98 = por %p96, %p97
    %p99 = scmp.ne.s32.totalorder %s90, %s91
    %p100 = scmp.eq.s32.totalorder %s17, 0
    %p101 = por %p99, %p100
    %p102 = scmp.ne.s32.totalorder %s90, %s91
    %p103 = scmp.eq.s32.totalorder %s18, 1
    %p104 = por %p102, %p103
    %p106 = scmp.ne.s32.totalorder %s91, %s105
    %p107 = scmp.eq.s32.totalorder %s18, 0
    %p108 = por %p106, %p107
    %s109 = ssub.s32 %s12, %s19
    %p110 = scmp.eq.s32.totalorder %s109, 0
    %s112 = sadd.s32 %s111, 1
    %s113 = scalar_select %p110, %s111, %s112
    %p116 = pneg %p110
    %p117 = scmp.eq.s32.totalorder %s12, 1
    %p118 = por %p116, %p117
    %p119 = scmp.ne.s32.totalorder %s111, %s114
    %p120 = scmp.eq.s32.totalorder %s12, 0
    %p121 = por %p119, %p120
    %p122 = scmp.ne.s32.totalorder %s111, %s114
    %p123 = scmp.eq.s32.totalorder %s17, 1
    %p124 = por %p122, %p123
    %p125 = scmp.ne.s32.totalorder %s114, %s115
    %p126 = scmp.eq.s32.totalorder %s17, 0
    %p127 = por %p125, %p126
    %p128 = scmp.ne.s32.totalorder %s114, %s115
    %p129 = scmp.eq.s32.totalorder %s18, 1
    %p130 = por %p128, %p129
    %p132 = scmp.ne.s32.totalorder %s115, %s131
    %p133 = scmp.eq.s32.totalorder %s18, 0
    %p134 = por %p132, %p133
    %s135 = ssub.s32 %s12, %s19
    %p136 = scmp.eq.s32.totalorder %s135, 0
    %s138 = sadd.s32 %s137, 1
    %s139 = scalar_select %p136, %s137, %s138
    %p142 = pneg %p136
    %p143 = scmp.eq.s32.totalorder %s12, 1
    %p144 = por %p142, %p143
    %p145 = scmp.ne.s32.totalorder %s137, %s140
    %p146 = scmp.eq.s32.totalorder %s12, 0
    %p147 = por %p145, %p146
    %p148 = scmp.ne.s32.totalorder %s137, %s140
    %p149 = scmp.eq.s32.totalorder %s17, 1
    %p150 = por %p148, %p149
    %p151 = scmp.ne.s32.totalorder %s140, %s141
    %p152 = scmp.eq.s32.totalorder %s17, 0
    %p153 = por %p151, %p152
    %p154 = scmp.ne.s32.totalorder %s140, %s141
    %p155 = scmp.eq.s32.totalorder %s18, 1
    %p156 = por %p154, %p155
    %p158 = scmp.ne.s32.totalorder %s141, %s157
    %p159 = scmp.eq.s32.totalorder %s18, 0
    %p160 = por %p158, %p159
    %p161 = scmp.le.s32.totalorder 1, %s12
    %p162 = scmp.lt.s32.totalorder %s12, 3
    %p163 = pnand %p161, %p162
    %p164 = pneg %p163
    // Predicated region
    $region9: #{unet_decoder_pallas.6} parent=5 // pred_check
      _
    $region10: #{unet_decoder_pallas.6} parent=5 // pred_check_branch
      %166 = sbr.rel (%p163) target = $region12
    $region11: #{unet_decoder_pallas.6} parent=5 // pred_region
      %s167 = ssub.s32 %s12, 1
      // Predicated region
      $region13: #{unet_decoder_pallas.6} parent=11 // pred_check
        %p168 = pneg %p59
      $region14: #{unet_decoder_pallas.6} parent=11 // pred_check_branch
        %170 = sbr.rel (%p168) target = $region16
      $region15: #{unet_decoder_pallas.6} parent=11 // pred_region
        _
      $region16: #{unet_decoder_pallas.6} parent=11 // pred_fallthru
        _
      // Predicated region
      $region17: #{unet_decoder_pallas.6} parent=11 // pred_check
        %p171 = pneg %p80
      $region18: #{unet_decoder_pallas.6} parent=11 // pred_check_branch
        %173 = sbr.rel (%p171) target = $region20
      $region19: #{unet_decoder_pallas.6} parent=11 // pred_region
        _
      $region20: #{unet_decoder_pallas.6} parent=11 // pred_fallthru
        _
      // Predicated region
      $region21: #{unet_decoder_pallas.6} parent=11 // pred_check
        %p174 = pneg %p101
      $region22: #{unet_decoder_pallas.6} parent=11 // pred_check_branch
        %176 = sbr.rel (%p174) target = $region24
      $region23: #{unet_decoder_pallas.6} parent=11 // pred_region
        _
      $region24: #{unet_decoder_pallas.6} parent=11 // pred_fallthru
        _
    $region12: #{unet_decoder_pallas.6} parent=5 // pred_fallthru
      _
    %p177 = scmp.lt.s32.totalorder %s12, 2
    // Predicated region
    $region25: #{unet_decoder_pallas.6} parent=5 // pred_check
      %p178 = pneg %p177
    $region26: #{unet_decoder_pallas.6} parent=5 // pred_check_branch
      %180 = sbr.rel (%p178) target = $region28
    $region27: #{unet_decoder_pallas.6} parent=5 // pred_region
      // Predicated region
      $region29: #{unet_decoder_pallas.6} parent=27 // pred_check
        %p181 = pneg %p32
      $region30: #{unet_decoder_pallas.6} parent=27 // pred_check_branch
        %183 = sbr.rel (%p181) target = $region32
      $region31: #{unet_decoder_pallas.6} parent=27 // pred_region
        %p184 = scmp.lt.s32.totalorder %s12, 1
        %s185 = scalar_select %p184, %s12, 1
        %s186 = smul.addr %s185, 2
        %s187 = smul.addr %s186, 4
        %s188 = scalar_lea.vmem %s0, %s187
      $region32: #{unet_decoder_pallas.6} parent=27 // pred_fallthru
        _
    $region28: #{unet_decoder_pallas.6} parent=5 // pred_fallthru
      _
    %p189 = scmp.le.s32.totalorder 1, %s12
    %p190 = scmp.lt.s32.totalorder %s12, 3
    %p191 = pnand %p189, %p190
    %p192 = pneg %p191
    // Predicated region
    $region33: #{unet_decoder_pallas.6} parent=5 // pred_check
      _
    $region34: #{unet_decoder_pallas.6} parent=5 // pred_check_branch
      %194 = sbr.rel (%p191) target = $region36
    $region35: #{unet_decoder_pallas.6} parent=5 // pred_region
      %s195 = ssub.s32 %s12, 1
      %p196 = scmp.lt.s32.totalorder %s17, 1
      %s197 = scalar_select %p196, %s17, 1
      %s198 = smul.addr %s197, 2
      %s199 = smul.addr %s198, 4
      %s200 = scalar_lea.vmem %s0, %s199
      %p201 = pneg %p38
      %p202 = pneg %p35
      %p203 = pneg %p59
      %p204 = pneg %p56
      %p205 = pneg %p80
      %p206 = pneg %p77
      %p207 = pneg %p101
      %p208 = pneg %p98
      %p209 = pneg %p127
      %p210 = pneg %p124
      %p211 = scmp.lt.s32.totalorder %s17, 1
      %s212 = scalar_select %p211, %s17, 1
      %s213 = smul.addr %s212, 8
      %s214 = scalar_lea.vmem %s4, %s213
      %p215 = pneg %p153
      %p216 = pneg %p150
      %p217 = scmp.lt.s32.totalorder %s17, 1
      %s218 = scalar_select %p217, %s17, 1
      %s219 = smul.addr %s218, 8
      %s220 = scalar_lea.vmem %s5, %s219
      %p221 = scmp.lt.s32.totalorder %s17, 1
      %s222 = scalar_select %p221, %s17, 1
      %s223 = smul.addr %s222, 2
      %s224 = smul.addr %s223, 4
      %s225 = scalar_lea.vmem %s0, %s224
      %p226 = scmp.lt.s32.totalorder %s17, 1
      %s227 = scalar_select %p226, %s17, 1
      %s228 = smul.addr %s227, 8
      %s229 = scalar_lea.vmem %s4, %s228
      %p230 = scmp.lt.s32.totalorder %s17, 1
      %s231 = scalar_select %p230, %s17, 1
      %s232 = smul.addr %s231, 8
      %s233 = scalar_lea.vmem %s5, %s232
      %v235 = vld [vmem:[%s1] sm:$0xf]
      %v236 = vld [vmem:[%s1 + $0x4] sm:$0xf]
      %v237 = vld [vmem:[%s1 + $0x8] sm:$0xf]
      %v238 = vld [vmem:[%s1 + $0xc] sm:$0xf]
      %v239 = vld [vmem:[%s1 + $0x10] sm:$0xf]
      %v240 = vld [vmem:[%s1 + $0x14] sm:$0xf]
      %v241 = vld [vmem:[%s1 + $0x18] sm:$0xf]
      %v242 = vld [vmem:[%s1 + $0x1c] sm:$0xf]
      %v243 = vld [vmem:[%s1 + $0x20] sm:$0xf]
      %v244 = vld [vmem:[%s1 + $0x24] sm:$0xf]
      %v245 = vld [vmem:[%s1 + $0x28] sm:$0xf]
      %v246 = vld [vmem:[%s1 + $0x2c] sm:$0xf]
      %v247 = vld [vmem:[%s225] sm:$0xf]
      %v248 = vld [vmem:[%s225 + $0x4] sm:$0xf]
      %v261 = vunpack.c.l.b16 %v235
      %v262 = vunpack.c.l.b16 %v236
      %v263 = vunpack.c.l.b16 %v237
      %v264 = vunpack.c.l.b16 %v238
      %v265 = vunpack.c.l.b16 %v239
      %v266 = vunpack.c.l.b16 %v240
      %v267 = vunpack.c.l.b16 %v241
      %v268 = vunpack.c.l.b16 %v242
      %v269 = vunpack.c.l.b16 %v243
      %v270 = vunpack.c.l.b16 %v244
      %v271 = vunpack.c.l.b16 %v245
      %v272 = vunpack.c.l.b16 %v246
      %v273 = vpack.c.b16 %v262, %v261
      %v274 = vpack.c.b16 %v264, %v263
      %v275 = vpack.c.b16 %v266, %v265
      %v276 = vpack.c.b16 %v268, %v267
      %v277 = vpack.c.b16 %v270, %v269
      %v278 = vpack.c.b16 %v272, %v271
      %v281 = vunpack.c.l.b16 %v247
      %v282 = vunpack.c.l.b16 %v248
      %v283 = vpack.c.b16 %v282, %v281
      %vm285 = vcmask 130048
      %v287 = vsel %vm285, %v273, 0
      %v290 = vsel %vm285, %v274, 0
      %v293 = vsel %vm285, %v275, 0
      %v296 = vsel %vm285, %v276, 0
      %v299 = vsel %vm285, %v277, 0
      %v302 = vsel %vm285, %v278, 0
      %304 = vmatprep.subr.bf16.mxu0 0
      %305 = vmatpush1.bf16.msra.mxu0 0
      %306 = vmatprep.subr.bf16.mxu0 0
      %307 = vmatpush1.bf16.msra.mxu0 0
      %308 = vmatprep.subr.bf16.mxu0 0
      %309 = vmatpush1.bf16.msra.mxu0 0
      %310 = vmatprep.subr.bf16.mxu0 0
      %311 = vmatpush1.bf16.msra.mxu0 0
      %312 = vmatprep.subr.bf16.mxu0 0
      %313 = vmatpush1.bf16.msra.mxu0 0
      %314 = vmatprep.subr.bf16.mxu0 0
      %315 = vmatpush1.bf16.msra.mxu0 0
      %316 = vmatprep.subr.bf16.mxu0 0
      %317 = vmatpush1.bf16.msra.mxu0 0
      %318 = vmatprep.subr.bf16.mxu0 0
      %319 = vmatpush1.bf16.msra.mxu0 %v283
      %320 = vmatprep.subr.bf16.mxu0 0
      %321 = vmatpush2.bf16.msra.mxu0 0
      %322 = vmatprep.subr.bf16.mxu0 0
      %323 = vmatpush2.bf16.msra.mxu0 0
      %324 = vmatprep.subr.bf16.mxu0 0
      %325 = vmatpush2.bf16.msra.mxu0 0
      %326 = vmatprep.subr.bf16.mxu0 0
      %327 = vmatpush2.bf16.msra.mxu0 0
      %328 = vmatprep.subr.bf16.mxu0 0
      %329 = vmatpush2.bf16.msra.mxu0 0
      %330 = vmatprep.subr.bf16.mxu0 0
      %331 = vmatpush2.bf16.msra.mxu0 0
      %332 = vmatprep.subr.bf16.mxu0 0
      %333 = vmatpush2.bf16.msra.mxu0 0
      %334 = vmatprep.subr.bf16.mxu0 0
      %335 = vmatpush2.bf16.msra.mxu0 0
      %336 = vmatprep.mubr.bf16.mxu0 0
      %337 = vmatmul.mubr.bf16.gmra.mxu0 %v287
      %v338 = vpop.f32.mrf.mxu0
      %v339 = vadd.f32 0.0, %v338
      %v340 = vpop.f32.mrf.mxu0
      %v341 = vpop.f32.mrf.mxu0
      %v342 = vadd.f32 0.0, %v341
      %v343 = vpop.f32.mrf.mxu0
      %344 = vmatprep.mubr.bf16.mxu0 0
      %345 = vmatmul.mubr.bf16.gmra.mxu0 %v290
      %v346 = vpop.f32.mrf.mxu0
      %v347 = vadd.f32 0.0, %v346
      %v348 = vpop.f32.mrf.mxu0
      %v349 = vpop.f32.mrf.mxu0
      %v350 = vadd.f32 0.0, %v349
      %v351 = vpop.f32.mrf.mxu0
      %352 = vmatprep.mubr.bf16.mxu0 0
      %353 = vmatmul.mubr.bf16.gmra.mxu0 %v293
      %v354 = vpop.f32.mrf.mxu0
      %v355 = vadd.f32 0.0, %v354
      %v356 = vpop.f32.mrf.mxu0
      %v357 = vpop.f32.mrf.mxu0
      %v358 = vadd.f32 0.0, %v357
      %v359 = vpop.f32.mrf.mxu0
      %360 = vmatprep.mubr.bf16.mxu0 0
      %361 = vmatmul.mubr.bf16.gmra.mxu0 %v296
      %v362 = vpop.f32.mrf.mxu0
      %v363 = vadd.f32 0.0, %v362
      %v364 = vpop.f32.mrf.mxu0
      %v365 = vpop.f32.mrf.mxu0
      %v366 = vadd.f32 0.0, %v365
      %v367 = vpop.f32.mrf.mxu0
      %368 = vmatprep.mubr.bf16.mxu0 0
      %369 = vmatmul.mubr.bf16.gmra.mxu0 %v299
      %v370 = vpop.f32.mrf.mxu0
      %v371 = vadd.f32 0.0, %v370
      %v372 = vpop.f32.mrf.mxu0
      %v373 = vpop.f32.mrf.mxu0
      %v374 = vadd.f32 0.0, %v373
      %v375 = vpop.f32.mrf.mxu0
      %376 = vmatprep.mubr.bf16.mxu0 0
      %377 = vmatmul.mubr.bf16.gmra.mxu0 %v302
      %v378 = vpop.f32.mrf.mxu0
      %v379 = vadd.f32 0.0, %v378
      %v380 = vpop.f32.mrf.mxu0
      %v381 = vpop.f32.mrf.mxu0
      %v382 = vadd.f32 0.0, %v381
      %v383 = vpop.f32.mrf.mxu0
      %384 = vdwg.mxu0
      %vm385 = vcmask 457728
      %v386 = vsel %vm385, %v339, 0.0
      %v387 = vsel %vm385, %v342, 0.0
      %390 = vrot.lane.b32.xlu0 %v355, 8
      %v391 = vpop.permute.xlu0 %390
      %392 = vrot.lane.b32.xlu0 %v358, 8
      %v393 = vpop.permute.xlu0 %392
      %vm396 = vcmask 64512
      %v397 = vsel %vm396, 0.0, %v391
      %v398 = vsel %vm396, 0.0, %v393
      %v399 = vadd.f32 %v386, %v397
      %v400 = vadd.f32 %v387, %v398
      %v401 = vld [vmem:[%s3] sm:$0x1]
      %v403 = vlaneseq
      %v404 = vshrl.u32 %v403, 7
      %v405 = vsub.s32 0, %v404
      %v406 = vrot.slane %v401, %v405
      %v408 = vmul.f32 %v363, %v406
      %v409 = vmul.f32 %v366, %v406
      %412 = vrot.lane.b32.xlu0 %v408, 1
      %v413 = vpop.permute.xlu0 %412
      %414 = vrot.lane.b32.xlu0 %v409, 1
      %v415 = vpop.permute.xlu0 %414
      %vm418 = vcmask 7168
      %v419 = vsel %vm418, 0.0, %v413
      %v420 = vsel %vm418, 0.0, %v415
      %vm421 = vcmask 465920
      %v422 = vsel %vm421, %v419, 0.0
      %v423 = vsel %vm421, %v420, 0.0
      %v424 = vadd.f32 %v399, %v422
      %v425 = vadd.f32 %v400, %v423
      %v426 = vmul.f32 %v371, %v406
      %v427 = vmul.f32 %v374, %v406
      %430 = vrot.lane.b32.xlu0 %v426, 1
      %v431 = vpop.permute.xlu0 %430
      %432 = vrot.lane.b32.xlu0 %v427, 1
      %v433 = vpop.permute.xlu0 %432
      %v436 = vsel %vm418, 0.0, %v431
      %v437 = vsel %vm418, 0.0, %v433
      %v438 = vadd.f32 %v347, %v436
      %v439 = vadd.f32 %v350, %v437
      %v440 = vmul.f32 %v379, %v406
      %v441 = vmul.f32 %v382, %v406
      %444 = vrot.lane.b32.xlu0 %v440, 9
      %v445 = vpop.permute.xlu0 %444
      %446 = vrot.lane.b32.xlu0 %v441, 9
      %v447 = vpop.permute.xlu0 %446
      %vm450 = vcmask 72704
      %v451 = vsel %vm450, 0.0, %v445
      %v452 = vsel %vm450, 0.0, %v447
      %v453 = vadd.f32 %v424, %v451
      %v454 = vadd.f32 %v425, %v452
      %v455 = vld [vmem:[%s2] sm:$0xff]
      %457 = vset.pattern.permute.xlu0 0
      %458 = vperm.xlu0 %457, %v455
      %v459 = vpop.permute.xlu0 %458
      %v461 = vadd.f32 %v453, %v459
      %462 = vset.pattern.permute.xlu0 1
      %463 = vperm.xlu0 %462, %v455
      %v464 = vpop.permute.xlu0 %463
      %v466 = vadd.f32 %v454, %v464
      %v467 = vxor.u32 %v466, 2147483648
      %v468 = vmul.f32 %v467, 1.442695
      %v469 = vpow.pop %v468
      %v470 = vadd.f32 %v469, 1.0
      %v471 = vrcp.pop %v470
      %v472 = vmul.f32 1.0, %v471
      %v473 = vmul.f32 %v461, %v472
      %v474 = vadd.f32 %v438, %v459
      %v475 = vadd.f32 %v439, %v464
      %v476 = vxor.u32 %v475, 2147483648
      %v477 = vmul.f32 %v476, 1.442695
      %v478 = vpow.pop %v477
      %v479 = vadd.f32 %v478, 1.0
      %v480 = vrcp.pop %v479
      %v481 = vmul.f32 1.0, %v480
      %v482 = vmul.f32 %v474, %v481
      %vm483 = vcmask 523264
      %v484 = vsel %vm483, %v473, 0.0
      %485 = vadd.xlane.f32.xlu0 %v484
      %v486 = vpop.xlane.xlu0 %485
      %v487 = vsel %vm385, %v482, 0.0
      %488 = vadd.xlane.f32.xlu0 %v487
      %v489 = vpop.xlane.xlu0 %488
      %v490 = vadd.f32 %v486, %v489
      %v491 = vmul.f32 %v473, %v473
      %v492 = vsel %vm483, %v491, 0.0
      %493 = vadd.xlane.f32.xlu0 %v492
      %v494 = vpop.xlane.xlu0 %493
      %v495 = vmul.f32 %v482, %v482
      %v496 = vsel %vm385, %v495, 0.0
      %497 = vadd.xlane.f32.xlu0 %v496
      %v498 = vpop.xlane.xlu0 %497
      %v499 = vadd.f32 %v494, %v498
      %v500 = vmul.f32 %v490, 0.008333334
      %v501 = vmul.f32 %v499, 0.008333334
      %v502 = vmul.f32 %v500, %v500
      %v503 = vsub.f32 %v501, %v502
      %v504 = vmax.f32 %v503, 0.0
      %v505 = vadd.f32 %v504, 1e-05
      %v506 = vrsqrt.pop %v505
      %v507 = vmul.f32 %v506, %v455
      %v508 = vmul.f32 %v500, %v507
      %510 = vrot.lane.b32.xlu0 %v508, 1
      %v511 = vpop.permute.xlu0 %510
      %v513 = vsub.f32 %v455, %v511
      %515 = vset.pattern.permute.xlu0 2
      %516 = vperm.xlu0 %515, %v507
      %v517 = vpop.permute.xlu0 %516
      %v519 = vmul.f32 %v473, %v517
      %521 = vset.pattern.permute.xlu0 3
      %522 = vperm.xlu0 %521, %v513
      %v523 = vpop.permute.xlu0 %522
      %v525 = vadd.f32 %v519, %v523
      %v526 = vmul.f32 %v482, %v517
      %v527 = vadd.f32 %v526, %v523
      %vm528 = vcmp.ge.f32.partialorder %v525, 0.0
      %529 = vset.pattern.permute.xlu0 4
      %530 = vperm.xlu0 %529, %v455
      %v531 = vpop.permute.xlu0 %530
      %v533 = vmul.f32 %v531, %v525
      %v534 = vsel %vm528, %v525, %v533
      %vm535 = vcmp.ge.f32.partialorder %v527, 0.0
      %v536 = vmul.f32 %v531, %v527
      %v537 = vsel %vm535, %v527, %v536
      %538 = vst.msk [vmem:[%s229] sm:$0xff] %vm483, %v534
      %539 = vst.msk [vmem:[%s233] sm:$0xff] %vm385, %v537
      %p540 = scmp.lt.s32.totalorder %s17, 1
      %s541 = scalar_select %p540, %s17, 1
      %s542 = smul.addr %s541, 8
      %s543 = scalar_lea.vmem %s4, %s542
      %p544 = scmp.lt.s32.totalorder %s17, 1
      %s545 = scalar_select %p544, %s17, 1
      %s546 = smul.addr %s545, 8
      %s547 = scalar_lea.vmem %s5, %s546
      // Predicated region
      $region37: #{unet_decoder_pallas.6} parent=35 // pred_check
        %p548 = pneg %p124
      $region38: #{unet_decoder_pallas.6} parent=35 // pred_check_branch
        %550 = sbr.rel (%p548) target = $region40
      $region39: #{unet_decoder_pallas.6} parent=35 // pred_region
        _
      $region40: #{unet_decoder_pallas.6} parent=35 // pred_fallthru
        _
      // Predicated region
      $region41: #{unet_decoder_pallas.6} parent=35 // pred_check
        %p551 = pneg %p150
      $region42: #{unet_decoder_pallas.6} parent=35 // pred_check_branch
        %553 = sbr.rel (%p551) target = $region44
      $region43: #{unet_decoder_pallas.6} parent=35 // pred_region
        _
      $region44: #{unet_decoder_pallas.6} parent=35 // pred_fallthru
        _
    $region36: #{unet_decoder_pallas.6} parent=5 // pred_fallthru
      _
    %p554 = scmp.le.s32.totalorder 2, %s12
    // Predicated region
    $region45: #{unet_decoder_pallas.6} parent=5 // pred_check
      %p555 = pneg %p554
    $region46: #{unet_decoder_pallas.6} parent=5 // pred_check_branch
      %557 = sbr.rel (%p555) target = $region48
    $region47: #{unet_decoder_pallas.6} parent=5 // pred_region
      %s558 = ssub.s32 %s12, 2
      // Predicated region
      $region49: #{unet_decoder_pallas.6} parent=47 // pred_check
        %p559 = pneg %p130
      $region50: #{unet_decoder_pallas.6} parent=47 // pred_check_branch
        %561 = sbr.rel (%p559) target = $region52
      $region51: #{unet_decoder_pallas.6} parent=47 // pred_region
        %p562 = scmp.lt.s32.totalorder %s18, 1
        %s563 = scalar_select %p562, %s18, 1
        %s564 = smul.addr %s563, 8
        %s565 = scalar_lea.vmem %s4, %s564
      $region52: #{unet_decoder_pallas.6} parent=47 // pred_fallthru
        _
      // Predicated region
      $region53: #{unet_decoder_pallas.6} parent=47 // pred_check
        %p566 = pneg %p156
      $region54: #{unet_decoder_pallas.6} parent=47 // pred_check_branch
        %568 = sbr.rel (%p566) target = $region56
      $region55: #{unet_decoder_pallas.6} parent=47 // pred_region
        %p569 = scmp.lt.s32.totalorder %s18, 1
        %s570 = scalar_select %p569, %s18, 1
        %s571 = smul.addr %s570, 8
        %s572 = scalar_lea.vmem %s5, %s571
      $region56: #{unet_decoder_pallas.6} parent=47 // pred_fallthru
        _
    $region48: #{unet_decoder_pallas.6} parent=5 // pred_fallthru
      _
  $region6: #{unet_decoder_pallas.6} parent=0 // loop_footer
    %s16 = sadd.s32 1, %s12
  $region7: #{unet_decoder_pallas.6} parent=0 // loop_footer_branch
    %11 = sbr.rel target = $region3
  $region8: #{unet_decoder_pallas.6} parent=0 // loop_exit
    _

// kernel: unet_decoder_pallas.7
$region0: #{unet_decoder_pallas.7}
  #allocation0 [shape = 'u32[]', space=smem, size = 0x4, offset = 0x4, fixed_abs, tag = 'smem constant byte address 0x4 - core index']
  #allocation1 [shape = 'u32[144,128]{1,0:T(1,128)}', space=vmem, size = 0x12000, scoped, tag = 'internal scratch']
  %s0 = inlined_call_operand.vmem [shape: bf16[2,16,120], index: 0, kind: input, shape index: {}]
  %s1 = inlined_call_operand.vmem [shape: bf16[96,16], index: 1, kind: input, shape index: {}]
  %s2 = inlined_call_operand.vmem [shape: f32[8,5], index: 2, kind: input, shape index: {}]
  %s3 = inlined_call_operand.vmem [shape: f32[1,120], index: 3, kind: input, shape index: {}]
  %s4 = inlined_call_operand.vmem [shape: f32[2,8,128], index: 4, kind: output, shape index: {0}]
  %s5 = inlined_call_operand.vmem [shape: f32[2,8,120], index: 5, kind: output, shape index: {1}]
  %6 = xla_tuple %s4, %s5
  %s7 = sld [smem:[#allocation0]]
  $region57: #{unet_decoder_pallas.7} parent=0
    _
  %s9 = ssub.s32 1, %s7
  %s10 = scalar_select 0, %s9, %s7
  loop: start=0, step=1, limit=4
  $region2: #{unet_decoder_pallas.7} parent=0 // loop_pre_header
    _
  $region3: #{unet_decoder_pallas.7} parent=0 // loop_header
    %s12 = sphi 0, %s16
    %p13 = scmp.ge.s32.totalorder %s12, 4
    %s22 = sphi 0, %s24
    %s25 = sphi 0, %s22
    %s26 = sphi 0, %s25
    %s42 = sphi 0, %s26
    %s46 = sphi 0, %s46
    %s48 = sphi 0, %s46
    %s49 = sphi 0, %s48
    %s63 = sphi 0, %s49
    %s67 = sphi 0, %s67
    %s69 = sphi 0, %s67
    %s70 = sphi 0, %s69
    %s84 = sphi 0, %s70
    %s88 = sphi 0, %s88
    %s90 = sphi 0, %s88
    %s91 = sphi 0, %s90
    %s105 = sphi 0, %s91
    %s111 = sphi 0, %s113
    %s114 = sphi 0, %s111
    %s115 = sphi 0, %s114
    %s131 = sphi 0, %s115
    %s137 = sphi 0, %s139
    %s140 = sphi 0, %s137
    %s141 = sphi 0, %s140
    %s157 = sphi 0, %s141
  $region4: #{unet_decoder_pallas.7} parent=0 // loop_header_branch
    %15 = sbr.rel (%p13) target = $region8
  $region5: #{unet_decoder_pallas.7} parent=0 // loop_body
    %s17 = ssub.s32 %s12, 1
    %s18 = ssub.s32 %s12, 2
    %s19 = sadd.s32 %s12, 1
    %s20 = ssub.s32 %s12, %s19
    %p21 = scmp.eq.s32.totalorder %s20, 0
    %s23 = sadd.s32 %s22, 1
    %s24 = scalar_select %p21, %s22, %s23
    %p27 = pneg %p21
    %p28 = scmp.eq.s32.totalorder %s12, 1
    %p29 = por %p27, %p28
    %p30 = scmp.ne.s32.totalorder %s22, %s25
    %p31 = scmp.eq.s32.totalorder %s12, 0
    %p32 = por %p30, %p31
    %p33 = scmp.ne.s32.totalorder %s22, %s25
    %p34 = scmp.eq.s32.totalorder %s17, 1
    %p35 = por %p33, %p34
    %p36 = scmp.ne.s32.totalorder %s25, %s26
    %p37 = scmp.eq.s32.totalorder %s17, 0
    %p38 = por %p36, %p37
    %p39 = scmp.ne.s32.totalorder %s25, %s26
    %p40 = scmp.eq.s32.totalorder %s18, 1
    %p41 = por %p39, %p40
    %p43 = scmp.ne.s32.totalorder %s26, %s42
    %p44 = scmp.eq.s32.totalorder %s18, 0
    %p45 = por %p43, %p44
    %s47 = sadd.s32 %s46, 1
    %p50 = scmp.eq.s32.totalorder %s12, 1
    %p51 = scmp.ne.s32.totalorder %s46, %s48
    %p52 = scmp.eq.s32.totalorder %s12, 0
    %p53 = por %p51, %p52
    %p54 = scmp.ne.s32.totalorder %s46, %s48
    %p55 = scmp.eq.s32.totalorder %s17, 1
    %p56 = por %p54, %p55
    %p57 = scmp.ne.s32.totalorder %s48, %s49
    %p58 = scmp.eq.s32.totalorder %s17, 0
    %p59 = por %p57, %p58
    %p60 = scmp.ne.s32.totalorder %s48, %s49
    %p61 = scmp.eq.s32.totalorder %s18, 1
    %p62 = por %p60, %p61
    %p64 = scmp.ne.s32.totalorder %s49, %s63
    %p65 = scmp.eq.s32.totalorder %s18, 0
    %p66 = por %p64, %p65
    %s68 = sadd.s32 %s67, 1
    %p71 = scmp.eq.s32.totalorder %s12, 1
    %p72 = scmp.ne.s32.totalorder %s67, %s69
    %p73 = scmp.eq.s32.totalorder %s12, 0
    %p74 = por %p72, %p73
    %p75 = scmp.ne.s32.totalorder %s67, %s69
    %p76 = scmp.eq.s32.totalorder %s17, 1
    %p77 = por %p75, %p76
    %p78 = scmp.ne.s32.totalorder %s69, %s70
    %p79 = scmp.eq.s32.totalorder %s17, 0
    %p80 = por %p78, %p79
    %p81 = scmp.ne.s32.totalorder %s69, %s70
    %p82 = scmp.eq.s32.totalorder %s18, 1
    %p83 = por %p81, %p82
    %p85 = scmp.ne.s32.totalorder %s70, %s84
    %p86 = scmp.eq.s32.totalorder %s18, 0
    %p87 = por %p85, %p86
    %s89 = sadd.s32 %s88, 1
    %p92 = scmp.eq.s32.totalorder %s12, 1
    %p93 = scmp.ne.s32.totalorder %s88, %s90
    %p94 = scmp.eq.s32.totalorder %s12, 0
    %p95 = por %p93, %p94
    %p96 = scmp.ne.s32.totalorder %s88, %s90
    %p97 = scmp.eq.s32.totalorder %s17, 1
    %p98 = por %p96, %p97
    %p99 = scmp.ne.s32.totalorder %s90, %s91
    %p100 = scmp.eq.s32.totalorder %s17, 0
    %p101 = por %p99, %p100
    %p102 = scmp.ne.s32.totalorder %s90, %s91
    %p103 = scmp.eq.s32.totalorder %s18, 1
    %p104 = por %p102, %p103
    %p106 = scmp.ne.s32.totalorder %s91, %s105
    %p107 = scmp.eq.s32.totalorder %s18, 0
    %p108 = por %p106, %p107
    %s109 = ssub.s32 %s12, %s19
    %p110 = scmp.eq.s32.totalorder %s109, 0
    %s112 = sadd.s32 %s111, 1
    %s113 = scalar_select %p110, %s111, %s112
    %p116 = pneg %p110
    %p117 = scmp.eq.s32.totalorder %s12, 1
    %p118 = por %p116, %p117
    %p119 = scmp.ne.s32.totalorder %s111, %s114
    %p120 = scmp.eq.s32.totalorder %s12, 0
    %p121 = por %p119, %p120
    %p122 = scmp.ne.s32.totalorder %s111, %s114
    %p123 = scmp.eq.s32.totalorder %s17, 1
    %p124 = por %p122, %p123
    %p125 = scmp.ne.s32.totalorder %s114, %s115
    %p126 = scmp.eq.s32.totalorder %s17, 0
    %p127 = por %p125, %p126
    %p128 = scmp.ne.s32.totalorder %s114, %s115
    %p129 = scmp.eq.s32.totalorder %s18, 1
    %p130 = por %p128, %p129
    %p132 = scmp.ne.s32.totalorder %s115, %s131
    %p133 = scmp.eq.s32.totalorder %s18, 0
    %p134 = por %p132, %p133
    %s135 = ssub.s32 %s12, %s19
    %p136 = scmp.eq.s32.totalorder %s135, 0
    %s138 = sadd.s32 %s137, 1
    %s139 = scalar_select %p136, %s137, %s138
    %p142 = pneg %p136
    %p143 = scmp.eq.s32.totalorder %s12, 1
    %p144 = por %p142, %p143
    %p145 = scmp.ne.s32.totalorder %s137, %s140
    %p146 = scmp.eq.s32.totalorder %s12, 0
    %p147 = por %p145, %p146
    %p148 = scmp.ne.s32.totalorder %s137, %s140
    %p149 = scmp.eq.s32.totalorder %s17, 1
    %p150 = por %p148, %p149
    %p151 = scmp.ne.s32.totalorder %s140, %s141
    %p152 = scmp.eq.s32.totalorder %s17, 0
    %p153 = por %p151, %p152
    %p154 = scmp.ne.s32.totalorder %s140, %s141
    %p155 = scmp.eq.s32.totalorder %s18, 1
    %p156 = por %p154, %p155
    %p158 = scmp.ne.s32.totalorder %s141, %s157
    %p159 = scmp.eq.s32.totalorder %s18, 0
    %p160 = por %p158, %p159
    %p161 = scmp.le.s32.totalorder 1, %s12
    %p162 = scmp.lt.s32.totalorder %s12, 3
    %p163 = pnand %p161, %p162
    %p164 = pneg %p163
    // Predicated region
    $region9: #{unet_decoder_pallas.7} parent=5 // pred_check
      _
    $region10: #{unet_decoder_pallas.7} parent=5 // pred_check_branch
      %166 = sbr.rel (%p163) target = $region12
    $region11: #{unet_decoder_pallas.7} parent=5 // pred_region
      %s167 = ssub.s32 %s12, 1
      // Predicated region
      $region13: #{unet_decoder_pallas.7} parent=11 // pred_check
        %p168 = pneg %p59
      $region14: #{unet_decoder_pallas.7} parent=11 // pred_check_branch
        %170 = sbr.rel (%p168) target = $region16
      $region15: #{unet_decoder_pallas.7} parent=11 // pred_region
        _
      $region16: #{unet_decoder_pallas.7} parent=11 // pred_fallthru
        _
      // Predicated region
      $region17: #{unet_decoder_pallas.7} parent=11 // pred_check
        %p171 = pneg %p80
      $region18: #{unet_decoder_pallas.7} parent=11 // pred_check_branch
        %173 = sbr.rel (%p171) target = $region20
      $region19: #{unet_decoder_pallas.7} parent=11 // pred_region
        _
      $region20: #{unet_decoder_pallas.7} parent=11 // pred_fallthru
        _
      // Predicated region
      $region21: #{unet_decoder_pallas.7} parent=11 // pred_check
        %p174 = pneg %p101
      $region22: #{unet_decoder_pallas.7} parent=11 // pred_check_branch
        %176 = sbr.rel (%p174) target = $region24
      $region23: #{unet_decoder_pallas.7} parent=11 // pred_region
        _
      $region24: #{unet_decoder_pallas.7} parent=11 // pred_fallthru
        _
    $region12: #{unet_decoder_pallas.7} parent=5 // pred_fallthru
      _
    %p177 = scmp.lt.s32.totalorder %s12, 2
    // Predicated region
    $region25: #{unet_decoder_pallas.7} parent=5 // pred_check
      %p178 = pneg %p177
    $region26: #{unet_decoder_pallas.7} parent=5 // pred_check_branch
      %180 = sbr.rel (%p178) target = $region28
    $region27: #{unet_decoder_pallas.7} parent=5 // pred_region
      // Predicated region
      $region29: #{unet_decoder_pallas.7} parent=27 // pred_check
        %p181 = pneg %p32
      $region30: #{unet_decoder_pallas.7} parent=27 // pred_check_branch
        %183 = sbr.rel (%p181) target = $region32
      $region31: #{unet_decoder_pallas.7} parent=27 // pred_region
        %p184 = scmp.lt.s32.totalorder %s12, 1
        %s185 = scalar_select %p184, %s12, 1
        %s186 = smul.addr %s185, 2
        %s187 = smul.addr %s186, 4
        %s188 = scalar_lea.vmem %s0, %s187
      $region32: #{unet_decoder_pallas.7} parent=27 // pred_fallthru
        _
    $region28: #{unet_decoder_pallas.7} parent=5 // pred_fallthru
      _
    %p189 = scmp.le.s32.totalorder 1, %s12
    %p190 = scmp.lt.s32.totalorder %s12, 3
    %p191 = pnand %p189, %p190
    %p192 = pneg %p191
    // Predicated region
    $region33: #{unet_decoder_pallas.7} parent=5 // pred_check
      _
    $region34: #{unet_decoder_pallas.7} parent=5 // pred_check_branch
      %194 = sbr.rel (%p191) target = $region36
    $region35: #{unet_decoder_pallas.7} parent=5 // pred_region
      %s195 = ssub.s32 %s12, 1
      %p196 = scmp.lt.s32.totalorder %s17, 1
      %s197 = scalar_select %p196, %s17, 1
      %s198 = smul.addr %s197, 2
      %s199 = smul.addr %s198, 4
      %s200 = scalar_lea.vmem %s0, %s199
      %p201 = pneg %p38
      %p202 = pneg %p35
      %p203 = pneg %p59
      %p204 = pneg %p56
      %p205 = pneg %p80
      %p206 = pneg %p77
      %p207 = pneg %p101
      %p208 = pneg %p98
      %p209 = pneg %p127
      %p210 = pneg %p124
      %p211 = scmp.lt.s32.totalorder %s17, 1
      %s212 = scalar_select %p211, %s17, 1
      %s213 = smul.addr %s212, 8
      %s214 = scalar_lea.vmem %s4, %s213
      %p215 = pneg %p153
      %p216 = pneg %p150
      %p217 = scmp.lt.s32.totalorder %s17, 1
      %s218 = scalar_select %p217, %s17, 1
      %s219 = smul.addr %s218, 8
      %s220 = scalar_lea.vmem %s5, %s219
      %p221 = scmp.lt.s32.totalorder %s17, 1
      %s222 = scalar_select %p221, %s17, 1
      %s223 = smul.addr %s222, 2
      %s224 = smul.addr %s223, 4
      %s225 = scalar_lea.vmem %s0, %s224
      %p226 = scmp.lt.s32.totalorder %s17, 1
      %s227 = scalar_select %p226, %s17, 1
      %s228 = smul.addr %s227, 8
      %s229 = scalar_lea.vmem %s4, %s228
      %p230 = scmp.lt.s32.totalorder %s17, 1
      %s231 = scalar_select %p230, %s17, 1
      %s232 = smul.addr %s231, 8
      %s233 = scalar_lea.vmem %s5, %s232
      %v235 = vld [vmem:[%s1] sm:$0xf]
      %v236 = vld [vmem:[%s1 + $0x4] sm:$0xf]
      %v237 = vld [vmem:[%s1 + $0x8] sm:$0xf]
      %v238 = vld [vmem:[%s1 + $0xc] sm:$0xf]
      %v239 = vld [vmem:[%s1 + $0x10] sm:$0xf]
      %v240 = vld [vmem:[%s1 + $0x14] sm:$0xf]
      %v241 = vld [vmem:[%s1 + $0x18] sm:$0xf]
      %v242 = vld [vmem:[%s1 + $0x1c] sm:$0xf]
      %v243 = vld [vmem:[%s1 + $0x20] sm:$0xf]
      %v244 = vld [vmem:[%s1 + $0x24] sm:$0xf]
      %v245 = vld [vmem:[%s1 + $0x28] sm:$0xf]
      %v246 = vld [vmem:[%s1 + $0x2c] sm:$0xf]
      %v247 = vld [vmem:[%s225] sm:$0xf]
      %v248 = vld [vmem:[%s225 + $0x4] sm:$0xf]
      %v261 = vunpack.c.l.b16 %v235
      %v262 = vunpack.c.l.b16 %v236
      %v263 = vunpack.c.l.b16 %v237
      %v264 = vunpack.c.l.b16 %v238
      %v265 = vunpack.c.l.b16 %v239
      %v266 = vunpack.c.l.b16 %v240
      %v267 = vunpack.c.l.b16 %v241
      %v268 = vunpack.c.l.b16 %v242
      %v269 = vunpack.c.l.b16 %v243
      %v270 = vunpack.c.l.b16 %v244
      %v271 = vunpack.c.l.b16 %v245
      %v272 = vunpack.c.l.b16 %v246
      %v273 = vpack.c.b16 %v262, %v261
      %v274 = vpack.c.b16 %v264, %v263
      %v275 = vpack.c.b16 %v266, %v265
      %v276 = vpack.c.b16 %v268, %v267
      %v277 = vpack.c.b16 %v270, %v269
      %v278 = vpack.c.b16 %v272, %v271
      %v281 = vunpack.c.l.b16 %v247
      %v282 = vunpack.c.l.b16 %v248
      %v283 = vpack.c.b16 %v282, %v281
      %vm285 = vcmask 130048
      %v287 = vsel %vm285, %v273, 0
      %v290 = vsel %vm285, %v274, 0
      %v293 = vsel %vm285, %v275, 0
      %v296 = vsel %vm285, %v276, 0
      %v299 = vsel %vm285, %v277, 0
      %v302 = vsel %vm285, %v278, 0
      %304 = vmatprep.subr.bf16.mxu0 0
      %305 = vmatpush1.bf16.msra.mxu0 0
      %306 = vmatprep.subr.bf16.mxu0 0
      %307 = vmatpush1.bf16.msra.mxu0 0
      %308 = vmatprep.subr.bf16.mxu0 0
      %309 = vmatpush1.bf16.msra.mxu0 0
      %310 = vmatprep.subr.bf16.mxu0 0
      %311 = vmatpush1.bf16.msra.mxu0 0
      %312 = vmatprep.subr.bf16.mxu0 0
      %313 = vmatpush1.bf16.msra.mxu0 0
      %314 = vmatprep.subr.bf16.mxu0 0
      %315 = vmatpush1.bf16.msra.mxu0 0
      %316 = vmatprep.subr.bf16.mxu0 0
      %317 = vmatpush1.bf16.msra.mxu0 0
      %318 = vmatprep.subr.bf16.mxu0 0
      %319 = vmatpush1.bf16.msra.mxu0 %v283
      %320 = vmatprep.subr.bf16.mxu0 0
      %321 = vmatpush2.bf16.msra.mxu0 0
      %322 = vmatprep.subr.bf16.mxu0 0
      %323 = vmatpush2.bf16.msra.mxu0 0
      %324 = vmatprep.subr.bf16.mxu0 0
      %325 = vmatpush2.bf16.msra.mxu0 0
      %326 = vmatprep.subr.bf16.mxu0 0
      %327 = vmatpush2.bf16.msra.mxu0 0
      %328 = vmatprep.subr.bf16.mxu0 0
      %329 = vmatpush2.bf16.msra.mxu0 0
      %330 = vmatprep.subr.bf16.mxu0 0
      %331 = vmatpush2.bf16.msra.mxu0 0
      %332 = vmatprep.subr.bf16.mxu0 0
      %333 = vmatpush2.bf16.msra.mxu0 0
      %334 = vmatprep.subr.bf16.mxu0 0
      %335 = vmatpush2.bf16.msra.mxu0 0
      %336 = vmatprep.mubr.bf16.mxu0 0
      %337 = vmatmul.mubr.bf16.gmra.mxu0 %v287
      %v338 = vpop.f32.mrf.mxu0
      %v339 = vadd.f32 0.0, %v338
      %v340 = vpop.f32.mrf.mxu0
      %v341 = vpop.f32.mrf.mxu0
      %v342 = vadd.f32 0.0, %v341
      %v343 = vpop.f32.mrf.mxu0
      %344 = vmatprep.mubr.bf16.mxu0 0
      %345 = vmatmul.mubr.bf16.gmra.mxu0 %v290
      %v346 = vpop.f32.mrf.mxu0
      %v347 = vadd.f32 0.0, %v346
      %v348 = vpop.f32.mrf.mxu0
      %v349 = vpop.f32.mrf.mxu0
      %v350 = vadd.f32 0.0, %v349
      %v351 = vpop.f32.mrf.mxu0
      %352 = vmatprep.mubr.bf16.mxu0 0
      %353 = vmatmul.mubr.bf16.gmra.mxu0 %v293
      %v354 = vpop.f32.mrf.mxu0
      %v355 = vadd.f32 0.0, %v354
      %v356 = vpop.f32.mrf.mxu0
      %v357 = vpop.f32.mrf.mxu0
      %v358 = vadd.f32 0.0, %v357
      %v359 = vpop.f32.mrf.mxu0
      %360 = vmatprep.mubr.bf16.mxu0 0
      %361 = vmatmul.mubr.bf16.gmra.mxu0 %v296
      %v362 = vpop.f32.mrf.mxu0
      %v363 = vadd.f32 0.0, %v362
      %v364 = vpop.f32.mrf.mxu0
      %v365 = vpop.f32.mrf.mxu0
      %v366 = vadd.f32 0.0, %v365
      %v367 = vpop.f32.mrf.mxu0
      %368 = vmatprep.mubr.bf16.mxu0 0
      %369 = vmatmul.mubr.bf16.gmra.mxu0 %v299
      %v370 = vpop.f32.mrf.mxu0
      %v371 = vadd.f32 0.0, %v370
      %v372 = vpop.f32.mrf.mxu0
      %v373 = vpop.f32.mrf.mxu0
      %v374 = vadd.f32 0.0, %v373
      %v375 = vpop.f32.mrf.mxu0
      %376 = vmatprep.mubr.bf16.mxu0 0
      %377 = vmatmul.mubr.bf16.gmra.mxu0 %v302
      %v378 = vpop.f32.mrf.mxu0
      %v379 = vadd.f32 0.0, %v378
      %v380 = vpop.f32.mrf.mxu0
      %v381 = vpop.f32.mrf.mxu0
      %v382 = vadd.f32 0.0, %v381
      %v383 = vpop.f32.mrf.mxu0
      %384 = vdwg.mxu0
      %vm385 = vcmask 982016
      %v386 = vsel %vm385, %v339, 0.0
      %v387 = vsel %vm385, %v342, 0.0
      %390 = vrot.lane.b32.xlu0 %v355, 8
      %v391 = vpop.permute.xlu0 %390
      %392 = vrot.lane.b32.xlu0 %v358, 8
      %v393 = vpop.permute.xlu0 %392
      %vm396 = vcmask 64512
      %v397 = vsel %vm396, 0.0, %v391
      %v398 = vsel %vm396, 0.0, %v393
      %v399 = vadd.f32 %v386, %v397
      %v400 = vadd.f32 %v387, %v398
      %v401 = vld [vmem:[%s3] sm:$0x1]
      %v403 = vlaneseq
      %v404 = vshrl.u32 %v403, 7
      %v405 = vsub.s32 0, %v404
      %v406 = vrot.slane %v401, %v405
      %v408 = vmul.f32 %v363, %v406
      %v409 = vmul.f32 %v366, %v406
      %412 = vrot.lane.b32.xlu0 %v408, 1
      %v413 = vpop.permute.xlu0 %412
      %414 = vrot.lane.b32.xlu0 %v409, 1
      %v415 = vpop.permute.xlu0 %414
      %vm418 = vcmask 7168
      %v419 = vsel %vm418, 0.0, %v413
      %v420 = vsel %vm418, 0.0, %v415
      %vm421 = vcmask 990208
      %v422 = vsel %vm421, %v419, 0.0
      %v423 = vsel %vm421, %v420, 0.0
      %v424 = vadd.f32 %v399, %v422
      %v425 = vadd.f32 %v400, %v423
      %v426 = vmul.f32 %v371, %v406
      %v427 = vmul.f32 %v374, %v406
      %430 = vrot.lane.b32.xlu0 %v426, 1
      %v431 = vpop.permute.xlu0 %430
      %432 = vrot.lane.b32.xlu0 %v427, 1
      %v433 = vpop.permute.xlu0 %432
      %v436 = vsel %vm418, 0.0, %v431
      %v437 = vsel %vm418, 0.0, %v433
      %v438 = vadd.f32 %v347, %v436
      %v439 = vadd.f32 %v350, %v437
      %v440 = vmul.f32 %v379, %v406
      %v441 = vmul.f32 %v382, %v406
      %444 = vrot.lane.b32.xlu0 %v440, 9
      %v445 = vpop.permute.xlu0 %444
      %446 = vrot.lane.b32.xlu0 %v441, 9
      %v447 = vpop.permute.xlu0 %446
      %vm450 = vcmask 72704
      %v451 = vsel %vm450, 0.0, %v445
      %v452 = vsel %vm450, 0.0, %v447
      %v453 = vadd.f32 %v424, %v451
      %v454 = vadd.f32 %v425, %v452
      %v455 = vld [vmem:[%s2] sm:$0xff]
      %457 = vset.pattern.permute.xlu0 0
      %458 = vperm.xlu0 %457, %v455
      %v459 = vpop.permute.xlu0 %458
      %v461 = vadd.f32 %v453, %v459
      %462 = vset.pattern.permute.xlu0 1
      %463 = vperm.xlu0 %462, %v455
      %v464 = vpop.permute.xlu0 %463
      %v466 = vadd.f32 %v454, %v464
      %v467 = vxor.u32 %v466, 2147483648
      %v468 = vmul.f32 %v467, 1.442695
      %v469 = vpow.pop %v468
      %v470 = vadd.f32 %v469, 1.0
      %v471 = vrcp.pop %v470
      %v472 = vmul.f32 1.0, %v471
      %v473 = vmul.f32 %v461, %v472
      %v474 = vadd.f32 %v438, %v459
      %v475 = vadd.f32 %v439, %v464
      %v476 = vxor.u32 %v475, 2147483648
      %v477 = vmul.f32 %v476, 1.442695
      %v478 = vpow.pop %v477
      %v479 = vadd.f32 %v478, 1.0
      %v480 = vrcp.pop %v479
      %v481 = vmul.f32 1.0, %v480
      %v482 = vmul.f32 %v474, %v481
      %483 = vadd.xlane.f32.xlu0 %v473
      %v484 = vpop.xlane.xlu0 %483
      %v485 = vsel %vm385, %v482, 0.0
      %486 = vadd.xlane.f32.xlu0 %v485
      %v487 = vpop.xlane.xlu0 %486
      %v488 = vadd.f32 %v484, %v487
      %v489 = vmul.f32 %v473, %v473
      %490 = vadd.xlane.f32.xlu0 %v489
      %v491 = vpop.xlane.xlu0 %490
      %v492 = vmul.f32 %v482, %v482
      %v493 = vsel %vm385, %v492, 0.0
      %494 = vadd.xlane.f32.xlu0 %v493
      %v495 = vpop.xlane.xlu0 %494
      %v496 = vadd.f32 %v491, %v495
      %v497 = vmul.f32 %v488, 0.004032258
      %v498 = vmul.f32 %v496, 0.004032258
      %v499 = vmul.f32 %v497, %v497
      %v500 = vsub.f32 %v498, %v499
      %v501 = vmax.f32 %v500, 0.0
      %v502 = vadd.f32 %v501, 1e-05
      %v503 = vrsqrt.pop %v502
      %v504 = vmul.f32 %v503, %v455
      %v505 = vmul.f32 %v497, %v504
      %507 = vrot.lane.b32.xlu0 %v505, 1
      %v508 = vpop.permute.xlu0 %507
      %v510 = vsub.f32 %v455, %v508
      %512 = vset.pattern.permute.xlu0 2
      %513 = vperm.xlu0 %512, %v504
      %v514 = vpop.permute.xlu0 %513
      %v516 = vmul.f32 %v473, %v514
      %518 = vset.pattern.permute.xlu0 3
      %519 = vperm.xlu0 %518, %v510
      %v520 = vpop.permute.xlu0 %519
      %v522 = vadd.f32 %v516, %v520
      %v523 = vmul.f32 %v482, %v514
      %v524 = vadd.f32 %v523, %v520
      %vm525 = vcmp.ge.f32.partialorder %v522, 0.0
      %526 = vset.pattern.permute.xlu0 4
      %527 = vperm.xlu0 %526, %v455
      %v528 = vpop.permute.xlu0 %527
      %v530 = vmul.f32 %v528, %v522
      %v531 = vsel %vm525, %v522, %v530
      %vm532 = vcmp.ge.f32.partialorder %v524, 0.0
      %v533 = vmul.f32 %v528, %v524
      %v534 = vsel %vm532, %v524, %v533
      %535 = vst [vmem:[%s229] sm:$0xff] %v531
      %536 = vst.msk [vmem:[%s233] sm:$0xff] %vm385, %v534
      %p537 = scmp.lt.s32.totalorder %s17, 1
      %s538 = scalar_select %p537, %s17, 1
      %s539 = smul.addr %s538, 8
      %s540 = scalar_lea.vmem %s4, %s539
      %p541 = scmp.lt.s32.totalorder %s17, 1
      %s542 = scalar_select %p541, %s17, 1
      %s543 = smul.addr %s542, 8
      %s544 = scalar_lea.vmem %s5, %s543
      // Predicated region
      $region37: #{unet_decoder_pallas.7} parent=35 // pred_check
        %p545 = pneg %p124
      $region38: #{unet_decoder_pallas.7} parent=35 // pred_check_branch
        %547 = sbr.rel (%p545) target = $region40
      $region39: #{unet_decoder_pallas.7} parent=35 // pred_region
        _
      $region40: #{unet_decoder_pallas.7} parent=35 // pred_fallthru
        _
      // Predicated region
      $region41: #{unet_decoder_pallas.7} parent=35 // pred_check
        %p548 = pneg %p150
      $region42: #{unet_decoder_pallas.7} parent=35 // pred_check_branch
        %550 = sbr.rel (%p548) target = $region44
      $region43: #{unet_decoder_pallas.7} parent=35 // pred_region
        _
      $region44: #{unet_decoder_pallas.7} parent=35 // pred_fallthru
        _
    $region36: #{unet_decoder_pallas.7} parent=5 // pred_fallthru
      _
    %p551 = scmp.le.s32.totalorder 2, %s12
    // Predicated region
    $region45: #{unet_decoder_pallas.7} parent=5 // pred_check
      %p552 = pneg %p551
    $region46: #{unet_decoder_pallas.7} parent=5 // pred_check_branch
      %554 = sbr.rel (%p552) target = $region48
    $region47: #{unet_decoder_pallas.7} parent=5 // pred_region
      %s555 = ssub.s32 %s12, 2
      // Predicated region
      $region49: #{unet_decoder_pallas.7} parent=47 // pred_check
        %p556 = pneg %p130
      $region50: #{unet_decoder_pallas.7} parent=47 // pred_check_branch
        %558 = sbr.rel (%p556) target = $region52
      $region51: #{unet_decoder_pallas.7} parent=47 // pred_region
        %p559 = scmp.lt.s32.totalorder %s18, 1
        %s560 = scalar_select %p559, %s18, 1
        %s561 = smul.addr %s560, 8
        %s562 = scalar_lea.vmem %s4, %s561
      $region52: #{unet_decoder_pallas.7} parent=47 // pred_fallthru
        _
      // Predicated region
      $region53: #{unet_decoder_pallas.7} parent=47 // pred_check
        %p563 = pneg %p156
      $region54: #{unet_decoder_pallas.7} parent=47 // pred_check_branch
        %565 = sbr.rel (%p563) target = $region56
      $region55: #{unet_decoder_pallas.7} parent=47 // pred_region
        %p566 = scmp.lt.s32.totalorder %s18, 1
        %s567 = scalar_select %p566, %s18, 1
        %s568 = smul.addr %s567, 8
        %s569 = scalar_lea.vmem %s5, %s568
      $region56: #{unet_decoder_pallas.7} parent=47 // pred_fallthru
        _
    $region48: #{unet_decoder_pallas.7} parent=5 // pred_fallthru
      _
  $region6: #{unet_decoder_pallas.7} parent=0 // loop_footer
    %s16 = sadd.s32 1, %s12
  $region7: #{unet_decoder_pallas.7} parent=0 // loop_footer_branch
    %11 = sbr.rel target = $region3
  $region8: #{unet_decoder_pallas.7} parent=0 // loop_exit
    _

// kernel: unet_decoder_pallas.8
$region0: #{unet_decoder_pallas.8}
  #allocation0 [shape = 'u32[]', space=smem, size = 0x4, offset = 0x4, fixed_abs, tag = 'smem constant byte address 0x4 - core index']
  #allocation1 [shape = 'u32[144,128]{1,0:T(1,128)}', space=vmem, size = 0x12000, scoped, tag = 'internal scratch']
  %s0 = inlined_call_operand.vmem [shape: bf16[2,16,248], index: 0, kind: input, shape index: {}]
  %s1 = inlined_call_operand.vmem [shape: bf16[96,16], index: 1, kind: input, shape index: {}]
  %s2 = inlined_call_operand.vmem [shape: f32[8,5], index: 2, kind: input, shape index: {}]
  %s3 = inlined_call_operand.vmem [shape: f32[1,248], index: 3, kind: input, shape index: {}]
  %s4 = inlined_call_operand.vmem [shape: f32[2,8,256], index: 4, kind: output, shape index: {0}]
  %s5 = inlined_call_operand.vmem [shape: f32[2,8,248], index: 5, kind: output, shape index: {1}]
  %6 = xla_tuple %s4, %s5
  %s7 = sld [smem:[#allocation0]]
  $region57: #{unet_decoder_pallas.8} parent=0
    _
  %s9 = ssub.s32 1, %s7
  %s10 = scalar_select 0, %s9, %s7
  loop: start=0, step=1, limit=4
  $region2: #{unet_decoder_pallas.8} parent=0 // loop_pre_header
    _
  $region3: #{unet_decoder_pallas.8} parent=0 // loop_header
    %s12 = sphi 0, %s16
    %p13 = scmp.ge.s32.totalorder %s12, 4
    %s22 = sphi 0, %s24
    %s25 = sphi 0, %s22
    %s26 = sphi 0, %s25
    %s42 = sphi 0, %s26
    %s46 = sphi 0, %s46
    %s48 = sphi 0, %s46
    %s49 = sphi 0, %s48
    %s63 = sphi 0, %s49
    %s67 = sphi 0, %s67
    %s69 = sphi 0, %s67
    %s70 = sphi 0, %s69
    %s84 = sphi 0, %s70
    %s88 = sphi 0, %s88
    %s90 = sphi 0, %s88
    %s91 = sphi 0, %s90
    %s105 = sphi 0, %s91
    %s111 = sphi 0, %s113
    %s114 = sphi 0, %s111
    %s115 = sphi 0, %s114
    %s131 = sphi 0, %s115
    %s137 = sphi 0, %s139
    %s140 = sphi 0, %s137
    %s141 = sphi 0, %s140
    %s157 = sphi 0, %s141
  $region4: #{unet_decoder_pallas.8} parent=0 // loop_header_branch
    %15 = sbr.rel (%p13) target = $region8
  $region5: #{unet_decoder_pallas.8} parent=0 // loop_body
    %s17 = ssub.s32 %s12, 1
    %s18 = ssub.s32 %s12, 2
    %s19 = sadd.s32 %s12, 1
    %s20 = ssub.s32 %s12, %s19
    %p21 = scmp.eq.s32.totalorder %s20, 0
    %s23 = sadd.s32 %s22, 1
    %s24 = scalar_select %p21, %s22, %s23
    %p27 = pneg %p21
    %p28 = scmp.eq.s32.totalorder %s12, 1
    %p29 = por %p27, %p28
    %p30 = scmp.ne.s32.totalorder %s22, %s25
    %p31 = scmp.eq.s32.totalorder %s12, 0
    %p32 = por %p30, %p31
    %p33 = scmp.ne.s32.totalorder %s22, %s25
    %p34 = scmp.eq.s32.totalorder %s17, 1
    %p35 = por %p33, %p34
    %p36 = scmp.ne.s32.totalorder %s25, %s26
    %p37 = scmp.eq.s32.totalorder %s17, 0
    %p38 = por %p36, %p37
    %p39 = scmp.ne.s32.totalorder %s25, %s26
    %p40 = scmp.eq.s32.totalorder %s18, 1
    %p41 = por %p39, %p40
    %p43 = scmp.ne.s32.totalorder %s26, %s42
    %p44 = scmp.eq.s32.totalorder %s18, 0
    %p45 = por %p43, %p44
    %s47 = sadd.s32 %s46, 1
    %p50 = scmp.eq.s32.totalorder %s12, 1
    %p51 = scmp.ne.s32.totalorder %s46, %s48
    %p52 = scmp.eq.s32.totalorder %s12, 0
    %p53 = por %p51, %p52
    %p54 = scmp.ne.s32.totalorder %s46, %s48
    %p55 = scmp.eq.s32.totalorder %s17, 1
    %p56 = por %p54, %p55
    %p57 = scmp.ne.s32.totalorder %s48, %s49
    %p58 = scmp.eq.s32.totalorder %s17, 0
    %p59 = por %p57, %p58
    %p60 = scmp.ne.s32.totalorder %s48, %s49
    %p61 = scmp.eq.s32.totalorder %s18, 1
    %p62 = por %p60, %p61
    %p64 = scmp.ne.s32.totalorder %s49, %s63
    %p65 = scmp.eq.s32.totalorder %s18, 0
    %p66 = por %p64, %p65
    %s68 = sadd.s32 %s67, 1
    %p71 = scmp.eq.s32.totalorder %s12, 1
    %p72 = scmp.ne.s32.totalorder %s67, %s69
    %p73 = scmp.eq.s32.totalorder %s12, 0
    %p74 = por %p72, %p73
    %p75 = scmp.ne.s32.totalorder %s67, %s69
    %p76 = scmp.eq.s32.totalorder %s17, 1
    %p77 = por %p75, %p76
    %p78 = scmp.ne.s32.totalorder %s69, %s70
    %p79 = scmp.eq.s32.totalorder %s17, 0
    %p80 = por %p78, %p79
    %p81 = scmp.ne.s32.totalorder %s69, %s70
    %p82 = scmp.eq.s32.totalorder %s18, 1
    %p83 = por %p81, %p82
    %p85 = scmp.ne.s32.totalorder %s70, %s84
    %p86 = scmp.eq.s32.totalorder %s18, 0
    %p87 = por %p85, %p86
    %s89 = sadd.s32 %s88, 1
    %p92 = scmp.eq.s32.totalorder %s12, 1
    %p93 = scmp.ne.s32.totalorder %s88, %s90
    %p94 = scmp.eq.s32.totalorder %s12, 0
    %p95 = por %p93, %p94
    %p96 = scmp.ne.s32.totalorder %s88, %s90
    %p97 = scmp.eq.s32.totalorder %s17, 1
    %p98 = por %p96, %p97
    %p99 = scmp.ne.s32.totalorder %s90, %s91
    %p100 = scmp.eq.s32.totalorder %s17, 0
    %p101 = por %p99, %p100
    %p102 = scmp.ne.s32.totalorder %s90, %s91
    %p103 = scmp.eq.s32.totalorder %s18, 1
    %p104 = por %p102, %p103
    %p106 = scmp.ne.s32.totalorder %s91, %s105
    %p107 = scmp.eq.s32.totalorder %s18, 0
    %p108 = por %p106, %p107
    %s109 = ssub.s32 %s12, %s19
    %p110 = scmp.eq.s32.totalorder %s109, 0
    %s112 = sadd.s32 %s111, 1
    %s113 = scalar_select %p110, %s111, %s112
    %p116 = pneg %p110
    %p117 = scmp.eq.s32.totalorder %s12, 1
    %p118 = por %p116, %p117
    %p119 = scmp.ne.s32.totalorder %s111, %s114
    %p120 = scmp.eq.s32.totalorder %s12, 0
    %p121 = por %p119, %p120
    %p122 = scmp.ne.s32.totalorder %s111, %s114
    %p123 = scmp.eq.s32.totalorder %s17, 1
    %p124 = por %p122, %p123
    %p125 = scmp.ne.s32.totalorder %s114, %s115
    %p126 = scmp.eq.s32.totalorder %s17, 0
    %p127 = por %p125, %p126
    %p128 = scmp.ne.s32.totalorder %s114, %s115
    %p129 = scmp.eq.s32.totalorder %s18, 1
    %p130 = por %p128, %p129
    %p132 = scmp.ne.s32.totalorder %s115, %s131
    %p133 = scmp.eq.s32.totalorder %s18, 0
    %p134 = por %p132, %p133
    %s135 = ssub.s32 %s12, %s19
    %p136 = scmp.eq.s32.totalorder %s135, 0
    %s138 = sadd.s32 %s137, 1
    %s139 = scalar_select %p136, %s137, %s138
    %p142 = pneg %p136
    %p143 = scmp.eq.s32.totalorder %s12, 1
    %p144 = por %p142, %p143
    %p145 = scmp.ne.s32.totalorder %s137, %s140
    %p146 = scmp.eq.s32.totalorder %s12, 0
    %p147 = por %p145, %p146
    %p148 = scmp.ne.s32.totalorder %s137, %s140
    %p149 = scmp.eq.s32.totalorder %s17, 1
    %p150 = por %p148, %p149
    %p151 = scmp.ne.s32.totalorder %s140, %s141
    %p152 = scmp.eq.s32.totalorder %s17, 0
    %p153 = por %p151, %p152
    %p154 = scmp.ne.s32.totalorder %s140, %s141
    %p155 = scmp.eq.s32.totalorder %s18, 1
    %p156 = por %p154, %p155
    %p158 = scmp.ne.s32.totalorder %s141, %s157
    %p159 = scmp.eq.s32.totalorder %s18, 0
    %p160 = por %p158, %p159
    %p161 = scmp.le.s32.totalorder 1, %s12
    %p162 = scmp.lt.s32.totalorder %s12, 3
    %p163 = pnand %p161, %p162
    %p164 = pneg %p163
    // Predicated region
    $region9: #{unet_decoder_pallas.8} parent=5 // pred_check
      _
    $region10: #{unet_decoder_pallas.8} parent=5 // pred_check_branch
      %166 = sbr.rel (%p163) target = $region12
    $region11: #{unet_decoder_pallas.8} parent=5 // pred_region
      %s167 = ssub.s32 %s12, 1
      // Predicated region
      $region13: #{unet_decoder_pallas.8} parent=11 // pred_check
        %p168 = pneg %p59
      $region14: #{unet_decoder_pallas.8} parent=11 // pred_check_branch
        %170 = sbr.rel (%p168) target = $region16
      $region15: #{unet_decoder_pallas.8} parent=11 // pred_region
        _
      $region16: #{unet_decoder_pallas.8} parent=11 // pred_fallthru
        _
      // Predicated region
      $region17: #{unet_decoder_pallas.8} parent=11 // pred_check
        %p171 = pneg %p80
      $region18: #{unet_decoder_pallas.8} parent=11 // pred_check_branch
        %173 = sbr.rel (%p171) target = $region20
      $region19: #{unet_decoder_pallas.8} parent=11 // pred_region
        _
      $region20: #{unet_decoder_pallas.8} parent=11 // pred_fallthru
        _
      // Predicated region
      $region21: #{unet_decoder_pallas.8} parent=11 // pred_check
        %p174 = pneg %p101
      $region22: #{unet_decoder_pallas.8} parent=11 // pred_check_branch
        %176 = sbr.rel (%p174) target = $region24
      $region23: #{unet_decoder_pallas.8} parent=11 // pred_region
        _
      $region24: #{unet_decoder_pallas.8} parent=11 // pred_fallthru
        _
    $region12: #{unet_decoder_pallas.8} parent=5 // pred_fallthru
      _
    %p177 = scmp.lt.s32.totalorder %s12, 2
    // Predicated region
    $region25: #{unet_decoder_pallas.8} parent=5 // pred_check
      %p178 = pneg %p177
    $region26: #{unet_decoder_pallas.8} parent=5 // pred_check_branch
      %180 = sbr.rel (%p178) target = $region28
    $region27: #{unet_decoder_pallas.8} parent=5 // pred_region
      // Predicated region
      $region29: #{unet_decoder_pallas.8} parent=27 // pred_check
        %p181 = pneg %p32
      $region30: #{unet_decoder_pallas.8} parent=27 // pred_check_branch
        %183 = sbr.rel (%p181) target = $region32
      $region31: #{unet_decoder_pallas.8} parent=27 // pred_region
        %p184 = scmp.lt.s32.totalorder %s12, 1
        %s185 = scalar_select %p184, %s12, 1
        %s186 = smul.addr %s185, 4
        %s187 = smul.addr %s186, 4
        %s188 = scalar_lea.vmem %s0, %s187
      $region32: #{unet_decoder_pallas.8} parent=27 // pred_fallthru
        _
    $region28: #{unet_decoder_pallas.8} parent=5 // pred_fallthru
      _
    %p189 = scmp.le.s32.totalorder 1, %s12
    %p190 = scmp.lt.s32.totalorder %s12, 3
    %p191 = pnand %p189, %p190
    %p192 = pneg %p191
    // Predicated region
    $region33: #{unet_decoder_pallas.8} parent=5 // pred_check
      _
    $region34: #{unet_decoder_pallas.8} parent=5 // pred_check_branch
      %194 = sbr.rel (%p191) target = $region36
    $region35: #{unet_decoder_pallas.8} parent=5 // pred_region
      %s195 = ssub.s32 %s12, 1
      %p196 = scmp.lt.s32.totalorder %s17, 1
      %s197 = scalar_select %p196, %s17, 1
      %s198 = smul.addr %s197, 4
      %s199 = smul.addr %s198, 4
      %s200 = scalar_lea.vmem %s0, %s199
      %p201 = pneg %p38
      %p202 = pneg %p35
      %p203 = pneg %p59
      %p204 = pneg %p56
      %p205 = pneg %p80
      %p206 = pneg %p77
      %p207 = pneg %p101
      %p208 = pneg %p98
      %p209 = pneg %p127
      %p210 = pneg %p124
      %p211 = scmp.lt.s32.totalorder %s17, 1
      %s212 = scalar_select %p211, %s17, 1
      %s213 = smul.addr %s212, 2
      %s214 = smul.addr %s213, 8
      %s215 = scalar_lea.vmem %s4, %s214
      %p216 = pneg %p153
      %p217 = pneg %p150
      %p218 = scmp.lt.s32.totalorder %s17, 1
      %s219 = scalar_select %p218, %s17, 1
      %s220 = smul.addr %s219, 2
      %s221 = smul.addr %s220, 8
      %s222 = scalar_lea.vmem %s5, %s221
      %p223 = scmp.lt.s32.totalorder %s17, 1
      %s224 = scalar_select %p223, %s17, 1
      %s225 = smul.addr %s224, 4
      %s226 = smul.addr %s225, 4
      %s227 = scalar_lea.vmem %s0, %s226
      %p228 = scmp.lt.s32.totalorder %s17, 1
      %s229 = scalar_select %p228, %s17, 1
      %s230 = smul.addr %s229, 2
      %s231 = smul.addr %s230, 8
      %s232 = scalar_lea.vmem %s4, %s231
      %p233 = scmp.lt.s32.totalorder %s17, 1
      %s234 = scalar_select %p233, %s17, 1
      %s235 = smul.addr %s234, 2
      %s236 = smul.addr %s235, 8
      %s237 = scalar_lea.vmem %s5, %s236
      %v239 = vld [vmem:[%s1] sm:$0xf]
      %v240 = vld [vmem:[%s1 + $0x4] sm:$0xf]
      %v241 = vld [vmem:[%s1 + $0x8] sm:$0xf]
      %v242 = vld [vmem:[%s1 + $0xc] sm:$0xf]
      %v243 = vld [vmem:[%s1 + $0x10] sm:$0xf]
      %v244 = vld [vmem:[%s1 + $0x14] sm:$0xf]
      %v245 = vld [vmem:[%s1 + $0x18] sm:$0xf]
      %v246 = vld [vmem:[%s1 + $0x1c] sm:$0xf]
      %v247 = vld [vmem:[%s1 + $0x20] sm:$0xf]
      %v248 = vld [vmem:[%s1 + $0x24] sm:$0xf]
      %v249 = vld [vmem:[%s1 + $0x28] sm:$0xf]
      %v250 = vld [vmem:[%s1 + $0x2c] sm:$0xf]
      %v251 = vld [vmem:[%s227] sm:$0xff]
      %v252 = vld [vmem:[%s227 + $0x8] sm:$0xff]
      %v265 = vunpack.c.l.b16 %v239
      %v266 = vunpack.c.l.b16 %v240
      %v267 = vunpack.c.l.b16 %v241
      %v268 = vunpack.c.l.b16 %v242
      %v269 = vunpack.c.l.b16 %v243
      %v270 = vunpack.c.l.b16 %v244
      %v271 = vunpack.c.l.b16 %v245
      %v272 = vunpack.c.l.b16 %v246
      %v273 = vunpack.c.l.b16 %v247
      %v274 = vunpack.c.l.b16 %v248
      %v275 = vunpack.c.l.b16 %v249
      %v276 = vunpack.c.l.b16 %v250
      %v277 = vpack.c.b16 %v266, %v265
      %v278 = vpack.c.b16 %v268, %v267
      %v279 = vpack.c.b16 %v270, %v269
      %v280 = vpack.c.b16 %v272, %v271
      %v281 = vpack.c.b16 %v274, %v273
      %v282 = vpack.c.b16 %v276, %v275
      %v285 = vunpack.c.l.b16 %v251
      %v286 = vunpack.c.h.b16 %v251
      %v287 = vunpack.c.l.b16 %v252
      %v288 = vunpack.c.h.b16 %v252
      %v289 = vpack.c.b16 %v287, %v285
      %v290 = vpack.c.b16 %v288, %v286
      %vm293 = vcmask 130048
      %v295 = vsel %vm293, %v277, 0
      %v298 = vsel %vm293, %v278, 0
      %v301 = vsel %vm293, %v279, 0
      %v304 = vsel %vm293, %v280, 0
      %v307 = vsel %vm293, %v281, 0
      %v310 = vsel %vm293, %v282, 0
      %312 = vmatprep.subr.bf16.mxu0 0
      %313 = vmatpush1.bf16.msra.mxu0 0
      %314 = vmatprep.subr.bf16.mxu0 0
      %315 = vmatpush1.bf16.msra.mxu0 0
      %316 = vmatprep.subr.bf16.mxu0 0
      %317 = vmatpush1.bf16.msra.mxu0 0
      %318 = vmatprep.subr.bf16.mxu0 0
      %319 = vmatpush1.bf16.msra.mxu0 0
      %320 = vmatprep.subr.bf16.mxu0 0
      %321 = vmatpush1.bf16.msra.mxu0 0
      %322 = vmatprep.subr.bf16.mxu0 0
      %323 = vmatpush1.bf16.msra.mxu0 0
      %324 = vmatprep.subr.bf16.mxu0 0
      %325 = vmatpush1.bf16.msra.mxu0 0
      %326 = vmatprep.subr.bf16.mxu0 %v290
      %327 = vmatpush1.bf16.msra.mxu0 %v289
      %328 = vmatprep.subr.bf16.mxu0 0
      %329 = vmatpush2.bf16.msra.mxu0 0
      %330 = vmatprep.subr.bf16.mxu0 0
      %331 = vmatpush2.bf16.msra.mxu0 0
      %332 = vmatprep.subr.bf16.mxu0 0
      %333 = vmatpush2.bf16.msra.mxu0 0
      %334 = vmatprep.subr.bf16.mxu0 0
      %335 = vmatpush2.bf16.msra.mxu0 0
      %336 = vmatprep.subr.bf16.mxu0 0
      %337 = vmatpush2.bf16.msra.mxu0 0
      %338 = vmatprep.subr.bf16.mxu0 0
      %339 = vmatpush2.bf16.msra.mxu0 0
      %340 = vmatprep.subr.bf16.mxu0 0
      %341 = vmatpush2.bf16.msra.mxu0 0
      %342 = vmatprep.subr.bf16.mxu0 0
      %343 = vmatpush2.bf16.msra.mxu0 0
      %344 = vmatprep.mubr.bf16.mxu0 0
      %345 = vmatmul.mubr.bf16.gmra.mxu0 %v295
      %v346 = vpop.f32.mrf.mxu0
      %v347 = vadd.f32 0.0, %v346
      %v348 = vpop.f32.mrf.mxu0
      %v349 = vadd.f32 0.0, %v348
      %v350 = vpop.f32.mrf.mxu0
      %v351 = vadd.f32 0.0, %v350
      %v352 = vpop.f32.mrf.mxu0
      %v353 = vadd.f32 0.0, %v352
      %354 = vmatprep.mubr.bf16.mxu0 0
      %355 = vmatmul.mubr.bf16.gmra.mxu0 %v298
      %v356 = vpop.f32.mrf.mxu0
      %v357 = vadd.f32 0.0, %v356
      %v358 = vpop.f32.mrf.mxu0
      %v359 = vadd.f32 0.0, %v358
      %v360 = vpop.f32.mrf.mxu0
      %v361 = vadd.f32 0.0, %v360
      %v362 = vpop.f32.mrf.mxu0
      %v363 = vadd.f32 0.0, %v362
      %364 = vmatprep.mubr.bf16.mxu0 0
      %365 = vmatmul.mubr.bf16.gmra.mxu0 %v301
      %v366 = vpop.f32.mrf.mxu0
      %v367 = vadd.f32 0.0, %v366
      %v368 = vpop.f32.mrf.mxu0
      %v369 = vadd.f32 0.0, %v368
      %v370 = vpop.f32.mrf.mxu0
      %v371 = vadd.f32 0.0, %v370
      %v372 = vpop.f32.mrf.mxu0
      %v373 = vadd.f32 0.0, %v372
      %374 = vmatprep.mubr.bf16.mxu0 0
      %375 = vmatmul.mubr.bf16.gmra.mxu0 %v304
      %v376 = vpop.f32.mrf.mxu0
      %v377 = vadd.f32 0.0, %v376
      %v378 = vpop.f32.mrf.mxu0
      %v379 = vadd.f32 0.0, %v378
      %v380 = vpop.f32.mrf.mxu0
      %v381 = vadd.f32 0.0, %v380
      %v382 = vpop.f32.mrf.mxu0
      %v383 = vadd.f32 0.0, %v382
      %384 = vmatprep.mubr.bf16.mxu0 0
      %385 = vmatmul.mubr.bf16.gmra.mxu0 %v307
      %v386 = vpop.f32.mrf.mxu0
      %v387 = vadd.f32 0.0, %v386
      %v388 = vpop.f32.mrf.mxu0
      %v389 = vadd.f32 0.0, %v388
      %v390 = vpop.f32.mrf.mxu0
      %v391 = vadd.f32 0.0, %v390
      %v392 = vpop.f32.mrf.mxu0
      %v393 = vadd.f32 0.0, %v392
      %394 = vmatprep.mubr.bf16.mxu0 0
      %395 = vmatmul.mubr.bf16.gmra.mxu0 %v310
      %v396 = vpop.f32.mrf.mxu0
      %v397 = vadd.f32 0.0, %v396
      %v398 = vpop.f32.mrf.mxu0
      %v399 = vadd.f32 0.0, %v398
      %v400 = vpop.f32.mrf.mxu0
      %v401 = vadd.f32 0.0, %v400
      %v402 = vpop.f32.mrf.mxu0
      %v403 = vadd.f32 0.0, %v402
      %404 = vdwg.mxu0
      %vm405 = vcmask 982016
      %v406 = vsel %vm405, %v349, 0.0
      %v407 = vsel %vm405, %v353, 0.0
      %412 = vrot.lane.b32.xlu0 %v367, 8
      %v413 = vpop.permute.xlu0 %412
      %414 = vrot.lane.b32.xlu0 %v369, 8
      %v415 = vpop.permute.xlu0 %414
      %416 = vrot.lane.b32.xlu0 %v371, 8
      %v417 = vpop.permute.xlu0 %416
      %418 = vrot.lane.b32.xlu0 %v373, 8
      %v419 = vpop.permute.xlu0 %418
      %vm420 = vcmask 64512
      %v421 = vsel %vm420, %v413, %v415
      %v422 = vsel %vm420, %v417, %v419
      %v427 = vsel %vm420, 0.0, %v413
      %v428 = vsel %vm420, 0.0, %v417
      %v429 = vadd.f32 %v347, %v427
      %v430 = vadd.f32 %v406, %v421
      %v431 = vadd.f32 %v351, %v428
      %v432 = vadd.f32 %v407, %v422
      %v433 = vld [vmem:[%s3] sm:$0x3]
      %v435 = vlaneseq
      %v436 = vshrl.u32 %v435, 7
      %v437 = vsub.s32 0, %v436
      %v438 = vrot.slane %v433, %v437
      %v439 = vlaneseq
      %v440 = vshrl.u32 %v439, 7
      %v441 = vsub.s32 1, %v440
      %v442 = vrot.slane %v433, %v441
      %v445 = vmul.f32 %v377, %v438
      %v446 = vmul.f32 %v379, %v442
      %v447 = vmul.f32 %v381, %v438
      %v448 = vmul.f32 %v383, %v442
      %453 = vrot.lane.b32.xlu0 %v445, 1
      %v454 = vpop.permute.xlu0 %453
      %455 = vrot.lane.b32.xlu0 %v446, 1
      %v456 = vpop.permute.xlu0 %455
      %457 = vrot.lane.b32.xlu0 %v447, 1
      %v458 = vpop.permute.xlu0 %457
      %459 = vrot.lane.b32.xlu0 %v448, 1
      %v460 = vpop.permute.xlu0 %459
      %vm461 = vcmask 7168
      %v462 = vsel %vm461, %v454, %v456
      %v463 = vsel %vm461, %v458, %v460
      %v468 = vsel %vm461, 0.0, %v454
      %v469 = vsel %vm461, 0.0, %v458
      %vm470 = vcmask 990208
      %v471 = vsel %vm470, %v462, 0.0
      %v472 = vsel %vm470, %v463, 0.0
      %v473 = vadd.f32 %v429, %v468
      %v474 = vadd.f32 %v430, %v471
      %v475 = vadd.f32 %v431, %v469
      %v476 = vadd.f32 %v432, %v472
      %v477 = vmul.f32 %v387, %v438
      %v478 = vmul.f32 %v389, %v442
      %v479 = vmul.f32 %v391, %v438
      %v480 = vmul.f32 %v393, %v442
      %485 = vrot.lane.b32.xlu0 %v477, 1
      %v486 = vpop.permute.xlu0 %485
      %487 = vrot.lane.b32.xlu0 %v478, 1
      %v488 = vpop.permute.xlu0 %487
      %489 = vrot.lane.b32.xlu0 %v479, 1
      %v490 = vpop.permute.xlu0 %489
      %491 = vrot.lane.b32.xlu0 %v480, 1
      %v492 = vpop.permute.xlu0 %491
      %v493 = vsel %vm461, %v486, %v488
      %v494 = vsel %vm461, %v490, %v492
      %v499 = vsel %vm461, 0.0, %v486
      %v500 = vsel %vm461, 0.0, %v490
      %v501 = vadd.f32 %v357, %v499
      %v502 = vadd.f32 %v359, %v493
      %v503 = vadd.f32 %v361, %v500
      %v504 = vadd.f32 %v363, %v494
      %v505 = vmul.f32 %v397, %v438
      %v506 = vmul.f32 %v399, %v442
      %v507 = vmul.f32 %v401, %v438
      %v508 = vmul.f32 %v403, %v442
      %513 = vrot.lane.b32.xlu0 %v505, 9
      %v514 = vpop.permute.xlu0 %513
      %515 = vrot.lane.b32.xlu0 %v506, 9
      %v516 = vpop.permute.xlu0 %515
      %517 = vrot.lane.b32.xlu0 %v507, 9
      %v518 = vpop.permute.xlu0 %517
      %519 = vrot.lane.b32.xlu0 %v508, 9
      %v520 = vpop.permute.xlu0 %519
      %vm521 = vcmask 72704
      %v522 = vsel %vm521, %v514, %v516
      %v523 = vsel %vm521, %v518, %v520
      %v528 = vsel %vm521, 0.0, %v514
      %v529 = vsel %vm521, 0.0, %v518
      %v530 = vadd.f32 %v473, %v528
      %v531 = vadd.f32 %v474, %v522
      %v532 = vadd.f32 %v475, %v529
      %v533 = vadd.f32 %v476, %v523
      %v534 = vld [vmem:[%s2] sm:$0xff]
      %536 = vset.pattern.permute.xlu0 0
      %537 = vperm.xlu0 %536, %v534
      %v538 = vpop.permute.xlu0 %537
      %v540 = vadd.f32 %v530, %v538
      %v541 = vadd.f32 %v531, %v538
      %542 = vset.pattern.permute.xlu0 1
      %543 = vperm.xlu0 %542, %v534
      %v544 = vpop.permute.xlu0 %543
      %v546 = vadd.f32 %v532, %v544
      %v547 = vadd.f32 %v533, %v544
      %v548 = vxor.u32 %v546, 2147483648
      %v549 = vxor.u32 %v547, 2147483648
      %v550 = vmul.f32 %v548, 1.442695
      %v551 = vpow.pop %v550
      %v552 = vmul.f32 %v549, 1.442695
      %v553 = vpow.pop %v552
      %v554 = vadd.f32 %v551, 1.0
      %v555 = vadd.f32 %v553, 1.0
      %v556 = vrcp.pop %v554
      %v557 = vmul.f32 1.0, %v556
      %v558 = vrcp.pop %v555
      %v559 = vmul.f32 1.0, %v558
      %v560 = vmul.f32 %v540, %v557
      %v561 = vmul.f32 %v541, %v559
      %v562 = vadd.f32 %v501, %v538
      %v563 = vadd.f32 %v502, %v538
      %v564 = vadd.f32 %v503, %v544
      %v565 = vadd.f32 %v504, %v544
      %v566 = vxor.u32 %v564, 2147483648
      %v567 = vxor.u32 %v565, 2147483648
      %v568 = vmul.f32 %v566, 1.442695
      %v569 = vpow.pop %v568
      %v570 = vmul.f32 %v567, 1.442695
      %v571 = vpow.pop %v570
      %v572 = vadd.f32 %v569, 1.0
      %v573 = vadd.f32 %v571, 1.0
      %v574 = vrcp.pop %v572
      %v575 = vmul.f32 1.0, %v574
      %v576 = vrcp.pop %v573
      %v577 = vmul.f32 1.0, %v576
      %v578 = vmul.f32 %v562, %v575
      %v579 = vmul.f32 %v563, %v577
      %v580 = vadd.f32 %v560, %v561
      %581 = vadd.xlane.f32.xlu0 %v580
      %v582 = vpop.xlane.xlu0 %581
      %v583 = vsel %vm405, %v579, 0.0
      %v584 = vadd.f32 %v578, %v583
      %585 = vadd.xlane.f32.xlu0 %v584
      %v586 = vpop.xlane.xlu0 %585
      %v587 = vadd.f32 %v582, %v586
      %v588 = vmul.f32 %v560, %v560
      %v589 = vmul.f32 %v561, %v561
      %v590 = vadd.f32 %v588, %v589
      %591 = vadd.xlane.f32.xlu0 %v590
      %v592 = vpop.xlane.xlu0 %591
      %v593 = vmul.f32 %v578, %v578
      %v594 = vmul.f32 %v579, %v579
      %v595 = vsel %vm405, %v594, 0.0
      %v596 = vadd.f32 %v593, %v595
      %597 = vadd.xlane.f32.xlu0 %v596
      %v598 = vpop.xlane.xlu0 %597
      %v599 = vadd.f32 %v592, %v598
      %v600 = vmul.f32 %v587, 0.001984127
      %v601 = vmul.f32 %v599, 0.001984127
      %v602 = vmul.f32 %v600, %v600
      %v603 = vsub.f32 %v601, %v602
      %v604 = vmax.f32 %v603, 0.0
      %v605 = vadd.f32 %v604, 1e-05
      %v606 = vrsqrt.pop %v605
      %v607 = vmul.f32 %v606, %v534
      %v608 = vmul.f32 %v600, %v607
      %610 = vrot.lane.b32.xlu0 %v608, 1
      %v611 = vpop.permute.xlu0 %610
      %v613 = vsub.f32 %v534, %v611
      %615 = vset.pattern.permute.xlu0 2
      %616 = vperm.xlu0 %615, %v607
      %v617 = vpop.permute.xlu0 %616
      %v619 = vmul.f32 %v560, %v617
      %v620 = vmul.f32 %v561, %v617
      %622 = vset.pattern.permute.xlu0 3
      %623 = vperm.xlu0 %622, %v613
      %v624 = vpop.permute.xlu0 %623
      %v626 = vadd.f32 %v619, %v624
      %v627 = vadd.f32 %v620, %v624
      %v628 = vmul.f32 %v578, %v617
      %v629 = vmul.f32 %v579, %v617
      %v630 = vadd.f32 %v628, %v624
      %v631 = vadd.f32 %v629, %v624
      %vm632 = vcmp.ge.f32.partialorder %v626, 0.0
      %vm633 = vcmp.ge.f32.partialorder %v627, 0.0
      %634 = vset.pattern.permute.xlu0 4
      %635 = vperm.xlu0 %634, %v534
      %v636 = vpop.permute.xlu0 %635
      %v638 = vmul.f32 %v636, %v626
      %v639 = vmul.f32 %v636, %v627
      %v640 = vsel %vm632, %v626, %v638
      %v641 = vsel %vm633, %v627, %v639
      %vm642 = vcmp.ge.f32.partialorder %v630, 0.0
      %vm643 = vcmp.ge.f32.partialorder %v631, 0.0
      %v644 = vmul.f32 %v636, %v630
      %v645 = vmul.f32 %v636, %v631
      %v646 = vsel %vm642, %v630, %v644
      %v647 = vsel %vm643, %v631, %v645
      %648 = vst [vmem:[%s232] sm:$0xff] %v640
      %649 = vst [vmem:[%s232 + $0x8] sm:$0xff] %v641
      %650 = vst [vmem:[%s237] sm:$0xff] %v646
      %651 = vst.msk [vmem:[%s237 + $0x8] sm:$0xff] %vm405, %v647
      %p652 = scmp.lt.s32.totalorder %s17, 1
      %s653 = scalar_select %p652, %s17, 1
      %s654 = smul.addr %s653, 2
      %s655 = smul.addr %s654, 8
      %s656 = scalar_lea.vmem %s4, %s655
      %p657 = scmp.lt.s32.totalorder %s17, 1
      %s658 = scalar_select %p657, %s17, 1
      %s659 = smul.addr %s658, 2
      %s660 = smul.addr %s659, 8
      %s661 = scalar_lea.vmem %s5, %s660
      // Predicated region
      $region37: #{unet_decoder_pallas.8} parent=35 // pred_check
        %p662 = pneg %p124
      $region38: #{unet_decoder_pallas.8} parent=35 // pred_check_branch
        %664 = sbr.rel (%p662) target = $region40
      $region39: #{unet_decoder_pallas.8} parent=35 // pred_region
        _
      $region40: #{unet_decoder_pallas.8} parent=35 // pred_fallthru
        _
      // Predicated region
      $region41: #{unet_decoder_pallas.8} parent=35 // pred_check
        %p665 = pneg %p150
      $region42: #{unet_decoder_pallas.8} parent=35 // pred_check_branch
        %667 = sbr.rel (%p665) target = $region44
      $region43: #{unet_decoder_pallas.8} parent=35 // pred_region
        _
      $region44: #{unet_decoder_pallas.8} parent=35 // pred_fallthru
        _
    $region36: #{unet_decoder_pallas.8} parent=5 // pred_fallthru
      _
    %p668 = scmp.le.s32.totalorder 2, %s12
    // Predicated region
    $region45: #{unet_decoder_pallas.8} parent=5 // pred_check
      %p669 = pneg %p668
    $region46: #{unet_decoder_pallas.8} parent=5 // pred_check_branch
      %671 = sbr.rel (%p669) target = $region48
    $region47: #{unet_decoder_pallas.8} parent=5 // pred_region
      %s672 = ssub.s32 %s12, 2
      // Predicated region
      $region49: #{unet_decoder_pallas.8} parent=47 // pred_check
        %p673 = pneg %p130
      $region50: #{unet_decoder_pallas.8} parent=47 // pred_check_branch
        %675 = sbr.rel (%p673) target = $region52
      $region51: #{unet_decoder_pallas.8} parent=47 // pred_region
        %p676 = scmp.lt.s32.totalorder %s18, 1
        %s677 = scalar_select %p676, %s18, 1
        %s678 = smul.addr %s677, 2
        %s679 = smul.addr %s678, 8
        %s680 = scalar_lea.vmem %s4, %s679
      $region52: #{unet_decoder_pallas.8} parent=47 // pred_fallthru
        _
      // Predicated region
      $region53: #{unet_decoder_pallas.8} parent=47 // pred_check
        %p681 = pneg %p156
      $region54: #{unet_decoder_pallas.8} parent=47 // pred_check_branch
        %683 = sbr.rel (%p681) target = $region56
      $region55: #{unet_decoder_pallas.8} parent=47 // pred_region
        %p684 = scmp.lt.s32.totalorder %s18, 1
        %s685 = scalar_select %p684, %s18, 1
        %s686 = smul.addr %s685, 2
        %s687 = smul.addr %s686, 8
        %s688 = scalar_lea.vmem %s5, %s687
      $region56: #{unet_decoder_pallas.8} parent=47 // pred_fallthru
        _
    $region48: #{unet_decoder_pallas.8} parent=5 // pred_fallthru
      _
  $region6: #{unet_decoder_pallas.8} parent=0 // loop_footer
    %s16 = sadd.s32 1, %s12
  $region7: #{unet_decoder_pallas.8} parent=0 // loop_footer_branch
    %11 = sbr.rel target = $region3
  $region8: #{unet_decoder_pallas.8} parent=0 // loop_exit
    _

// kernel: unet_decoder_pallas.9
$region0: #{unet_decoder_pallas.9}
  #allocation0 [shape = 'u32[]', space=smem, size = 0x4, offset = 0x4, fixed_abs, tag = 'smem constant byte address 0x4 - core index']
  #allocation1 [shape = 'u32[144,128]{1,0:T(1,128)}', space=vmem, size = 0x12000, scoped, tag = 'internal scratch']
  %s0 = inlined_call_operand.vmem [shape: bf16[2,16,504], index: 0, kind: input, shape index: {}]
  %s1 = inlined_call_operand.vmem [shape: bf16[160,16], index: 1, kind: input, shape index: {}]
  %s2 = inlined_call_operand.vmem [shape: f32[8,5], index: 2, kind: input, shape index: {}]
  %s3 = inlined_call_operand.vmem [shape: f32[1,504], index: 3, kind: input, shape index: {}]
  %s4 = inlined_call_operand.vmem [shape: f32[2,8,520], index: 4, kind: output, shape index: {0}]
  %s5 = inlined_call_operand.vmem [shape: f32[2,8,512], index: 5, kind: output, shape index: {1}]
  %6 = xla_tuple %s4, %s5
  %s7 = sld [smem:[#allocation0]]
  $region57: #{unet_decoder_pallas.9} parent=0
    _
  %s9 = ssub.s32 1, %s7
  %s10 = scalar_select 0, %s9, %s7
  loop: start=0, step=1, limit=4
  $region2: #{unet_decoder_pallas.9} parent=0 // loop_pre_header
    _
  $region3: #{unet_decoder_pallas.9} parent=0 // loop_header
    %s12 = sphi 0, %s16
    %p13 = scmp.ge.s32.totalorder %s12, 4
    %s22 = sphi 0, %s24
    %s25 = sphi 0, %s22
    %s26 = sphi 0, %s25
    %s42 = sphi 0, %s26
    %s46 = sphi 0, %s46
    %s48 = sphi 0, %s46
    %s49 = sphi 0, %s48
    %s63 = sphi 0, %s49
    %s67 = sphi 0, %s67
    %s69 = sphi 0, %s67
    %s70 = sphi 0, %s69
    %s84 = sphi 0, %s70
    %s88 = sphi 0, %s88
    %s90 = sphi 0, %s88
    %s91 = sphi 0, %s90
    %s105 = sphi 0, %s91
    %s111 = sphi 0, %s113
    %s114 = sphi 0, %s111
    %s115 = sphi 0, %s114
    %s131 = sphi 0, %s115
    %s137 = sphi 0, %s139
    %s140 = sphi 0, %s137
    %s141 = sphi 0, %s140
    %s157 = sphi 0, %s141
  $region4: #{unet_decoder_pallas.9} parent=0 // loop_header_branch
    %15 = sbr.rel (%p13) target = $region8
  $region5: #{unet_decoder_pallas.9} parent=0 // loop_body
    %s17 = ssub.s32 %s12, 1
    %s18 = ssub.s32 %s12, 2
    %s19 = sadd.s32 %s12, 1
    %s20 = ssub.s32 %s12, %s19
    %p21 = scmp.eq.s32.totalorder %s20, 0
    %s23 = sadd.s32 %s22, 1
    %s24 = scalar_select %p21, %s22, %s23
    %p27 = pneg %p21
    %p28 = scmp.eq.s32.totalorder %s12, 1
    %p29 = por %p27, %p28
    %p30 = scmp.ne.s32.totalorder %s22, %s25
    %p31 = scmp.eq.s32.totalorder %s12, 0
    %p32 = por %p30, %p31
    %p33 = scmp.ne.s32.totalorder %s22, %s25
    %p34 = scmp.eq.s32.totalorder %s17, 1
    %p35 = por %p33, %p34
    %p36 = scmp.ne.s32.totalorder %s25, %s26
    %p37 = scmp.eq.s32.totalorder %s17, 0
    %p38 = por %p36, %p37
    %p39 = scmp.ne.s32.totalorder %s25, %s26
    %p40 = scmp.eq.s32.totalorder %s18, 1
    %p41 = por %p39, %p40
    %p43 = scmp.ne.s32.totalorder %s26, %s42
    %p44 = scmp.eq.s32.totalorder %s18, 0
    %p45 = por %p43, %p44
    %s47 = sadd.s32 %s46, 1
    %p50 = scmp.eq.s32.totalorder %s12, 1
    %p51 = scmp.ne.s32.totalorder %s46, %s48
    %p52 = scmp.eq.s32.totalorder %s12, 0
    %p53 = por %p51, %p52
    %p54 = scmp.ne.s32.totalorder %s46, %s48
    %p55 = scmp.eq.s32.totalorder %s17, 1
    %p56 = por %p54, %p55
    %p57 = scmp.ne.s32.totalorder %s48, %s49
    %p58 = scmp.eq.s32.totalorder %s17, 0
    %p59 = por %p57, %p58
    %p60 = scmp.ne.s32.totalorder %s48, %s49
    %p61 = scmp.eq.s32.totalorder %s18, 1
    %p62 = por %p60, %p61
    %p64 = scmp.ne.s32.totalorder %s49, %s63
    %p65 = scmp.eq.s32.totalorder %s18, 0
    %p66 = por %p64, %p65
    %s68 = sadd.s32 %s67, 1
    %p71 = scmp.eq.s32.totalorder %s12, 1
    %p72 = scmp.ne.s32.totalorder %s67, %s69
    %p73 = scmp.eq.s32.totalorder %s12, 0
    %p74 = por %p72, %p73
    %p75 = scmp.ne.s32.totalorder %s67, %s69
    %p76 = scmp.eq.s32.totalorder %s17, 1
    %p77 = por %p75, %p76
    %p78 = scmp.ne.s32.totalorder %s69, %s70
    %p79 = scmp.eq.s32.totalorder %s17, 0
    %p80 = por %p78, %p79
    %p81 = scmp.ne.s32.totalorder %s69, %s70
    %p82 = scmp.eq.s32.totalorder %s18, 1
    %p83 = por %p81, %p82
    %p85 = scmp.ne.s32.totalorder %s70, %s84
    %p86 = scmp.eq.s32.totalorder %s18, 0
    %p87 = por %p85, %p86
    %s89 = sadd.s32 %s88, 1
    %p92 = scmp.eq.s32.totalorder %s12, 1
    %p93 = scmp.ne.s32.totalorder %s88, %s90
    %p94 = scmp.eq.s32.totalorder %s12, 0
    %p95 = por %p93, %p94
    %p96 = scmp.ne.s32.totalorder %s88, %s90
    %p97 = scmp.eq.s32.totalorder %s17, 1
    %p98 = por %p96, %p97
    %p99 = scmp.ne.s32.totalorder %s90, %s91
    %p100 = scmp.eq.s32.totalorder %s17, 0
    %p101 = por %p99, %p100
    %p102 = scmp.ne.s32.totalorder %s90, %s91
    %p103 = scmp.eq.s32.totalorder %s18, 1
    %p104 = por %p102, %p103
    %p106 = scmp.ne.s32.totalorder %s91, %s105
    %p107 = scmp.eq.s32.totalorder %s18, 0
    %p108 = por %p106, %p107
    %s109 = ssub.s32 %s12, %s19
    %p110 = scmp.eq.s32.totalorder %s109, 0
    %s112 = sadd.s32 %s111, 1
    %s113 = scalar_select %p110, %s111, %s112
    %p116 = pneg %p110
    %p117 = scmp.eq.s32.totalorder %s12, 1
    %p118 = por %p116, %p117
    %p119 = scmp.ne.s32.totalorder %s111, %s114
    %p120 = scmp.eq.s32.totalorder %s12, 0
    %p121 = por %p119, %p120
    %p122 = scmp.ne.s32.totalorder %s111, %s114
    %p123 = scmp.eq.s32.totalorder %s17, 1
    %p124 = por %p122, %p123
    %p125 = scmp.ne.s32.totalorder %s114, %s115
    %p126 = scmp.eq.s32.totalorder %s17, 0
    %p127 = por %p125, %p126
    %p128 = scmp.ne.s32.totalorder %s114, %s115
    %p129 = scmp.eq.s32.totalorder %s18, 1
    %p130 = por %p128, %p129
    %p132 = scmp.ne.s32.totalorder %s115, %s131
    %p133 = scmp.eq.s32.totalorder %s18, 0
    %p134 = por %p132, %p133
    %s135 = ssub.s32 %s12, %s19
    %p136 = scmp.eq.s32.totalorder %s135, 0
    %s138 = sadd.s32 %s137, 1
    %s139 = scalar_select %p136, %s137, %s138
    %p142 = pneg %p136
    %p143 = scmp.eq.s32.totalorder %s12, 1
    %p144 = por %p142, %p143
    %p145 = scmp.ne.s32.totalorder %s137, %s140
    %p146 = scmp.eq.s32.totalorder %s12, 0
    %p147 = por %p145, %p146
    %p148 = scmp.ne.s32.totalorder %s137, %s140
    %p149 = scmp.eq.s32.totalorder %s17, 1
    %p150 = por %p148, %p149
    %p151 = scmp.ne.s32.totalorder %s140, %s141
    %p152 = scmp.eq.s32.totalorder %s17, 0
    %p153 = por %p151, %p152
    %p154 = scmp.ne.s32.totalorder %s140, %s141
    %p155 = scmp.eq.s32.totalorder %s18, 1
    %p156 = por %p154, %p155
    %p158 = scmp.ne.s32.totalorder %s141, %s157
    %p159 = scmp.eq.s32.totalorder %s18, 0
    %p160 = por %p158, %p159
    %p161 = scmp.le.s32.totalorder 1, %s12
    %p162 = scmp.lt.s32.totalorder %s12, 3
    %p163 = pnand %p161, %p162
    %p164 = pneg %p163
    // Predicated region
    $region9: #{unet_decoder_pallas.9} parent=5 // pred_check
      _
    $region10: #{unet_decoder_pallas.9} parent=5 // pred_check_branch
      %166 = sbr.rel (%p163) target = $region12
    $region11: #{unet_decoder_pallas.9} parent=5 // pred_region
      %s167 = ssub.s32 %s12, 1
      // Predicated region
      $region13: #{unet_decoder_pallas.9} parent=11 // pred_check
        %p168 = pneg %p59
      $region14: #{unet_decoder_pallas.9} parent=11 // pred_check_branch
        %170 = sbr.rel (%p168) target = $region16
      $region15: #{unet_decoder_pallas.9} parent=11 // pred_region
        _
      $region16: #{unet_decoder_pallas.9} parent=11 // pred_fallthru
        _
      // Predicated region
      $region17: #{unet_decoder_pallas.9} parent=11 // pred_check
        %p171 = pneg %p80
      $region18: #{unet_decoder_pallas.9} parent=11 // pred_check_branch
        %173 = sbr.rel (%p171) target = $region20
      $region19: #{unet_decoder_pallas.9} parent=11 // pred_region
        _
      $region20: #{unet_decoder_pallas.9} parent=11 // pred_fallthru
        _
      // Predicated region
      $region21: #{unet_decoder_pallas.9} parent=11 // pred_check
        %p174 = pneg %p101
      $region22: #{unet_decoder_pallas.9} parent=11 // pred_check_branch
        %176 = sbr.rel (%p174) target = $region24
      $region23: #{unet_decoder_pallas.9} parent=11 // pred_region
        _
      $region24: #{unet_decoder_pallas.9} parent=11 // pred_fallthru
        _
    $region12: #{unet_decoder_pallas.9} parent=5 // pred_fallthru
      _
    %p177 = scmp.lt.s32.totalorder %s12, 2
    // Predicated region
    $region25: #{unet_decoder_pallas.9} parent=5 // pred_check
      %p178 = pneg %p177
    $region26: #{unet_decoder_pallas.9} parent=5 // pred_check_branch
      %180 = sbr.rel (%p178) target = $region28
    $region27: #{unet_decoder_pallas.9} parent=5 // pred_region
      // Predicated region
      $region29: #{unet_decoder_pallas.9} parent=27 // pred_check
        %p181 = pneg %p32
      $region30: #{unet_decoder_pallas.9} parent=27 // pred_check_branch
        %183 = sbr.rel (%p181) target = $region32
      $region31: #{unet_decoder_pallas.9} parent=27 // pred_region
        %p184 = scmp.lt.s32.totalorder %s12, 1
        %s185 = scalar_select %p184, %s12, 1
        %s186 = smul.addr %s185, 8
        %s187 = smul.addr %s186, 4
        %s188 = scalar_lea.vmem %s0, %s187
      $region32: #{unet_decoder_pallas.9} parent=27 // pred_fallthru
        _
    $region28: #{unet_decoder_pallas.9} parent=5 // pred_fallthru
      _
    %p189 = scmp.le.s32.totalorder 1, %s12
    %p190 = scmp.lt.s32.totalorder %s12, 3
    %p191 = pnand %p189, %p190
    %p192 = pneg %p191
    // Predicated region
    $region33: #{unet_decoder_pallas.9} parent=5 // pred_check
      _
    $region34: #{unet_decoder_pallas.9} parent=5 // pred_check_branch
      %194 = sbr.rel (%p191) target = $region36
    $region35: #{unet_decoder_pallas.9} parent=5 // pred_region
      %s195 = ssub.s32 %s12, 1
      %p196 = scmp.lt.s32.totalorder %s17, 1
      %s197 = scalar_select %p196, %s17, 1
      %s198 = smul.addr %s197, 8
      %s199 = smul.addr %s198, 4
      %s200 = scalar_lea.vmem %s0, %s199
      %p201 = pneg %p38
      %p202 = pneg %p35
      %p203 = pneg %p59
      %p204 = pneg %p56
      %p205 = pneg %p80
      %p206 = pneg %p77
      %p207 = pneg %p101
      %p208 = pneg %p98
      %p209 = pneg %p127
      %p210 = pneg %p124
      %p211 = scmp.lt.s32.totalorder %s17, 1
      %s212 = scalar_select %p211, %s17, 1
      %s213 = smul.addr %s212, 5
      %s214 = smul.addr %s213, 8
      %s215 = scalar_lea.vmem %s4, %s214
      %p216 = pneg %p153
      %p217 = pneg %p150
      %p218 = scmp.lt.s32.totalorder %s17, 1
      %s219 = scalar_select %p218, %s17, 1
      %s220 = smul.addr %s219, 4
      %s221 = smul.addr %s220, 8
      %s222 = scalar_lea.vmem %s5, %s221
      %p223 = scmp.lt.s32.totalorder %s17, 1
      %s224 = scalar_select %p223, %s17, 1
      %s225 = smul.addr %s224, 8
      %s226 = smul.addr %s225, 4
      %s227 = scalar_lea.vmem %s0, %s226
      %p228 = scmp.lt.s32.totalorder %s17, 1
      %s229 = scalar_select %p228, %s17, 1
      %s230 = smul.addr %s229, 5
      %s231 = smul.addr %s230, 8
      %s232 = scalar_lea.vmem %s4, %s231
      %p233 = scmp.lt.s32.totalorder %s17, 1
      %s234 = scalar_select %p233, %s17, 1
      %s235 = smul.addr %s234, 4
      %s236 = smul.addr %s235, 8
      %s237 = scalar_lea.vmem %s5, %s236
      %v239 = vld [vmem:[%s1] sm:$0xf]
      %v240 = vld [vmem:[%s1 + $0x4] sm:$0xf]
      %v241 = vld [vmem:[%s1 + $0x8] sm:$0xf]
      %v242 = vld [vmem:[%s1 + $0xc] sm:$0xf]
      %v243 = vld [vmem:[%s1 + $0x10] sm:$0xf]
      %v244 = vld [vmem:[%s1 + $0x14] sm:$0xf]
      %v245 = vld [vmem:[%s1 + $0x18] sm:$0xf]
      %v246 = vld [vmem:[%s1 + $0x1c] sm:$0xf]
      %v247 = vld [vmem:[%s1 + $0x20] sm:$0xf]
      %v248 = vld [vmem:[%s1 + $0x24] sm:$0xf]
      %v249 = vld [vmem:[%s1 + $0x28] sm:$0xf]
      %v250 = vld [vmem:[%s1 + $0x2c] sm:$0xf]
      %v251 = vld [vmem:[%s1 + $0x30] sm:$0xf]
      %v252 = vld [vmem:[%s1 + $0x34] sm:$0xf]
      %v253 = vld [vmem:[%s1 + $0x38] sm:$0xf]
      %v254 = vld [vmem:[%s1 + $0x3c] sm:$0xf]
      %v255 = vld [vmem:[%s1 + $0x40] sm:$0xf]
      %v256 = vld [vmem:[%s1 + $0x44] sm:$0xf]
      %v257 = vld [vmem:[%s1 + $0x48] sm:$0xf]
      %v258 = vld [vmem:[%s1 + $0x4c] sm:$0xf]
      %v259 = vld [vmem:[%s227] sm:$0xff]
      %v260 = vld [vmem:[%s227 + $0x8] sm:$0xff]
      %v261 = vld [vmem:[%s227 + $0x10] sm:$0xff]
      %v262 = vld [vmem:[%s227 + $0x18] sm:$0xff]
      %v283 = vunpack.c.l.b16 %v239
      %v284 = vunpack.c.l.b16 %v240
      %v285 = vunpack.c.l.b16 %v241
      %v286 = vunpack.c.l.b16 %v242
      %v287 = vunpack.c.l.b16 %v243
      %v288 = vunpack.c.l.b16 %v244
      %v289 = vunpack.c.l.b16 %v245
      %v290 = vunpack.c.l.b16 %v246
      %v291 = vunpack.c.l.b16 %v247
      %v292 = vunpack.c.l.b16 %v248
      %v293 = vunpack.c.l.b16 %v249
      %v294 = vunpack.c.l.b16 %v250
      %v295 = vunpack.c.l.b16 %v251
      %v296 = vunpack.c.l.b16 %v252
      %v297 = vunpack.c.l.b16 %v253
      %v298 = vunpack.c.l.b16 %v254
      %v299 = vunpack.c.l.b16 %v255
      %v300 = vunpack.c.l.b16 %v256
      %v301 = vunpack.c.l.b16 %v257
      %v302 = vunpack.c.l.b16 %v258
      %v303 = vpack.c.b16 %v284, %v283
      %v304 = vpack.c.b16 %v286, %v285
      %v305 = vpack.c.b16 %v288, %v287
      %v306 = vpack.c.b16 %v290, %v289
      %v307 = vpack.c.b16 %v292, %v291
      %v308 = vpack.c.b16 %v294, %v293
      %v309 = vpack.c.b16 %v296, %v295
      %v310 = vpack.c.b16 %v298, %v297
      %v311 = vpack.c.b16 %v300, %v299
      %v312 = vpack.c.b16 %v302, %v301
      %v317 = vunpack.c.l.b16 %v259
      %v318 = vunpack.c.h.b16 %v259
      %v319 = vunpack.c.l.b16 %v260
      %v320 = vunpack.c.h.b16 %v260
      %v321 = vunpack.c.l.b16 %v261
      %v322 = vunpack.c.h.b16 %v261
      %v323 = vunpack.c.l.b16 %v262
      %v324 = vunpack.c.h.b16 %v262
      %v325 = vpack.c.b16 %v321, %v317
      %v326 = vpack.c.b16 %v322, %v318
      %v327 = vpack.c.b16 %v323, %v319
      %v328 = vpack.c.b16 %v324, %v320
      %vm333 = vcmask 130048
      %v335 = vsel %vm333, %v303, 0
      %v338 = vsel %vm333, %v304, 0
      %v341 = vsel %vm333, %v305, 0
      %v344 = vsel %vm333, %v306, 0
      %v347 = vsel %vm333, %v307, 0
      %v350 = vsel %vm333, %v308, 0
      %v353 = vsel %vm333, %v309, 0
      %v356 = vsel %vm333, %v310, 0
      %v359 = vsel %vm333, %v311, 0
      %v362 = vsel %vm333, %v312, 0
      %364 = vmatprep.subr.bf16.mxu0 0
      %365 = vmatpush1.bf16.msra.mxu0 0
      %366 = vmatprep.subr.bf16.mxu0 0
      %367 = vmatpush1.bf16.msra.mxu0 0
      %368 = vmatprep.subr.bf16.mxu0 0
      %369 = vmatpush1.bf16.msra.mxu0 0
      %370 = vmatprep.subr.bf16.mxu0 0
      %371 = vmatpush1.bf16.msra.mxu0 0
      %372 = vmatprep.subr.bf16.mxu0 0
      %373 = vmatpush1.bf16.msra.mxu0 0
      %374 = vmatprep.subr.bf16.mxu0 0
      %375 = vmatpush1.bf16.msra.mxu0 0
      %376 = vmatprep.subr.bf16.mxu0 0
      %377 = vmatpush1.bf16.msra.mxu0 0
      %378 = vmatprep.subr.bf16.mxu0 %v326
      %379 = vmatpush1.bf16.msra.mxu0 %v325
      %380 = vmatprep.subr.bf16.mxu0 0
      %381 = vmatpush2.bf16.msra.mxu0 0
      %382 = vmatprep.subr.bf16.mxu0 0
      %383 = vmatpush2.bf16.msra.mxu0 0
      %384 = vmatprep.subr.bf16.mxu0 0
      %385 = vmatpush2.bf16.msra.mxu0 0
      %386 = vmatprep.subr.bf16.mxu0 0
      %387 = vmatpush2.bf16.msra.mxu0 0
      %388 = vmatprep.subr.bf16.mxu0 0
      %389 = vmatpush2.bf16.msra.mxu0 0
      %390 = vmatprep.subr.bf16.mxu0 0
      %391 = vmatpush2.bf16.msra.mxu0 0
      %392 = vmatprep.subr.bf16.mxu0 0
      %393 = vmatpush2.bf16.msra.mxu0 0
      %394 = vmatprep.subr.bf16.mxu0 0
      %395 = vmatpush2.bf16.msra.mxu0 0
      %396 = vmatprep.mubr.bf16.mxu0 0
      %397 = vmatmul.mubr.bf16.gmra.mxu0 %v335
      %v398 = vpop.f32.mrf.mxu0
      %v399 = vadd.f32 0.0, %v398
      %v400 = vpop.f32.mrf.mxu0
      %v401 = vadd.f32 0.0, %v400
      %v402 = vpop.f32.mrf.mxu0
      %v403 = vadd.f32 0.0, %v402
      %v404 = vpop.f32.mrf.mxu0
      %v405 = vadd.f32 0.0, %v404
      %406 = vmatprep.mubr.bf16.mxu0 0
      %407 = vmatmul.mubr.bf16.gmra.mxu0 %v338
      %v408 = vpop.f32.mrf.mxu0
      %v409 = vadd.f32 0.0, %v408
      %v410 = vpop.f32.mrf.mxu0
      %v411 = vadd.f32 0.0, %v410
      %v412 = vpop.f32.mrf.mxu0
      %v413 = vadd.f32 0.0, %v412
      %v414 = vpop.f32.mrf.mxu0
      %v415 = vadd.f32 0.0, %v414
      %416 = vmatprep.mubr.bf16.mxu0 0
      %417 = vmatmul.mubr.bf16.gmra.mxu0 %v341
      %v418 = vpop.f32.mrf.mxu0
      %v419 = vadd.f32 0.0, %v418
      %v420 = vpop.f32.mrf.mxu0
      %v421 = vadd.f32 0.0, %v420
      %v422 = vpop.f32.mrf.mxu0
      %v423 = vadd.f32 0.0, %v422
      %v424 = vpop.f32.mrf.mxu0
      %v425 = vadd.f32 0.0, %v424
      %426 = vmatprep.mubr.bf16.mxu0 0
      %427 = vmatmul.mubr.bf16.gmra.mxu0 %v344
      %v428 = vpop.f32.mrf.mxu0
      %v429 = vadd.f32 0.0, %v428
      %v430 = vpop.f32.mrf.mxu0
      %v431 = vadd.f32 0.0, %v430
      %v432 = vpop.f32.mrf.mxu0
      %v433 = vadd.f32 0.0, %v432
      %v434 = vpop.f32.mrf.mxu0
      %v435 = vadd.f32 0.0, %v434
      %436 = vmatprep.mubr.bf16.mxu0 0
      %437 = vmatmul.mubr.bf16.gmra.mxu0 %v347
      %v438 = vpop.f32.mrf.mxu0
      %v439 = vadd.f32 0.0, %v438
      %v440 = vpop.f32.mrf.mxu0
      %v441 = vadd.f32 0.0, %v440
      %v442 = vpop.f32.mrf.mxu0
      %v443 = vadd.f32 0.0, %v442
      %v444 = vpop.f32.mrf.mxu0
      %v445 = vadd.f32 0.0, %v444
      %446 = vmatprep.mubr.bf16.mxu0 0
      %447 = vmatmul.mubr.bf16.gmra.mxu0 %v350
      %v448 = vpop.f32.mrf.mxu0
      %v449 = vadd.f32 0.0, %v448
      %v450 = vpop.f32.mrf.mxu0
      %v451 = vadd.f32 0.0, %v450
      %v452 = vpop.f32.mrf.mxu0
      %v453 = vadd.f32 0.0, %v452
      %v454 = vpop.f32.mrf.mxu0
      %v455 = vadd.f32 0.0, %v454
      %456 = vmatprep.mubr.bf16.mxu0 0
      %457 = vmatmul.mubr.bf16.gmra.mxu0 %v353
      %v458 = vpop.f32.mrf.mxu0
      %v459 = vadd.f32 0.0, %v458
      %v460 = vpop.f32.mrf.mxu0
      %v461 = vadd.f32 0.0, %v460
      %v462 = vpop.f32.mrf.mxu0
      %v463 = vadd.f32 0.0, %v462
      %v464 = vpop.f32.mrf.mxu0
      %v465 = vadd.f32 0.0, %v464
      %466 = vmatprep.mubr.bf16.mxu0 0
      %467 = vmatmul.mubr.bf16.gmra.mxu0 %v356
      %v468 = vpop.f32.mrf.mxu0
      %v469 = vadd.f32 0.0, %v468
      %v470 = vpop.f32.mrf.mxu0
      %v471 = vadd.f32 0.0, %v470
      %v472 = vpop.f32.mrf.mxu0
      %v473 = vadd.f32 0.0, %v472
      %v474 = vpop.f32.mrf.mxu0
      %v475 = vadd.f32 0.0, %v474
      %476 = vmatprep.mubr.bf16.mxu0 0
      %477 = vmatmul.mubr.bf16.gmra.mxu0 %v359
      %v478 = vpop.f32.mrf.mxu0
      %v479 = vadd.f32 0.0, %v478
      %v480 = vpop.f32.mrf.mxu0
      %v481 = vadd.f32 0.0, %v480
      %v482 = vpop.f32.mrf.mxu0
      %v483 = vadd.f32 0.0, %v482
      %v484 = vpop.f32.mrf.mxu0
      %v485 = vadd.f32 0.0, %v484
      %486 = vmatprep.mubr.bf16.mxu0 0
      %487 = vmatmul.mubr.bf16.gmra.mxu0 %v362
      %v488 = vpop.f32.mrf.mxu0
      %v489 = vadd.f32 0.0, %v488
      %v490 = vpop.f32.mrf.mxu0
      %v491 = vadd.f32 0.0, %v490
      %v492 = vpop.f32.mrf.mxu0
      %v493 = vadd.f32 0.0, %v492
      %v494 = vpop.f32.mrf.mxu0
      %v495 = vadd.f32 0.0, %v494
      %496 = vdwg.mxu0
      %497 = vmatprep.subr.bf16.mxu0 0
      %498 = vmatpush1.bf16.msra.mxu0 0
      %499 = vmatprep.subr.bf16.mxu0 0
      %500 = vmatpush1.bf16.msra.mxu0 0
      %501 = vmatprep.subr.bf16.mxu0 0
      %502 = vmatpush1.bf16.msra.mxu0 0
      %503 = vmatprep.subr.bf16.mxu0 0
      %504 = vmatpush1.bf16.msra.mxu0 0
      %505 = vmatprep.subr.bf16.mxu0 0
      %506 = vmatpush1.bf16.msra.mxu0 0
      %507 = vmatprep.subr.bf16.mxu0 0
      %508 = vmatpush1.bf16.msra.mxu0 0
      %509 = vmatprep.subr.bf16.mxu0 0
      %510 = vmatpush1.bf16.msra.mxu0 0
      %511 = vmatprep.subr.bf16.mxu0 %v328
      %512 = vmatpush1.bf16.msra.mxu0 %v327
      %513 = vmatprep.subr.bf16.mxu0 0
      %514 = vmatpush2.bf16.msra.mxu0 0
      %515 = vmatprep.subr.bf16.mxu0 0
      %516 = vmatpush2.bf16.msra.mxu0 0
      %517 = vmatprep.subr.bf16.mxu0 0
      %518 = vmatpush2.bf16.msra.mxu0 0
      %519 = vmatprep.subr.bf16.mxu0 0
      %520 = vmatpush2.bf16.msra.mxu0 0
      %521 = vmatprep.subr.bf16.mxu0 0
      %522 = vmatpush2.bf16.msra.mxu0 0
      %523 = vmatprep.subr.bf16.mxu0 0
      %524 = vmatpush2.bf16.msra.mxu0 0
      %525 = vmatprep.subr.bf16.mxu0 0
      %526 = vmatpush2.bf16.msra.mxu0 0
      %527 = vmatprep.subr.bf16.mxu0 0
      %528 = vmatpush2.bf16.msra.mxu0 0
      %529 = vmatprep.mubr.bf16.mxu0 0
      %530 = vmatmul.mubr.bf16.gmra.mxu0 %v335
      %v531 = vpop.f32.mrf.mxu0
      %v532 = vadd.f32 0.0, %v531
      %v533 = vpop.f32.mrf.mxu0
      %v534 = vadd.f32 0.0, %v533
      %v535 = vpop.f32.mrf.mxu0
      %v536 = vadd.f32 0.0, %v535
      %v537 = vpop.f32.mrf.mxu0
      %v538 = vadd.f32 0.0, %v537
      %539 = vmatprep.mubr.bf16.mxu0 0
      %540 = vmatmul.mubr.bf16.gmra.mxu0 %v338
      %v541 = vpop.f32.mrf.mxu0
      %v542 = vadd.f32 0.0, %v541
      %v543 = vpop.f32.mrf.mxu0
      %v544 = vadd.f32 0.0, %v543
      %v545 = vpop.f32.mrf.mxu0
      %v546 = vadd.f32 0.0, %v545
      %v547 = vpop.f32.mrf.mxu0
      %v548 = vadd.f32 0.0, %v547
      %549 = vmatprep.mubr.bf16.mxu0 0
      %550 = vmatmul.mubr.bf16.gmra.mxu0 %v341
      %v551 = vpop.f32.mrf.mxu0
      %v552 = vadd.f32 0.0, %v551
      %v553 = vpop.f32.mrf.mxu0
      %v554 = vadd.f32 0.0, %v553
      %v555 = vpop.f32.mrf.mxu0
      %v556 = vadd.f32 0.0, %v555
      %v557 = vpop.f32.mrf.mxu0
      %v558 = vadd.f32 0.0, %v557
      %559 = vmatprep.mubr.bf16.mxu0 0
      %560 = vmatmul.mubr.bf16.gmra.mxu0 %v344
      %v561 = vpop.f32.mrf.mxu0
      %v562 = vadd.f32 0.0, %v561
      %v563 = vpop.f32.mrf.mxu0
      %v564 = vadd.f32 0.0, %v563
      %v565 = vpop.f32.mrf.mxu0
      %v566 = vadd.f32 0.0, %v565
      %v567 = vpop.f32.mrf.mxu0
      %v568 = vadd.f32 0.0, %v567
      %569 = vmatprep.mubr.bf16.mxu0 0
      %570 = vmatmul.mubr.bf16.gmra.mxu0 %v347
      %v571 = vpop.f32.mrf.mxu0
      %v572 = vadd.f32 0.0, %v571
      %v573 = vpop.f32.mrf.mxu0
      %v574 = vadd.f32 0.0, %v573
      %v575 = vpop.f32.mrf.mxu0
      %v576 = vadd.f32 0.0, %v575
      %v577 = vpop.f32.mrf.mxu0
      %v578 = vadd.f32 0.0, %v577
      %579 = vmatprep.mubr.bf16.mxu0 0
      %580 = vmatmul.mubr.bf16.gmra.mxu0 %v350
      %v581 = vpop.f32.mrf.mxu0
      %v582 = vadd.f32 0.0, %v581
      %v583 = vpop.f32.mrf.mxu0
      %v584 = vadd.f32 0.0, %v583
      %v585 = vpop.f32.mrf.mxu0
      %v586 = vadd.f32 0.0, %v585
      %v587 = vpop.f32.mrf.mxu0
      %v588 = vadd.f32 0.0, %v587
      %589 = vmatprep.mubr.bf16.mxu0 0
      %590 = vmatmul.mubr.bf16.gmra.mxu0 %v353
      %v591 = vpop.f32.mrf.mxu0
      %v592 = vadd.f32 0.0, %v591
      %v593 = vpop.f32.mrf.mxu0
      %v594 = vadd.f32 0.0, %v593
      %v595 = vpop.f32.mrf.mxu0
      %v596 = vadd.f32 0.0, %v595
      %v597 = vpop.f32.mrf.mxu0
      %v598 = vadd.f32 0.0, %v597
      %599 = vmatprep.mubr.bf16.mxu0 0
      %600 = vmatmul.mubr.bf16.gmra.mxu0 %v356
      %v601 = vpop.f32.mrf.mxu0
      %v602 = vadd.f32 0.0, %v601
      %v603 = vpop.f32.mrf.mxu0
      %v604 = vadd.f32 0.0, %v603
      %v605 = vpop.f32.mrf.mxu0
      %v606 = vadd.f32 0.0, %v605
      %v607 = vpop.f32.mrf.mxu0
      %v608 = vadd.f32 0.0, %v607
      %609 = vmatprep.mubr.bf16.mxu0 0
      %610 = vmatmul.mubr.bf16.gmra.mxu0 %v359
      %v611 = vpop.f32.mrf.mxu0
      %v612 = vadd.f32 0.0, %v611
      %v613 = vpop.f32.mrf.mxu0
      %v614 = vadd.f32 0.0, %v613
      %v615 = vpop.f32.mrf.mxu0
      %v616 = vadd.f32 0.0, %v615
      %v617 = vpop.f32.mrf.mxu0
      %v618 = vadd.f32 0.0, %v617
      %619 = vmatprep.mubr.bf16.mxu0 0
      %620 = vmatmul.mubr.bf16.gmra.mxu0 %v362
      %v621 = vpop.f32.mrf.mxu0
      %v622 = vadd.f32 0.0, %v621
      %v623 = vpop.f32.mrf.mxu0
      %v624 = vadd.f32 0.0, %v623
      %v625 = vpop.f32.mrf.mxu0
      %v626 = vadd.f32 0.0, %v625
      %v627 = vpop.f32.mrf.mxu0
      %v628 = vadd.f32 0.0, %v627
      %629 = vdwg.mxu0
      %vm630 = vcmask 982016
      %v631 = vsel %vm630, %v534, 0.0
      %v632 = vsel %vm630, %v538, 0.0
      %v633 = vsel %vm630, %v544, 0.0
      %v634 = vsel %vm630, %v548, 0.0
      %643 = vrot.lane.b32.xlu0 %v419, 8
      %v644 = vpop.permute.xlu0 %643
      %645 = vrot.lane.b32.xlu0 %v421, 8
      %v646 = vpop.permute.xlu0 %645
      %647 = vrot.lane.b32.xlu0 %v552, 8
      %v648 = vpop.permute.xlu0 %647
      %649 = vrot.lane.b32.xlu0 %v554, 8
      %v650 = vpop.permute.xlu0 %649
      %651 = vrot.lane.b32.xlu0 %v423, 8
      %v652 = vpop.permute.xlu0 %651
      %653 = vrot.lane.b32.xlu0 %v425, 8
      %v654 = vpop.permute.xlu0 %653
      %655 = vrot.lane.b32.xlu0 %v556, 8
      %v656 = vpop.permute.xlu0 %655
      %657 = vrot.lane.b32.xlu0 %v558, 8
      %v658 = vpop.permute.xlu0 %657
      %vm659 = vcmask 64512
      %v660 = vsel %vm659, %v644, %v646
      %v661 = vsel %vm659, %v646, %v648
      %v662 = vsel %vm659, %v648, %v650
      %v663 = vsel %vm659, %v652, %v654
      %v664 = vsel %vm659, %v654, %v656
      %v665 = vsel %vm659, %v656, %v658
      %v674 = vsel %vm659, 0.0, %v644
      %v675 = vsel %vm659, 0.0, %v652
      %v676 = vadd.f32 %v399, %v674
      %v677 = vadd.f32 %v401, %v660
      %v678 = vadd.f32 %v532, %v661
      %v679 = vadd.f32 %v631, %v662
      %v680 = vadd.f32 %v403, %v675
      %v681 = vadd.f32 %v405, %v663
      %v682 = vadd.f32 %v536, %v664
      %v683 = vadd.f32 %v632, %v665
      %692 = vrot.lane.b32.xlu0 %v429, 8
      %v693 = vpop.permute.xlu0 %692
      %694 = vrot.lane.b32.xlu0 %v431, 8
      %v695 = vpop.permute.xlu0 %694
      %696 = vrot.lane.b32.xlu0 %v562, 8
      %v697 = vpop.permute.xlu0 %696
      %698 = vrot.lane.b32.xlu0 %v564, 8
      %v699 = vpop.permute.xlu0 %698
      %700 = vrot.lane.b32.xlu0 %v433, 8
      %v701 = vpop.permute.xlu0 %700
      %702 = vrot.lane.b32.xlu0 %v435, 8
      %v703 = vpop.permute.xlu0 %702
      %704 = vrot.lane.b32.xlu0 %v566, 8
      %v705 = vpop.permute.xlu0 %704
      %706 = vrot.lane.b32.xlu0 %v568, 8
      %v707 = vpop.permute.xlu0 %706
      %v708 = vsel %vm659, %v693, %v695
      %v709 = vsel %vm659, %v695, %v697
      %v710 = vsel %vm659, %v697, %v699
      %v711 = vsel %vm659, %v701, %v703
      %v712 = vsel %vm659, %v703, %v705
      %v713 = vsel %vm659, %v705, %v707
      %v722 = vsel %vm659, 0.0, %v693
      %v723 = vsel %vm659, 0.0, %v701
      %v724 = vadd.f32 %v409, %v722
      %v725 = vadd.f32 %v411, %v708
      %v726 = vadd.f32 %v542, %v709
      %v727 = vadd.f32 %v633, %v710
      %v728 = vadd.f32 %v413, %v723
      %v729 = vadd.f32 %v415, %v711
      %v730 = vadd.f32 %v546, %v712
      %v731 = vadd.f32 %v634, %v713
      %740 = vrot.lane.b32.xlu0 %v439, 16
      %v741 = vpop.permute.xlu0 %740
      %742 = vrot.lane.b32.xlu0 %v441, 16
      %v743 = vpop.permute.xlu0 %742
      %744 = vrot.lane.b32.xlu0 %v572, 16
      %v745 = vpop.permute.xlu0 %744
      %746 = vrot.lane.b32.xlu0 %v574, 16
      %v747 = vpop.permute.xlu0 %746
      %748 = vrot.lane.b32.xlu0 %v443, 16
      %v749 = vpop.permute.xlu0 %748
      %750 = vrot.lane.b32.xlu0 %v445, 16
      %v751 = vpop.permute.xlu0 %750
      %752 = vrot.lane.b32.xlu0 %v576, 16
      %v753 = vpop.permute.xlu0 %752
      %754 = vrot.lane.b32.xlu0 %v578, 16
      %v755 = vpop.permute.xlu0 %754
      %v756 = vsel %vm333, %v741, %v743
      %v757 = vsel %vm333, %v743, %v745
      %v758 = vsel %vm333, %v745, %v747
      %v759 = vsel %vm333, %v749, %v751
      %v760 = vsel %vm333, %v751, %v753
      %v761 = vsel %vm333, %v753, %v755
      %v772 = vsel %vm333, 0.0, %v741
      %v773 = vsel %vm333, 0.0, %v749
      %v774 = vadd.f32 %v676, %v772
      %v775 = vadd.f32 %v677, %v756
      %v776 = vadd.f32 %v678, %v757
      %v777 = vadd.f32 %v679, %v758
      %v778 = vadd.f32 %v747, 0.0
      %v779 = vadd.f32 %v680, %v773
      %v780 = vadd.f32 %v681, %v759
      %v781 = vadd.f32 %v682, %v760
      %v782 = vadd.f32 %v683, %v761
      %v783 = vadd.f32 %v755, 0.0
      %v784 = vld [vmem:[%s3] sm:$0xf]
      %v786 = vlaneseq
      %v787 = vshrl.u32 %v786, 7
      %v788 = vsub.s32 0, %v787
      %v789 = vrot.slane %v784, %v788
      %v790 = vlaneseq
      %v791 = vshrl.u32 %v790, 7
      %v792 = vsub.s32 1, %v791
      %v793 = vrot.slane %v784, %v792
      %v794 = vlaneseq
      %v795 = vshrl.u32 %v794, 7
      %v796 = vsub.s32 2, %v795
      %v797 = vrot.slane %v784, %v796
      %v798 = vlaneseq
      %v799 = vshrl.u32 %v798, 7
      %v800 = vsub.s32 3, %v799
      %v801 = vrot.slane %v784, %v800
      %v806 = vmul.f32 %v449, %v789
      %v807 = vmul.f32 %v451, %v793
      %v808 = vmul.f32 %v582, %v797
      %v809 = vmul.f32 %v584, %v801
      %v810 = vmul.f32 %v453, %v789
      %v811 = vmul.f32 %v455, %v793
      %v812 = vmul.f32 %v586, %v797
      %v813 = vmul.f32 %v588, %v801
      %822 = vrot.lane.b32.xlu0 %v806, 1
      %v823 = vpop.permute.xlu0 %822
      %824 = vrot.lane.b32.xlu0 %v807, 1
      %v825 = vpop.permute.xlu0 %824
      %826 = vrot.lane.b32.xlu0 %v808, 1
      %v827 = vpop.permute.xlu0 %826
      %828 = vrot.lane.b32.xlu0 %v809, 1
      %v829 = vpop.permute.xlu0 %828
      %830 = vrot.lane.b32.xlu0 %v810, 1
      %v831 = vpop.permute.xlu0 %830
      %832 = vrot.lane.b32.xlu0 %v811, 1
      %v833 = vpop.permute.xlu0 %832
      %834 = vrot.lane.b32.xlu0 %v812, 1
      %v835 = vpop.permute.xlu0 %834
      %836 = vrot.lane.b32.xlu0 %v813, 1
      %v837 = vpop.permute.xlu0 %836
      %vm838 = vcmask 7168
      %v839 = vsel %vm838, %v823, %v825
      %v840 = vsel %vm838, %v825, %v827
      %v841 = vsel %vm838, %v827, %v829
      %v842 = vsel %vm838, %v831, %v833
      %v843 = vsel %vm838, %v833, %v835
      %v844 = vsel %vm838, %v835, %v837
      %v853 = vsel %vm838, 0.0, %v823
      %v854 = vsel %vm838, 0.0, %v831
      %vm855 = vcmask 990208
      %v856 = vsel %vm855, %v841, 0.0
      %v857 = vsel %vm855, %v844, 0.0
      %v858 = vadd.f32 %v774, %v853
      %v859 = vadd.f32 %v775, %v839
      %v860 = vadd.f32 %v776, %v840
      %v861 = vadd.f32 %v777, %v856
      %v862 = vadd.f32 %v778, 0.0
      %v863 = vadd.f32 %v779, %v854
      %v864 = vadd.f32 %v780, %v842
      %v865 = vadd.f32 %v781, %v843
      %v866 = vadd.f32 %v782, %v857
      %v867 = vadd.f32 %v783, 0.0
      %v868 = vmul.f32 %v459, %v789
      %v869 = vmul.f32 %v461, %v793
      %v870 = vmul.f32 %v592, %v797
      %v871 = vmul.f32 %v594, %v801
      %v872 = vmul.f32 %v463, %v789
      %v873 = vmul.f32 %v465, %v793
      %v874 = vmul.f32 %v596, %v797
      %v875 = vmul.f32 %v598, %v801
      %884 = vrot.lane.b32.xlu0 %v868, 1
      %v885 = vpop.permute.xlu0 %884
      %886 = vrot.lane.b32.xlu0 %v869, 1
      %v887 = vpop.permute.xlu0 %886
      %888 = vrot.lane.b32.xlu0 %v870, 1
      %v889 = vpop.permute.xlu0 %888
      %890 = vrot.lane.b32.xlu0 %v871, 1
      %v891 = vpop.permute.xlu0 %890
      %892 = vrot.lane.b32.xlu0 %v872, 1
      %v893 = vpop.permute.xlu0 %892
      %894 = vrot.lane.b32.xlu0 %v873, 1
      %v895 = vpop.permute.xlu0 %894
      %896 = vrot.lane.b32.xlu0 %v874, 1
      %v897 = vpop.permute.xlu0 %896
      %898 = vrot.lane.b32.xlu0 %v875, 1
      %v899 = vpop.permute.xlu0 %898
      %v900 = vsel %vm838, %v885, %v887
      %v901 = vsel %vm838, %v887, %v889
      %v902 = vsel %vm838, %v889, %v891
      %v903 = vsel %vm838, %v893, %v895
      %v904 = vsel %vm838, %v895, %v897
      %v905 = vsel %vm838, %v897, %v899
      %v914 = vsel %vm838, 0.0, %v885
      %v915 = vsel %vm838, 0.0, %v893
      %v916 = vsel %vm855, %v902, 0.0
      %v917 = vsel %vm855, %v905, 0.0
      %v918 = vadd.f32 %v724, %v914
      %v919 = vadd.f32 %v725, %v900
      %v920 = vadd.f32 %v726, %v901
      %v921 = vadd.f32 %v727, %v916
      %v922 = vadd.f32 %v728, %v915
      %v923 = vadd.f32 %v729, %v903
      %v924 = vadd.f32 %v730, %v904
      %v925 = vadd.f32 %v731, %v917
      %v926 = vmul.f32 %v469, %v789
      %v927 = vmul.f32 %v471, %v793
      %v928 = vmul.f32 %v602, %v797
      %v929 = vmul.f32 %v604, %v801
      %v930 = vmul.f32 %v473, %v789
      %v931 = vmul.f32 %v475, %v793
      %v932 = vmul.f32 %v606, %v797
      %v933 = vmul.f32 %v608, %v801
      %942 = vrot.lane.b32.xlu0 %v926, 9
      %v943 = vpop.permute.xlu0 %942
      %944 = vrot.lane.b32.xlu0 %v927, 9
      %v945 = vpop.permute.xlu0 %944
      %946 = vrot.lane.b32.xlu0 %v928, 9
      %v947 = vpop.permute.xlu0 %946
      %948 = vrot.lane.b32.xlu0 %v929, 9
      %v949 = vpop.permute.xlu0 %948
      %950 = vrot.lane.b32.xlu0 %v930, 9
      %v951 = vpop.permute.xlu0 %950
      %952 = vrot.lane.b32.xlu0 %v931, 9
      %v953 = vpop.permute.xlu0 %952
      %954 = vrot.lane.b32.xlu0 %v932, 9
      %v955 = vpop.permute.xlu0 %954
      %956 = vrot.lane.b32.xlu0 %v933, 9
      %v957 = vpop.permute.xlu0 %956
      %vm958 = vcmask 72704
      %v959 = vsel %vm958, %v943, %v945
      %v960 = vsel %vm958, %v945, %v947
      %v961 = vsel %vm958, %v947, %v949
      %v962 = vsel %vm958, %v951, %v953
      %v963 = vsel %vm958, %v953, %v955
      %v964 = vsel %vm958, %v955, %v957
      %v975 = vsel %vm958, 0.0, %v943
      %v976 = vsel %vm958, 0.0, %v951
      %v977 = vsel %vm838, %v949, 0.0
      %v978 = vsel %vm838, %v957, 0.0
      %v979 = vadd.f32 %v858, %v975
      %v980 = vadd.f32 %v859, %v959
      %v981 = vadd.f32 %v860, %v960
      %v982 = vadd.f32 %v861, %v961
      %v983 = vadd.f32 %v862, %v977
      %v984 = vadd.f32 %v863, %v976
      %v985 = vadd.f32 %v864, %v962
      %v986 = vadd.f32 %v865, %v963
      %v987 = vadd.f32 %v866, %v964
      %v988 = vadd.f32 %v867, %v978
      %v989 = vmul.f32 %v479, %v789
      %v990 = vmul.f32 %v481, %v793
      %v991 = vmul.f32 %v612, %v797
      %v992 = vmul.f32 %v614, %v801
      %v993 = vmul.f32 %v483, %v789
      %v994 = vmul.f32 %v485, %v793
      %v995 = vmul.f32 %v616, %v797
      %v996 = vmul.f32 %v618, %v801
      %1005 = vrot.lane.b32.xlu0 %v989, 9
      %v1006 = vpop.permute.xlu0 %1005
      %1007 = vrot.lane.b32.xlu0 %v990, 9
      %v1008 = vpop.permute.xlu0 %1007
      %1009 = vrot.lane.b32.xlu0 %v991, 9
      %v1010 = vpop.permute.xlu0 %1009
      %1011 = vrot.lane.b32.xlu0 %v992, 9
      %v1012 = vpop.permute.xlu0 %1011
      %1013 = vrot.lane.b32.xlu0 %v993, 9
      %v1014 = vpop.permute.xlu0 %1013
      %1015 = vrot.lane.b32.xlu0 %v994, 9
      %v1016 = vpop.permute.xlu0 %1015
      %1017 = vrot.lane.b32.xlu0 %v995, 9
      %v1018 = vpop.permute.xlu0 %1017
      %1019 = vrot.lane.b32.xlu0 %v996, 9
      %v1020 = vpop.permute.xlu0 %1019
      %v1021 = vsel %vm958, %v1006, %v1008
      %v1022 = vsel %vm958, %v1008, %v1010
      %v1023 = vsel %vm958, %v1010, %v1012
      %v1024 = vsel %vm958, %v1014, %v1016
      %v1025 = vsel %vm958, %v1016, %v1018
      %v1026 = vsel %vm958, %v1018, %v1020
      %v1035 = vsel %vm958, 0.0, %v1006
      %v1036 = vsel %vm958, 0.0, %v1014
      %v1037 = vadd.f32 %v918, %v1035
      %v1038 = vadd.f32 %v919, %v1021
      %v1039 = vadd.f32 %v920, %v1022
      %v1040 = vadd.f32 %v921, %v1023
      %v1041 = vadd.f32 %v922, %v1036
      %v1042 = vadd.f32 %v923, %v1024
      %v1043 = vadd.f32 %v924, %v1025
      %v1044 = vadd.f32 %v925, %v1026
      %v1045 = vmul.f32 %v489, %v789
      %v1046 = vmul.f32 %v491, %v793
      %v1047 = vmul.f32 %v622, %v797
      %v1048 = vmul.f32 %v624, %v801
      %v1049 = vmul.f32 %v493, %v789
      %v1050 = vmul.f32 %v495, %v793
      %v1051 = vmul.f32 %v626, %v797
      %v1052 = vmul.f32 %v628, %v801
      %1061 = vrot.lane.b32.xlu0 %v1045, 17
      %v1062 = vpop.permute.xlu0 %1061
      %1063 = vrot.lane.b32.xlu0 %v1046, 17
      %v1064 = vpop.permute.xlu0 %1063
      %1065 = vrot.lane.b32.xlu0 %v1047, 17
      %v1066 = vpop.permute.xlu0 %1065
      %1067 = vrot.lane.b32.xlu0 %v1048, 17
      %v1068 = vpop.permute.xlu0 %1067
      %1069 = vrot.lane.b32.xlu0 %v1049, 17
      %v1070 = vpop.permute.xlu0 %1069
      %1071 = vrot.lane.b32.xlu0 %v1050, 17
      %v1072 = vpop.permute.xlu0 %1071
      %1073 = vrot.lane.b32.xlu0 %v1051, 17
      %v1074 = vpop.permute.xlu0 %1073
      %1075 = vrot.lane.b32.xlu0 %v1052, 17
      %v1076 = vpop.permute.xlu0 %1075
      %vm1077 = vcmask 138240
      %v1078 = vsel %vm1077, %v1062, %v1064
      %v1079 = vsel %vm1077, %v1064, %v1066
      %v1080 = vsel %vm1077, %v1066, %v1068
      %v1081 = vsel %vm1077, %v1070, %v1072
      %v1082 = vsel %vm1077, %v1072, %v1074
      %v1083 = vsel %vm1077, %v1074, %v1076
      %v1094 = vsel %vm1077, 0.0, %v1062
      %v1095 = vsel %vm1077, 0.0, %v1070
      %v1096 = vadd.f32 %v979, %v1094
      %v1097 = vadd.f32 %v980, %v1078
      %v1098 = vadd.f32 %v981, %v1079
      %v1099 = vadd.f32 %v982, %v1080
      %v1100 = vadd.f32 %v983, %v1068
      %v1101 = vadd.f32 %v984, %v1095
      %v1102 = vadd.f32 %v985, %v1081
      %v1103 = vadd.f32 %v986, %v1082
      %v1104 = vadd.f32 %v987, %v1083
      %v1105 = vadd.f32 %v988, %v1076
      %v1106 = vld [vmem:[%s2] sm:$0xff]
      %1108 = vset.pattern.permute.xlu0 0
      %1109 = vperm.xlu0 %1108, %v1106
      %v1110 = vpop.permute.xlu0 %1109
      %v1112 = vadd.f32 %v1096, %v1110
      %v1113 = vadd.f32 %v1097, %v1110
      %v1114 = vadd.f32 %v1098, %v1110
      %v1115 = vadd.f32 %v1099, %v1110
      %v1116 = vadd.f32 %v1100, %v1110
      %1117 = vset.pattern.permute.xlu0 1
      %1118 = vperm.xlu0 %1117, %v1106
      %v1119 = vpop.permute.xlu0 %1118
      %v1121 = vadd.f32 %v1101, %v1119
      %v1122 = vadd.f32 %v1102, %v1119
      %v1123 = vadd.f32 %v1103, %v1119
      %v1124 = vadd.f32 %v1104, %v1119
      %v1125 = vadd.f32 %v1105, %v1119
      %v1126 = vxor.u32 %v1121, 2147483648
      %v1127 = vxor.u32 %v1122, 2147483648
      %v1128 = vxor.u32 %v1123, 2147483648
      %v1129 = vxor.u32 %v1124, 2147483648
      %v1130 = vxor.u32 %v1125, 2147483648
      %v1131 = vmul.f32 %v1126, 1.442695
      %v1132 = vpow.pop %v1131
      %v1133 = vmul.f32 %v1127, 1.442695
      %v1134 = vpow.pop %v1133
      %v1135 = vmul.f32 %v1128, 1.442695
      %v1136 = vpow.pop %v1135
      %v1137 = vmul.f32 %v1129, 1.442695
      %v1138 = vpow.pop %v1137
      %v1139 = vmul.f32 %v1130, 1.442695
      %v1140 = vpow.pop %v1139
      %v1141 = vadd.f32 %v1132, 1.0
      %v1142 = vadd.f32 %v1134, 1.0
      %v1143 = vadd.f32 %v1136, 1.0
      %v1144 = vadd.f32 %v1138, 1.0
      %v1145 = vadd.f32 %v1140, 1.0
      %v1146 = vrcp.pop %v1141
      %v1147 = vmul.f32 1.0, %v1146
      %v1148 = vrcp.pop %v1142
      %v1149 = vmul.f32 1.0, %v1148
      %v1150 = vrcp.pop %v1143
      %v1151 = vmul.f32 1.0, %v1150
      %v1152 = vrcp.pop %v1144
      %v1153 = vmul.f32 1.0, %v1152
      %v1154 = vrcp.pop %v1145
      %v1155 = vmul.f32 1.0, %v1154
      %v1156 = vmul.f32 %v1112, %v1147
      %v1157 = vmul.f32 %v1113, %v1149
      %v1158 = vmul.f32 %v1114, %v1151
      %v1159 = vmul.f32 %v1115, %v1153
      %v1160 = vmul.f32 %v1116, %v1155
      %v1161 = vadd.f32 %v1037, %v1110
      %v1162 = vadd.f32 %v1038, %v1110
      %v1163 = vadd.f32 %v1039, %v1110
      %v1164 = vadd.f32 %v1040, %v1110
      %v1165 = vadd.f32 %v1041, %v1119
      %v1166 = vadd.f32 %v1042, %v1119
      %v1167 = vadd.f32 %v1043, %v1119
      %v1168 = vadd.f32 %v1044, %v1119
      %v1169 = vxor.u32 %v1165, 2147483648
      %v1170 = vxor.u32 %v1166, 2147483648
      %v1171 = vxor.u32 %v1167, 2147483648
      %v1172 = vxor.u32 %v1168, 2147483648
      %v1173 = vmul.f32 %v1169, 1.442695
      %v1174 = vpow.pop %v1173
      %v1175 = vmul.f32 %v1170, 1.442695
      %v1176 = vpow.pop %v1175
      %v1177 = vmul.f32 %v1171, 1.442695
      %v1178 = vpow.pop %v1177
      %v1179 = vmul.f32 %v1172, 1.442695
      %v1180 = vpow.pop %v1179
      %v1181 = vadd.f32 %v1174, 1.0
      %v1182 = vadd.f32 %v1176, 1.0
      %v1183 = vadd.f32 %v1178, 1.0
      %v1184 = vadd.f32 %v1180, 1.0
      %v1185 = vrcp.pop %v1181
      %v1186 = vmul.f32 1.0, %v1185
      %v1187 = vrcp.pop %v1182
      %v1188 = vmul.f32 1.0, %v1187
      %v1189 = vrcp.pop %v1183
      %v1190 = vmul.f32 1.0, %v1189
      %v1191 = vrcp.pop %v1184
      %v1192 = vmul.f32 1.0, %v1191
      %v1193 = vmul.f32 %v1161, %v1186
      %v1194 = vmul.f32 %v1162, %v1188
      %v1195 = vmul.f32 %v1163, %v1190
      %v1196 = vmul.f32 %v1164, %v1192
      %v1197 = vadd.f32 %v1156, %v1157
      %v1198 = vadd.f32 %v1197, %v1158
      %v1199 = vadd.f32 %v1198, %v1159
      %v1200 = vsel %vm659, %v1160, 0.0
      %v1201 = vadd.f32 %v1199, %v1200
      %1202 = vadd.xlane.f32.xlu0 %v1201
      %v1203 = vpop.xlane.xlu0 %1202
      %v1204 = vadd.f32 %v1193, %v1194
      %v1205 = vadd.f32 %v1204, %v1195
      %v1206 = vadd.f32 %v1205, %v1196
      %1207 = vadd.xlane.f32.xlu0 %v1206
      %v1208 = vpop.xlane.xlu0 %1207
      %v1209 = vadd.f32 %v1203, %v1208
      %v1210 = vmul.f32 %v1156, %v1156
      %v1211 = vmul.f32 %v1157, %v1157
      %v1212 = vmul.f32 %v1158, %v1158
      %v1213 = vmul.f32 %v1159, %v1159
      %v1214 = vmul.f32 %v1160, %v1160
      %v1215 = vadd.f32 %v1210, %v1211
      %v1216 = vadd.f32 %v1215, %v1212
      %v1217 = vadd.f32 %v1216, %v1213
      %v1218 = vsel %vm659, %v1214, 0.0
      %v1219 = vadd.f32 %v1217, %v1218
      %1220 = vadd.xlane.f32.xlu0 %v1219
      %v1221 = vpop.xlane.xlu0 %1220
      %v1222 = vmul.f32 %v1193, %v1193
      %v1223 = vmul.f32 %v1194, %v1194
      %v1224 = vmul.f32 %v1195, %v1195
      %v1225 = vmul.f32 %v1196, %v1196
      %v1226 = vadd.f32 %v1222, %v1223
      %v1227 = vadd.f32 %v1226, %v1224
      %v1228 = vadd.f32 %v1227, %v1225
      %1229 = vadd.xlane.f32.xlu0 %v1228
      %v1230 = vpop.xlane.xlu0 %1229
      %v1231 = vadd.f32 %v1221, %v1230
      %v1232 = vmul.f32 %v1209, 0.00096899224
      %v1233 = vmul.f32 %v1231, 0.00096899224
      %v1234 = vmul.f32 %v1232, %v1232
      %v1235 = vsub.f32 %v1233, %v1234
      %v1236 = vmax.f32 %v1235, 0.0
      %v1237 = vadd.f32 %v1236, 1e-05
      %v1238 = vrsqrt.pop %v1237
      %v1239 = vmul.f32 %v1238, %v1106
      %v1240 = vmul.f32 %v1232, %v1239
      %1242 = vrot.lane.b32.xlu0 %v1240, 1
      %v1243 = vpop.permute.xlu0 %1242
      %v1245 = vsub.f32 %v1106, %v1243
      %1247 = vset.pattern.permute.xlu0 2
      %1248 = vperm.xlu0 %1247, %v1239
      %v1249 = vpop.permute.xlu0 %1248
      %v1251 = vmul.f32 %v1156, %v1249
      %v1252 = vmul.f32 %v1157, %v1249
      %v1253 = vmul.f32 %v1158, %v1249
      %v1254 = vmul.f32 %v1159, %v1249
      %v1255 = vmul.f32 %v1160, %v1249
      %1257 = vset.pattern.permute.xlu0 3
      %1258 = vperm.xlu0 %1257, %v1245
      %v1259 = vpop.permute.xlu0 %1258
      %v1261 = vadd.f32 %v1251, %v1259
      %v1262 = vadd.f32 %v1252, %v1259
      %v1263 = vadd.f32 %v1253, %v1259
      %v1264 = vadd.f32 %v1254, %v1259
      %v1265 = vadd.f32 %v1255, %v1259
      %v1266 = vmul.f32 %v1193, %v1249
      %v1267 = vmul.f32 %v1194, %v1249
      %v1268 = vmul.f32 %v1195, %v1249
      %v1269 = vmul.f32 %v1196, %v1249
      %v1270 = vadd.f32 %v1266, %v1259
      %v1271 = vadd.f32 %v1267, %v1259
      %v1272 = vadd.f32 %v1268, %v1259
      %v1273 = vadd.f32 %v1269, %v1259
      %vm1274 = vcmp.ge.f32.partialorder %v1261, 0.0
      %vm1275 = vcmp.ge.f32.partialorder %v1262, 0.0
      %vm1276 = vcmp.ge.f32.partialorder %v1263, 0.0
      %vm1277 = vcmp.ge.f32.partialorder %v1264, 0.0
      %vm1278 = vcmp.ge.f32.partialorder %v1265, 0.0
      %1279 = vset.pattern.permute.xlu0 4
      %1280 = vperm.xlu0 %1279, %v1106
      %v1281 = vpop.permute.xlu0 %1280
      %v1283 = vmul.f32 %v1281, %v1261
      %v1284 = vmul.f32 %v1281, %v1262
      %v1285 = vmul.f32 %v1281, %v1263
      %v1286 = vmul.f32 %v1281, %v1264
      %v1287 = vmul.f32 %v1281, %v1265
      %v1288 = vsel %vm1274, %v1261, %v1283
      %v1289 = vsel %vm1275, %v1262, %v1284
      %v1290 = vsel %vm1276, %v1263, %v1285
      %v1291 = vsel %vm1277, %v1264, %v1286
      %v1292 = vsel %vm1278, %v1265, %v1287
      %vm1293 = vcmp.ge.f32.partialorder %v1270, 0.0
      %vm1294 = vcmp.ge.f32.partialorder %v1271, 0.0
      %vm1295 = vcmp.ge.f32.partialorder %v1272, 0.0
      %vm1296 = vcmp.ge.f32.partialorder %v1273, 0.0
      %v1297 = vmul.f32 %v1281, %v1270
      %v1298 = vmul.f32 %v1281, %v1271
      %v1299 = vmul.f32 %v1281, %v1272
      %v1300 = vmul.f32 %v1281, %v1273
      %v1301 = vsel %vm1293, %v1270, %v1297
      %v1302 = vsel %vm1294, %v1271, %v1298
      %v1303 = vsel %vm1295, %v1272, %v1299
      %v1304 = vsel %vm1296, %v1273, %v1300
      %1305 = vst [vmem:[%s232] sm:$0xff] %v1288
      %1306 = vst [vmem:[%s232 + $0x8] sm:$0xff] %v1289
      %1307 = vst [vmem:[%s232 + $0x10] sm:$0xff] %v1290
      %1308 = vst [vmem:[%s232 + $0x18] sm:$0xff] %v1291
      %1309 = vst.msk [vmem:[%s232 + $0x20] sm:$0xff] %vm659, %v1292
      %1310 = vst [vmem:[%s237] sm:$0xff] %v1301
      %1311 = vst [vmem:[%s237 + $0x8] sm:$0xff] %v1302
      %1312 = vst [vmem:[%s237 + $0x10] sm:$0xff] %v1303
      %1313 = vst [vmem:[%s237 + $0x18] sm:$0xff] %v1304
      %p1314 = scmp.lt.s32.totalorder %s17, 1
      %s1315 = scalar_select %p1314, %s17, 1
      %s1316 = smul.addr %s1315, 5
      %s1317 = smul.addr %s1316, 8
      %s1318 = scalar_lea.vmem %s4, %s1317
      %p1319 = scmp.lt.s32.totalorder %s17, 1
      %s1320 = scalar_select %p1319, %s17, 1
      %s1321 = smul.addr %s1320, 4
      %s1322 = smul.addr %s1321, 8
      %s1323 = scalar_lea.vmem %s5, %s1322
      // Predicated region
      $region37: #{unet_decoder_pallas.9} parent=35 // pred_check
        %p1324 = pneg %p124
      $region38: #{unet_decoder_pallas.9} parent=35 // pred_check_branch
        %1326 = sbr.rel (%p1324) target = $region40
      $region39: #{unet_decoder_pallas.9} parent=35 // pred_region
        _
      $region40: #{unet_decoder_pallas.9} parent=35 // pred_fallthru
        _
      // Predicated region
      $region41: #{unet_decoder_pallas.9} parent=35 // pred_check
        %p1327 = pneg %p150
      $region42: #{unet_decoder_pallas.9} parent=35 // pred_check_branch
        %1329 = sbr.rel (%p1327) target = $region44
      $region43: #{unet_decoder_pallas.9} parent=35 // pred_region
        _
      $region44: #{unet_decoder_pallas.9} parent=35 // pred_fallthru
        _
    $region36: #{unet_decoder_pallas.9} parent=5 // pred_fallthru
      _
    %p1330 = scmp.le.s32.totalorder 2, %s12
    // Predicated region
    $region45: #{unet_decoder_pallas.9} parent=5 // pred_check
      %p1331 = pneg %p1330
    $region46: #{unet_decoder_pallas.9} parent=5 // pred_check_branch
      %1333 = sbr.rel (%p1331) target = $region48
    $region47: #{unet_decoder_pallas.9} parent=5 // pred_region
      %s1334 = ssub.s32 %s12, 2
      // Predicated region
      $region49: #{unet_decoder_pallas.9} parent=47 // pred_check
        %p1335 = pneg %p130
      $region50: #{unet_decoder_pallas.9} parent=47 // pred_check_branch
        %1337 = sbr.rel (%p1335) target = $region52
      $region51: #{unet_decoder_pallas.9} parent=47 // pred_region
        %p1338 = scmp.lt.s32.totalorder %s18, 1
        %s1339 = scalar_select %p1338, %s18, 1
        %s1340 = smul.addr %s1339, 5
        %s1341 = smul.addr %s1340, 8
        %s1342 = scalar_lea.vmem %s4, %s1341
      $region52: #{unet_decoder_pallas.9} parent=47 // pred_fallthru
        _
      // Predicated region
      $region53: #{unet_decoder_pallas.9} parent=47 // pred_check
        %p1343 = pneg %p156
      $region54: #{unet_decoder_pallas.9} parent=47 // pred_check_branch
        %1345 = sbr.rel (%p1343) target = $region56
      $region55: #{unet_decoder_pallas.9} parent=47 // pred_region
        %p1346 = scmp.lt.s32.totalorder %s18, 1
        %s1347 = scalar_select %p1346, %s18, 1
        %s1348 = smul.addr %s1347, 4
        %s1349 = smul.addr %s1348, 8
        %s1350 = scalar_lea.vmem %s5, %s1349
      $region56: #{unet_decoder_pallas.9} parent=47 // pred_fallthru
        _
    $region48: #{unet_decoder_pallas.9} parent=5 // pred_fallthru
      _
  $region6: #{unet_decoder_pallas.9} parent=0 // loop_footer
    %s16 = sadd.s32 1, %s12
  $region7: #{unet_decoder_pallas.9} parent=0 // loop_footer_branch
    %11 = sbr.rel target = $region3
  $region8: #{unet_decoder_pallas.9} parent=0 // loop_exit
    _

</llo_original>
